<compile_context>
chip_gen: v6e
topology: v6e:2x2x1
jax: 0.10.0
libtpu: 0.0.40
codegen_flags: <defaults>
</compile_context>

<pallas_src>
import numpy as np
import jax
import jax.numpy as jnp
from jax.experimental import pallas as pl
from jax.experimental.pallas import tpu as pltpu

# ----------------------------- configuration --------------------------------
BATCH = 2
SEQ_LEN = 8
EMBED_SIZE = 32
HEADS = 4
HEAD_DIM = EMBED_SIZE // HEADS              # 8
PAIRS = HEADS * HEADS                       # 16 cross-head (h1, h2) pairs / token
PAIR_LANES = PAIRS * HEAD_DIM               # 128 lanes / token, ordered (h1, h2, d)
ROW_FEATS = SEQ_LEN * EMBED_SIZE            # 256 input/output lanes per batch row
ROW_PAIRS = SEQ_LEN * PAIRS                 # 128 pair lanes per batch row
ROW_PAIR_LANES = SEQ_LEN * PAIR_LANES       # 1024 (token,h1,h2,d) lanes per batch row

# Approximate (EUP vrcp) softmax reciprocal: not bit-faithful to torch softmax,
# fine at the test's 2e-2 tolerance.  Set False for exact division.
APPROX_RECIPROCAL = True

assert HEAD_DIM * HEADS == EMBED_SIZE, "embed_size must be divisible by heads"
# Lane-density assumptions baked into the prepared constants (all matmul operands
# and the output slab are multiples of 128 lanes wide for these shapes).
assert PAIR_LANES % 128 == 0
assert ROW_FEATS % 128 == 0
assert ROW_PAIRS % 128 == 0
assert ROW_PAIR_LANES % 128 == 0


# ------------------------------ Pallas kernel --------------------------------
def _mhsa_kernel(x_ref, wqkv_ref, red_ref, wout_ref, bias_ref, out_ref):
    """Fused forward on batch-major rows: one row per batch element, tokens in lanes."""
    f32 = jnp.float32
    bf16 = jnp.bfloat16

    # Per-head Q/K/V projections with head replication (and the 1/sqrt(E) query
    # scale) folded into block-diagonal prepared weights:
    #   (N, S*E) @ (S*E, S*128) -> (N, S*128), lanes ordered (token, h1, h2, d).
    qc = jnp.dot(x_ref[0], wqkv_ref[0], preferred_element_type=f32)
    kc = jnp.dot(x_ref[1], wqkv_ref[1], preferred_element_type=f32)
    vc = jnp.dot(x_ref[2], wqkv_ref[2], preferred_element_type=f32)

    expand = red_ref[:, :ROW_PAIR_LANES]      # (S*16, S*128) 0/1: pair <-> its d-lanes
    groupsum = red_ref[:, ROW_PAIR_LANES:]    # (S*16, S*16)  0/1: same-(token,h1) groups

    # Cross-head logits: reduce q*k over d with an NT matmul against `expand`
    # (softmax scale already folded into the query weights).
    prod = (qc * kc).astype(bf16)
    logits = jax.lax.dot_general(
        prod, expand,
        dimension_numbers=(((1,), (1,)), ((), ())),
        preferred_element_type=f32)                                  # (N, S*H*H)

    # Softmax over h2 within each (token, h1) group.  The per-row max is constant
    # along every softmax group, so it is a valid stabiliser.
    m = jnp.max(logits, axis=-1, keepdims=True)
    e = jnp.exp(logits - m)
    denom = jnp.dot(e.astype(bf16), groupsum, preferred_element_type=f32)
    if APPROX_RECIPROCAL:
        attn = e * pl.reciprocal(denom, approx=True)
    else:
        attn = e / denom

    # Broadcast attention back onto (h1, h2, d) lanes, weight V, then one matmul
    # that sums over h2, applies torch's scrambling (N,H,S,D)->(N,S,H*D) flat
    # reshape and the fc_out weight (all folded into `wout`), plus bias.
    ae = jnp.dot(attn.astype(bf16), expand, preferred_element_type=f32)   # (N, S*128)
    comb = (ae * vc).astype(bf16)
    out_ref[...] = (jnp.dot(comb, wout_ref[...], preferred_element_type=f32)
                    + bias_ref[...])                                      # (N, S*E)


# ------------------------------ wrapper ---------------------------------------
@jax.jit
def mhsa_forward(value, key, query, prep):
    """value/key/query: (N, S, E) float32.  prep: constants from prepare_params."""
    N, S, E = query.shape
    # Batch-major, lane-dense activations: one row per batch element with the S*E
    # token features flattened into lanes (contiguous reshape), bf16 MXU operands.
    x = jnp.stack([query.reshape(N, S * E),
                   key.reshape(N, S * E),
                   value.reshape(N, S * E)]).astype(jnp.bfloat16)
    out = pl.pallas_call(
        _mhsa_kernel,
        out_shape=jax.ShapeDtypeStruct((N, S * E), jnp.float32),
        in_specs=[pl.BlockSpec(memory_space=pltpu.MemorySpace.VMEM)] * 5,
        out_specs=pl.BlockSpec(memory_space=pltpu.MemorySpace.VMEM),
    )(x, prep["wqkv"], prep["red_slab"], prep["wout"], prep["bias"])
    # Narrow reshape stays outside the kernel so the store is a lane-dense slab.
    return out.reshape(N, S, E)


# ------------------------- parameter preparation (hoisted, one-time) ----------
def init_params(key):
    D, E = HEAD_DIM, EMBED_SIZE
    k1, k2, k3, k4 = jax.random.split(key, 4)
    return {
        "wq": 0.1 * jax.random.normal(k1, (D, D), jnp.float32),
        "wk": 0.1 * jax.random.normal(k2, (D, D), jnp.float32),
        "wv": 0.1 * jax.random.normal(k3, (D, D), jnp.float32),
        "wfc": 0.1 * jax.random.normal(k4, (E, E), jnp.float32),
        "bfc": 0.01 * jnp.arange(E, dtype=jnp.float32),
    }


def prepare_params(params):
    """Fold every static linear map of the forward into kernel constants (done once)."""
    H, D, E, S = HEADS, HEAD_DIM, EMBED_SIZE, SEQ_LEN
    P, R = PAIR_LANES, PAIRS
    scale = 1.0 / float(E) ** 0.5

    wq = np.asarray(params["wq"], np.float32)
    wk = np.asarray(params["wk"], np.float32)
    wv = np.asarray(params["wv"], np.float32)
    wfc = np.asarray(params["wfc"], np.float32)
    bfc = np.asarray(params["bfc"], np.float32)

    # Per-token projection weights mapping the E input features straight onto the
    # replicated 128-lane (h1, h2, d) pair layout.  Head replication and the
    # softmax 1/sqrt(E) scale (query side) are folded in here.
    wq_tok = np.zeros((E, P), np.float32)
    wk_tok = np.zeros((E, P), np.float32)
    wv_tok = np.zeros((E, P), np.float32)
    for h1 in range(H):
        for h2 in range(H):
            for d in range(D):
                lane = (h1 * H + h2) * D + d
                wq_tok[h1 * D:(h1 + 1) * D, lane] = wq[d, :] * scale
                wk_tok[h2 * D:(h2 + 1) * D, lane] = wk[d, :]
                wv_tok[h2 * D:(h2 + 1) * D, lane] = wv[d, :]

    def blockdiag(m, reps):
        r, c = m.shape
        out = np.zeros((reps * r, reps * c), np.float32)
        for s in range(reps):
            out[s * r:(s + 1) * r, s * c:(s + 1) * c] = m
        return out

    wqkv = np.stack([blockdiag(wq_tok, S),
                     blockdiag(wk_tok, S),
                     blockdiag(wv_tok, S)])                      # (3, S*E, S*128)

    # 0/1 reduction constants, packed into a single slab:
    #   expand[r, lane]  : pair (h1,h2) <-> its D lanes (reused for the d-reduction
    #                      forming the logits AND for broadcasting attention back),
    #   groupsum[r', r]  : same-(token,h1) groups (softmax denominator).
    expand_tok = np.zeros((R, P), np.float32)
    for r in range(R):
        expand_tok[r, r * D:(r + 1) * D] = 1.0
    groupsum_tok = (np.arange(R)[:, None] // H
                    == np.arange(R)[None, :] // H).astype(np.float32)
    red_slab = np.concatenate([blockdiag(expand_tok, S),
                               blockdiag(groupsum_tok, S)], axis=1)   # (S*16, S*128+S*16)

    # Combine-over-h2 + torch's scrambling flat (N,H,S,D)->(N,S,H*D) reshape +
    # fc_out weight, all folded into one (S*128, S*E) matrix.  Built directly from
    # the definitions, so it stays correct for any (H, S, D).
    wout = np.zeros((S * P, S * E), np.float32)
    for s in range(S):
        for h1 in range(H):
            u = h1 * S + s                 # flat (h1, s) index inside one batch elem
            s_out, g = u // H, u % H       # destination token / D-block after reshape
            for h2 in range(H):
                for d in range(D):
                    src = s * P + (h1 * H + h2) * D + d
                    wout[src, s_out * E:(s_out + 1) * E] = wfc[:, g * D + d]

    bias = np.tile(bfc, S).reshape(1, S * E)

    return {
        "wqkv": jnp.asarray(wqkv, jnp.bfloat16),
        "red_slab": jnp.asarray(red_slab, jnp.bfloat16),
        "wout": jnp.asarray(wout, jnp.bfloat16),
        "bias": jnp.asarray(bias, jnp.float32),
    }


# ------------------------------ pure-JAX reference ----------------------------
def ref_forward(value, key, query, params):
    N, S, E = query.shape
    H, D = HEADS, HEAD_DIM
    hi = jax.lax.Precision.HIGHEST

    def split(x):                            # 'b n (h d) -> b h n d'
        return x.reshape(N, S, H, D).transpose(0, 2, 1, 3)

    v = jnp.einsum("bhnd,ed->bhne", split(value), params["wv"], precision=hi)
    k = jnp.einsum("bhnd,ed->bhne", split(key), params["wk"], precision=hi)
    q = jnp.einsum("bhnd,ed->bhne", split(query), params["wq"], precision=hi)
    att = jnp.einsum("nqhd,nkhd->nhqk", q, k, precision=hi)
    att = jax.nn.softmax(att / (E ** 0.5), axis=3)
    out = jnp.einsum("nhql,nlhd->nqhd", att, v, precision=hi).reshape(N, S, H * D)
    return jnp.einsum("nse,fe->nsf", out, params["wfc"], precision=hi) + params["bfc"]


# ----------------------------------- main -------------------------------------
if __name__ == "__main__":
    root = jax.random.PRNGKey(0)
    kv, kk, kq, kp = jax.random.split(root, 4)
    value = jax.random.normal(kv, (BATCH, SEQ_LEN, EMBED_SIZE), jnp.float32)
    key_in = jax.random.normal(kk, (BATCH, SEQ_LEN, EMBED_SIZE), jnp.float32)
    query = jax.random.normal(kq, (BATCH, SEQ_LEN, EMBED_SIZE), jnp.float32)

    params = init_params(kp)
    prep = prepare_params(params)            # hoisted: no per-forward glue ops

    out = jax.block_until_ready(mhsa_forward(value, key_in, query, prep))
    ref = jax.block_until_ready(ref_forward(value, key_in, query, params))

    assert out.shape == (BATCH, SEQ_LEN, EMBED_SIZE)
    assert jnp.allclose(out, ref, rtol=2e-2, atol=2e-2), (
        float(jnp.max(jnp.abs(out - ref))))
    print("KERNEL_OK")
</pallas_src>

<mosaic_0001>
module attributes {stable_mosaic.version = 11 : i64} {
  func.func @_mhsa_kernel(%arg0: memref<3x2x256xbf16, #tpu.memory_space<vmem>>, %arg1: memref<3x256x1024xbf16, #tpu.memory_space<vmem>>, %arg2: memref<128x1152xbf16, #tpu.memory_space<vmem>>, %arg3: memref<1024x256xbf16, #tpu.memory_space<vmem>>, %arg4: memref<1x256xf32, #tpu.memory_space<vmem>>, %arg5: memref<2x256xf32, #tpu.memory_space<vmem>>) attributes {dimension_semantics = [], scalar_prefetch = 0 : i64, scratch_operands = 0 : i64, tpu.core_type = #tpu.core_type<tc>} {
    %c0 = arith.constant 0 : index
    %c0_0 = arith.constant 0 : index
    %c0_1 = arith.constant 0 : index
    %0 = vector.load %arg0[%c0, %c0_0, %c0_1] : memref<3x2x256xbf16, #tpu.memory_space<vmem>>, vector<1x2x256xbf16>
    %1 = vector.shape_cast %0 : vector<1x2x256xbf16> to vector<2x256xbf16>
    %c0_2 = arith.constant 0 : index
    %c0_3 = arith.constant 0 : index
    %c0_4 = arith.constant 0 : index
    %2 = vector.load %arg1[%c0_2, %c0_3, %c0_4] : memref<3x256x1024xbf16, #tpu.memory_space<vmem>>, vector<1x256x1024xbf16>
    %3 = vector.shape_cast %2 : vector<1x256x1024xbf16> to vector<256x1024xbf16>
    %cst = arith.constant dense<0.000000e+00> : vector<2x1024xf32>
    %4 = tpu.matmul %1, %3, %cst {dimension_numbers = #tpu.dot_dimension_numbers<[1], [0], [0], [1], [0, 0, 1, 1], [], []>} : vector<2x256xbf16>, vector<256x1024xbf16>, vector<2x1024xf32> -> vector<2x1024xf32>
    %c1 = arith.constant 1 : index
    %c0_5 = arith.constant 0 : index
    %c0_6 = arith.constant 0 : index
    %5 = vector.load %arg0[%c1, %c0_5, %c0_6] : memref<3x2x256xbf16, #tpu.memory_space<vmem>>, vector<1x2x256xbf16>
    %6 = vector.shape_cast %5 : vector<1x2x256xbf16> to vector<2x256xbf16>
    %c1_7 = arith.constant 1 : index
    %c0_8 = arith.constant 0 : index
    %c0_9 = arith.constant 0 : index
    %7 = vector.load %arg1[%c1_7, %c0_8, %c0_9] : memref<3x256x1024xbf16, #tpu.memory_space<vmem>>, vector<1x256x1024xbf16>
    %8 = vector.shape_cast %7 : vector<1x256x1024xbf16> to vector<256x1024xbf16>
    %cst_10 = arith.constant dense<0.000000e+00> : vector<2x1024xf32>
    %9 = tpu.matmul %6, %8, %cst_10 {dimension_numbers = #tpu.dot_dimension_numbers<[1], [0], [0], [1], [0, 0, 1, 1], [], []>} : vector<2x256xbf16>, vector<256x1024xbf16>, vector<2x1024xf32> -> vector<2x1024xf32>
    %c2 = arith.constant 2 : index
    %c0_11 = arith.constant 0 : index
    %c0_12 = arith.constant 0 : index
    %10 = vector.load %arg0[%c2, %c0_11, %c0_12] : memref<3x2x256xbf16, #tpu.memory_space<vmem>>, vector<1x2x256xbf16>
    %11 = vector.shape_cast %10 : vector<1x2x256xbf16> to vector<2x256xbf16>
    %c2_13 = arith.constant 2 : index
    %c0_14 = arith.constant 0 : index
    %c0_15 = arith.constant 0 : index
    %12 = vector.load %arg1[%c2_13, %c0_14, %c0_15] : memref<3x256x1024xbf16, #tpu.memory_space<vmem>>, vector<1x256x1024xbf16>
    %13 = vector.shape_cast %12 : vector<1x256x1024xbf16> to vector<256x1024xbf16>
    %cst_16 = arith.constant dense<0.000000e+00> : vector<2x1024xf32>
    %14 = tpu.matmul %11, %13, %cst_16 {dimension_numbers = #tpu.dot_dimension_numbers<[1], [0], [0], [1], [0, 0, 1, 1], [], []>} : vector<2x256xbf16>, vector<256x1024xbf16>, vector<2x1024xf32> -> vector<2x1024xf32>
    %c0_17 = arith.constant 0 : index
    %c0_18 = arith.constant 0 : index
    %15 = vector.load %arg2[%c0_17, %c0_18] : memref<128x1152xbf16, #tpu.memory_space<vmem>>, vector<128x1024xbf16>
    %c0_19 = arith.constant 0 : index
    %c1024 = arith.constant 1024 : index
    %16 = vector.load %arg2[%c0_19, %c1024] : memref<128x1152xbf16, #tpu.memory_space<vmem>>, vector<128x128xbf16>
    %17 = arith.mulf %4, %9 : vector<2x1024xf32>
    %18 = arith.truncf %17 : vector<2x1024xf32> to vector<2x1024xbf16>
    %cst_20 = arith.constant dense<0.000000e+00> : vector<2x128xf32>
    %19 = tpu.matmul %18, %15, %cst_20 {dimension_numbers = #tpu.dot_dimension_numbers<[1], [1], [0], [0], [0, 0, 1, 0], [], []>} : vector<2x1024xbf16>, vector<128x1024xbf16>, vector<2x128xf32> -> vector<2x128xf32>
    %cst_21 = arith.constant dense<0xFF800000> : vector<2xf32>
    %20 = vector.multi_reduction <maximumf>, %19, %cst_21 [1] : vector<2x128xf32> to vector<2xf32>
    %21 = vector.shape_cast %20 : vector<2xf32> to vector<2x1xf32>
    %22 = vector.broadcast %21 : vector<2x1xf32> to vector<2x128xf32>
    %23 = arith.subf %19, %22 : vector<2x128xf32>
    %24 = math.exp %23 : vector<2x128xf32>
    %25 = arith.truncf %24 : vector<2x128xf32> to vector<2x128xbf16>
    %cst_22 = arith.constant dense<0.000000e+00> : vector<2x128xf32>
    %26 = tpu.matmul %25, %16, %cst_22 {dimension_numbers = #tpu.dot_dimension_numbers<[1], [0], [0], [1], [0, 0, 1, 1], [], []>} : vector<2x128xbf16>, vector<128x128xbf16>, vector<2x128xf32> -> vector<2x128xf32>
    %27 = tpu.reciprocal %26 {approx = true} : vector<2x128xf32> -> vector<2x128xf32>
    %28 = arith.mulf %24, %27 : vector<2x128xf32>
    %29 = arith.truncf %28 : vector<2x128xf32> to vector<2x128xbf16>
    %cst_23 = arith.constant dense<0.000000e+00> : vector<2x1024xf32>
    %30 = tpu.matmul %29, %15, %cst_23 {dimension_numbers = #tpu.dot_dimension_numbers<[1], [0], [0], [1], [0, 0, 1, 1], [], []>} : vector<2x128xbf16>, vector<128x1024xbf16>, vector<2x1024xf32> -> vector<2x1024xf32>
    %31 = arith.mulf %30, %14 : vector<2x1024xf32>
    %32 = arith.truncf %31 : vector<2x1024xf32> to vector<2x1024xbf16>
    %c0_24 = arith.constant 0 : index
    %c0_25 = arith.constant 0 : index
    %33 = vector.load %arg3[%c0_24, %c0_25] : memref<1024x256xbf16, #tpu.memory_space<vmem>>, vector<1024x256xbf16>
    %cst_26 = arith.constant dense<0.000000e+00> : vector<2x256xf32>
    %34 = tpu.matmul %32, %33, %cst_26 {dimension_numbers = #tpu.dot_dimension_numbers<[1], [0], [0], [1], [0, 0, 1, 1], [], []>} : vector<2x1024xbf16>, vector<1024x256xbf16>, vector<2x256xf32> -> vector<2x256xf32>
    %c0_27 = arith.constant 0 : index
    %c0_28 = arith.constant 0 : index
    %35 = vector.load %arg4[%c0_27, %c0_28] : memref<1x256xf32, #tpu.memory_space<vmem>>, vector<1x256xf32>
    %36 = vector.broadcast %35 : vector<1x256xf32> to vector<2x256xf32>
    %37 = arith.addf %34, %36 : vector<2x256xf32>
    %c0_29 = arith.constant 0 : index
    %c0_30 = arith.constant 0 : index
    %38 = vector.load %arg5[%c0_29, %c0_30] : memref<2x256xf32, #tpu.memory_space<vmem>>, vector<2x256xf32>
    tpu.vector_store %arg5[%c0_29, %c0_30], %37 {strides = array<i32>} : memref<2x256xf32, #tpu.memory_space<vmem>>, vector<2x256xf32>,
    return
  }
}

</mosaic_0001>

<llo_original>
// kernel: mhsa_forward.1
$region0: #{mhsa_forward.1}
  #allocation0 [shape = 'u32[]', space=smem, size = 0x4, offset = 0x4, fixed_abs, tag = 'smem constant byte address 0x4 - core index']
  #allocation1 [shape = 'u32[144,128]{1,0:T(1,128)}', space=vmem, size = 0x12000, scoped, tag = 'internal scratch']
  %s0 = inlined_call_operand.vmem [shape: bf16[3,2,256], index: 0, kind: input, shape index: {}]
  %s1 = inlined_call_operand.hbm [shape: bf16[3,256,1024], index: 1, kind: input, shape index: {}]
  %s2 = inlined_call_operand.hbm [shape: bf16[128,1152], index: 2, kind: input, shape index: {}]
  %s3 = inlined_call_operand.hbm [shape: bf16[1024,256], index: 3, kind: input, shape index: {}]
  %s4 = inlined_call_operand.hbm [shape: f32[1,256], index: 4, kind: input, shape index: {}]
  %s5 = inlined_call_operand.vmem [shape: f32[2,256], index: 5, kind: output, shape index: {}]
  %s6 = sld [smem:[#allocation0]]
  $region46: #{mhsa_forward.1} parent=0
    _
  %s8 = ssub.s32 1, %s6
  %s9 = scalar_select 0, %s8, %s6
  $region1: #{mhsa_forward.1} parent=0
    #allocation2 [shape = 'u8[1572864]{0}', space=vmem, size = 0x180000, scoped, tag = 'input window, operand 1, single buffered']
    #allocation3 [shape = 's32[1]{0}', space=sflag, size = 0x4, scoped, tag = 'scoped memory for mhsa_forward.1']
    #allocation4 [shape = 'u8[294912]{0}', space=vmem, size = 0x48000, scoped, tag = 'input window, operand 2, single buffered']
    #allocation5 [shape = 's32[1]{0}', space=sflag, size = 0x4, scoped, tag = 'scoped memory for mhsa_forward.1']
    #allocation6 [shape = 'u8[524288]{0}', space=vmem, size = 0x80000, scoped, tag = 'input window, operand 3, single buffered']
    #allocation7 [shape = 'u8[1024]{0}', space=vmem, size = 0x400, scoped, tag = 'input window, operand 4, single buffered']
    #allocation8 [shape = 's32[1]{0}', space=sflag, size = 0x4, scoped, tag = 'scoped memory for mhsa_forward.1']
    %10 = vsyncpa [#allocation3], 0
    %11 = vsyncpa [#allocation5], 0
    %12 = vsyncpa [#allocation8], 0
    // Predicated region
    $region2: #{mhsa_forward.1} parent=1 // pred_check
      _
    $region3: #{mhsa_forward.1} parent=1 // pred_check_branch
      %14 = sbr.rel (0) target = $region5
    $region4: #{mhsa_forward.1} parent=1 // pred_region
      _
    $region5: #{mhsa_forward.1} parent=1 // pred_fallthru
      _
    // Predicated region
    $region6: #{mhsa_forward.1} parent=1 // pred_check
      _
    $region7: #{mhsa_forward.1} parent=1 // pred_check_branch
      %16 = sbr.rel (0) target = $region9
    $region8: #{mhsa_forward.1} parent=1 // pred_region
      %s18 = ssub.s32 49152, 49152
      %19 = vsyncadd [#allocation3], %s18
      %s20 = sshll.u32 [#allocation2], 4
      %s21 = int_to_ptr.vmem [resolvable:$true] %s20
      %26 = dma.hbm_to_vmem [thread:$0]  %s1, 49152, %s21, [#allocation3], 512, 512, 32
    $region9: #{mhsa_forward.1} parent=1 // pred_fallthru
      _
    // Predicated region
    $region10: #{mhsa_forward.1} parent=1 // pred_check
      _
    $region11: #{mhsa_forward.1} parent=1 // pred_check_branch
      %28 = sbr.rel (0) target = $region13
    $region12: #{mhsa_forward.1} parent=1 // pred_region
      %s30 = ssub.s32 9216, 9216
      %31 = vsyncadd [#allocation5], %s30
      %s32 = sshll.u32 [#allocation4], 4
      %s33 = int_to_ptr.vmem [resolvable:$true] %s32
      %38 = dma.hbm_to_vmem [thread:$0]  %s2, 9216, %s33, [#allocation5], 576, 576, 36
    $region13: #{mhsa_forward.1} parent=1 // pred_fallthru
      _
    // Predicated region
    $region14: #{mhsa_forward.1} parent=1 // pred_check
      _
    $region15: #{mhsa_forward.1} parent=1 // pred_check_branch
      %40 = sbr.rel (0) target = $region17
    $region16: #{mhsa_forward.1} parent=1 // pred_region
      %s42 = ssub.s32 16384, 16384
      %43 = vsyncadd [#allocation5], %s42
      %s44 = sshll.u32 [#allocation6], 4
      %s45 = int_to_ptr.vmem [resolvable:$true] %s44
      %50 = dma.hbm_to_vmem [thread:$0]  %s3, 16384, %s45, [#allocation5], 128, 128, 8
    $region17: #{mhsa_forward.1} parent=1 // pred_fallthru
      _
    // Predicated region
    $region18: #{mhsa_forward.1} parent=1 // pred_check
      _
    $region19: #{mhsa_forward.1} parent=1 // pred_check_branch
      %52 = sbr.rel (0) target = $region21
    $region20: #{mhsa_forward.1} parent=1 // pred_region
      %s54 = ssub.s32 32, 32
      %55 = vsyncadd [#allocation8], %s54
      %s57 = sshll.u32 [#allocation7], 4
      %s58 = int_to_ptr.vmem [resolvable:$true] %s57
      %60 = dma.hbm_to_vmem [thread:$0]  %s4, 32, %s58, [#allocation8]
    $region21: #{mhsa_forward.1} parent=1 // pred_fallthru
      _
    // Predicated region
    $region22: #{mhsa_forward.1} parent=1 // pred_check
      _
    $region23: #{mhsa_forward.1} parent=1 // pred_check_branch
      %62 = sbr.rel (0) target = $region25
    $region24: #{mhsa_forward.1} parent=1 // pred_region
      %63 = dma.done [#allocation3], 49152
    $region25: #{mhsa_forward.1} parent=1 // pred_fallthru
      _
    // Predicated region
    $region26: #{mhsa_forward.1} parent=1 // pred_check
      _
    $region27: #{mhsa_forward.1} parent=1 // pred_check_branch
      %65 = sbr.rel (0) target = $region29
    $region28: #{mhsa_forward.1} parent=1 // pred_region
      %66 = dma.done [#allocation5], 9216
    $region29: #{mhsa_forward.1} parent=1 // pred_fallthru
      _
    // Predicated region
    $region30: #{mhsa_forward.1} parent=1 // pred_check
      _
    $region31: #{mhsa_forward.1} parent=1 // pred_check_branch
      %68 = sbr.rel (0) target = $region33
    $region32: #{mhsa_forward.1} parent=1 // pred_region
      %69 = dma.done [#allocation5], 16384
    $region33: #{mhsa_forward.1} parent=1 // pred_fallthru
      _
    // Predicated region
    $region34: #{mhsa_forward.1} parent=1 // pred_check
      _
    $region35: #{mhsa_forward.1} parent=1 // pred_check_branch
      %71 = sbr.rel (0) target = $region37
    $region36: #{mhsa_forward.1} parent=1 // pred_region
      %72 = dma.done [#allocation8], 32
    $region37: #{mhsa_forward.1} parent=1 // pred_fallthru
      _
    %v74 = vld [vmem:[%s0] sm:$0x3]
    %v75 = vld [vmem:[#allocation2] sm:$0xff]
    %v76 = vld [vmem:[#allocation2 + $0x8] sm:$0xff]
    %v77 = vld [vmem:[#allocation2 + $0x10] sm:$0xff]
    %v78 = vld [vmem:[#allocation2 + $0x18] sm:$0xff]
    %v79 = vld [vmem:[#allocation2 + $0x20] sm:$0xff]
    %v80 = vld [vmem:[#allocation2 + $0x28] sm:$0xff]
    %v81 = vld [vmem:[#allocation2 + $0x30] sm:$0xff]
    %v82 = vld [vmem:[#allocation2 + $0x38] sm:$0xff]
    %v83 = vld [vmem:[#allocation2 + $0x40] sm:$0xff]
    %v84 = vld [vmem:[#allocation2 + $0x48] sm:$0xff]
    %v85 = vld [vmem:[#allocation2 + $0x50] sm:$0xff]
    %v86 = vld [vmem:[#allocation2 + $0x58] sm:$0xff]
    %v87 = vld [vmem:[#allocation2 + $0x60] sm:$0xff]
    %v88 = vld [vmem:[#allocation2 + $0x68] sm:$0xff]
    %v89 = vld [vmem:[#allocation2 + $0x70] sm:$0xff]
    %v90 = vld [vmem:[#allocation2 + $0x78] sm:$0xff]
    %v91 = vld [vmem:[#allocation2 + $0x80] sm:$0xff]
    %v92 = vld [vmem:[#allocation2 + $0x88] sm:$0xff]
    %v93 = vld [vmem:[#allocation2 + $0x90] sm:$0xff]
    %v94 = vld [vmem:[#allocation2 + $0x98] sm:$0xff]
    %v95 = vld [vmem:[#allocation2 + $0xa0] sm:$0xff]
    %v96 = vld [vmem:[#allocation2 + $0xa8] sm:$0xff]
    %v97 = vld [vmem:[#allocation2 + $0xb0] sm:$0xff]
    %v98 = vld [vmem:[#allocation2 + $0xb8] sm:$0xff]
    %v99 = vld [vmem:[#allocation2 + $0xc0] sm:$0xff]
    %v100 = vld [vmem:[#allocation2 + $0xc8] sm:$0xff]
    %v101 = vld [vmem:[#allocation2 + $0xd0] sm:$0xff]
    %v102 = vld [vmem:[#allocation2 + $0xd8] sm:$0xff]
    %v103 = vld [vmem:[#allocation2 + $0xe0] sm:$0xff]
    %v104 = vld [vmem:[#allocation2 + $0xe8] sm:$0xff]
    %v105 = vld [vmem:[#allocation2 + $0xf0] sm:$0xff]
    %v106 = vld [vmem:[#allocation2 + $0xf8] sm:$0xff]
    %v107 = vld [vmem:[#allocation2 + $0x100] sm:$0xff]
    %v108 = vld [vmem:[#allocation2 + $0x108] sm:$0xff]
    %v109 = vld [vmem:[#allocation2 + $0x110] sm:$0xff]
    %v110 = vld [vmem:[#allocation2 + $0x118] sm:$0xff]
    %v111 = vld [vmem:[#allocation2 + $0x120] sm:$0xff]
    %v112 = vld [vmem:[#allocation2 + $0x128] sm:$0xff]
    %v113 = vld [vmem:[#allocation2 + $0x130] sm:$0xff]
    %v114 = vld [vmem:[#allocation2 + $0x138] sm:$0xff]
    %v115 = vld [vmem:[#allocation2 + $0x140] sm:$0xff]
    %v116 = vld [vmem:[#allocation2 + $0x148] sm:$0xff]
    %v117 = vld [vmem:[#allocation2 + $0x150] sm:$0xff]
    %v118 = vld [vmem:[#allocation2 + $0x158] sm:$0xff]
    %v119 = vld [vmem:[#allocation2 + $0x160] sm:$0xff]
    %v120 = vld [vmem:[#allocation2 + $0x168] sm:$0xff]
    %v121 = vld [vmem:[#allocation2 + $0x170] sm:$0xff]
    %v122 = vld [vmem:[#allocation2 + $0x178] sm:$0xff]
    %v123 = vld [vmem:[#allocation2 + $0x180] sm:$0xff]
    %v124 = vld [vmem:[#allocation2 + $0x188] sm:$0xff]
    %v125 = vld [vmem:[#allocation2 + $0x190] sm:$0xff]
    %v126 = vld [vmem:[#allocation2 + $0x198] sm:$0xff]
    %v127 = vld [vmem:[#allocation2 + $0x1a0] sm:$0xff]
    %v128 = vld [vmem:[#allocation2 + $0x1a8] sm:$0xff]
    %v129 = vld [vmem:[#allocation2 + $0x1b0] sm:$0xff]
    %v130 = vld [vmem:[#allocation2 + $0x1b8] sm:$0xff]
    %v131 = vld [vmem:[#allocation2 + $0x1c0] sm:$0xff]
    %v132 = vld [vmem:[#allocation2 + $0x1c8] sm:$0xff]
    %v133 = vld [vmem:[#allocation2 + $0x1d0] sm:$0xff]
    %v134 = vld [vmem:[#allocation2 + $0x1d8] sm:$0xff]
    %v135 = vld [vmem:[#allocation2 + $0x1e0] sm:$0xff]
    %v136 = vld [vmem:[#allocation2 + $0x1e8] sm:$0xff]
    %v137 = vld [vmem:[#allocation2 + $0x1f0] sm:$0xff]
    %v138 = vld [vmem:[#allocation2 + $0x1f8] sm:$0xff]
    %v139 = vld [vmem:[#allocation2 + $0x200] sm:$0xff]
    %v140 = vld [vmem:[#allocation2 + $0x208] sm:$0xff]
    %v141 = vld [vmem:[#allocation2 + $0x210] sm:$0xff]
    %v142 = vld [vmem:[#allocation2 + $0x218] sm:$0xff]
    %v143 = vld [vmem:[#allocation2 + $0x220] sm:$0xff]
    %v144 = vld [vmem:[#allocation2 + $0x228] sm:$0xff]
    %v145 = vld [vmem:[#allocation2 + $0x230] sm:$0xff]
    %v146 = vld [vmem:[#allocation2 + $0x238] sm:$0xff]
    %v147 = vld [vmem:[#allocation2 + $0x240] sm:$0xff]
    %v148 = vld [vmem:[#allocation2 + $0x248] sm:$0xff]
    %v149 = vld [vmem:[#allocation2 + $0x250] sm:$0xff]
    %v150 = vld [vmem:[#allocation2 + $0x258] sm:$0xff]
    %v151 = vld [vmem:[#allocation2 + $0x260] sm:$0xff]
    %v152 = vld [vmem:[#allocation2 + $0x268] sm:$0xff]
    %v153 = vld [vmem:[#allocation2 + $0x270] sm:$0xff]
    %v154 = vld [vmem:[#allocation2 + $0x278] sm:$0xff]
    %v155 = vld [vmem:[#allocation2 + $0x280] sm:$0xff]
    %v156 = vld [vmem:[#allocation2 + $0x288] sm:$0xff]
    %v157 = vld [vmem:[#allocation2 + $0x290] sm:$0xff]
    %v158 = vld [vmem:[#allocation2 + $0x298] sm:$0xff]
    %v159 = vld [vmem:[#allocation2 + $0x2a0] sm:$0xff]
    %v160 = vld [vmem:[#allocation2 + $0x2a8] sm:$0xff]
    %v161 = vld [vmem:[#allocation2 + $0x2b0] sm:$0xff]
    %v162 = vld [vmem:[#allocation2 + $0x2b8] sm:$0xff]
    %v163 = vld [vmem:[#allocation2 + $0x2c0] sm:$0xff]
    %v164 = vld [vmem:[#allocation2 + $0x2c8] sm:$0xff]
    %v165 = vld [vmem:[#allocation2 + $0x2d0] sm:$0xff]
    %v166 = vld [vmem:[#allocation2 + $0x2d8] sm:$0xff]
    %v167 = vld [vmem:[#allocation2 + $0x2e0] sm:$0xff]
    %v168 = vld [vmem:[#allocation2 + $0x2e8] sm:$0xff]
    %v169 = vld [vmem:[#allocation2 + $0x2f0] sm:$0xff]
    %v170 = vld [vmem:[#allocation2 + $0x2f8] sm:$0xff]
    %v171 = vld [vmem:[#allocation2 + $0x300] sm:$0xff]
    %v172 = vld [vmem:[#allocation2 + $0x308] sm:$0xff]
    %v173 = vld [vmem:[#allocation2 + $0x310] sm:$0xff]
    %v174 = vld [vmem:[#allocation2 + $0x318] sm:$0xff]
    %v175 = vld [vmem:[#allocation2 + $0x320] sm:$0xff]
    %v176 = vld [vmem:[#allocation2 + $0x328] sm:$0xff]
    %v177 = vld [vmem:[#allocation2 + $0x330] sm:$0xff]
    %v178 = vld [vmem:[#allocation2 + $0x338] sm:$0xff]
    %v179 = vld [vmem:[#allocation2 + $0x340] sm:$0xff]
    %v180 = vld [vmem:[#allocation2 + $0x348] sm:$0xff]
    %v181 = vld [vmem:[#allocation2 + $0x350] sm:$0xff]
    %v182 = vld [vmem:[#allocation2 + $0x358] sm:$0xff]
    %v183 = vld [vmem:[#allocation2 + $0x360] sm:$0xff]
    %v184 = vld [vmem:[#allocation2 + $0x368] sm:$0xff]
    %v185 = vld [vmem:[#allocation2 + $0x370] sm:$0xff]
    %v186 = vld [vmem:[#allocation2 + $0x378] sm:$0xff]
    %v187 = vld [vmem:[#allocation2 + $0x380] sm:$0xff]
    %v188 = vld [vmem:[#allocation2 + $0x388] sm:$0xff]
    %v189 = vld [vmem:[#allocation2 + $0x390] sm:$0xff]
    %v190 = vld [vmem:[#allocation2 + $0x398] sm:$0xff]
    %v191 = vld [vmem:[#allocation2 + $0x3a0] sm:$0xff]
    %v192 = vld [vmem:[#allocation2 + $0x3a8] sm:$0xff]
    %v193 = vld [vmem:[#allocation2 + $0x3b0] sm:$0xff]
    %v194 = vld [vmem:[#allocation2 + $0x3b8] sm:$0xff]
    %v195 = vld [vmem:[#allocation2 + $0x3c0] sm:$0xff]
    %v196 = vld [vmem:[#allocation2 + $0x3c8] sm:$0xff]
    %v197 = vld [vmem:[#allocation2 + $0x3d0] sm:$0xff]
    %v198 = vld [vmem:[#allocation2 + $0x3d8] sm:$0xff]
    %v199 = vld [vmem:[#allocation2 + $0x3e0] sm:$0xff]
    %v200 = vld [vmem:[#allocation2 + $0x3e8] sm:$0xff]
    %v201 = vld [vmem:[#allocation2 + $0x3f0] sm:$0xff]
    %v202 = vld [vmem:[#allocation2 + $0x3f8] sm:$0xff]
    %v205 = vunpack.c.l.s4 1966171168
    %v206 = vunpack.c.0.s8 %v205
    %v207 = vlaneseq
    %v208 = vshrl.u32 %v207, 7
    %v209 = vsub.s32 %v206, %v208
    %v210 = vrot.slane %v74, %v209
    %v211 = vcombine.high %v210, %v210
    %v213 = vunpack.c.l.s4 1966171168
    %v214 = vunpack.c.0.s8 %v213
    %v215 = vlaneseq
    %v216 = vshrl.u32 %v215, 7
    %v217 = vsub.s32 %v214, %v216
    %v218 = vrot.slane %v210, %v217
    %v220 = vunpack.c.l.s4 1966171168
    %v221 = vunpack.c.0.s8 %v220
    %v222 = vlaneseq
    %v223 = vshrl.u32 %v222, 7
    %v224 = vsub.s32 %v221, %v223
    %v225 = vrot.slane %v211, %v224
    %v356 = vunpack.c.l.b16 %v75
    %v357 = vunpack.c.h.b16 %v75
    %v358 = vunpack.c.l.b16 %v76
    %v359 = vunpack.c.h.b16 %v76
    %v360 = vunpack.c.l.b16 %v77
    %v361 = vunpack.c.h.b16 %v77
    %v362 = vunpack.c.l.b16 %v78
    %v363 = vunpack.c.h.b16 %v78
    %v364 = vunpack.c.l.b16 %v79
    %v365 = vunpack.c.h.b16 %v79
    %v366 = vunpack.c.l.b16 %v80
    %v367 = vunpack.c.h.b16 %v80
    %v368 = vunpack.c.l.b16 %v81
    %v369 = vunpack.c.h.b16 %v81
    %v370 = vunpack.c.l.b16 %v82
    %v371 = vunpack.c.h.b16 %v82
    %v372 = vunpack.c.l.b16 %v83
    %v373 = vunpack.c.h.b16 %v83
    %v374 = vunpack.c.l.b16 %v84
    %v375 = vunpack.c.h.b16 %v84
    %v376 = vunpack.c.l.b16 %v85
    %v377 = vunpack.c.h.b16 %v85
    %v378 = vunpack.c.l.b16 %v86
    %v379 = vunpack.c.h.b16 %v86
    %v380 = vunpack.c.l.b16 %v87
    %v381 = vunpack.c.h.b16 %v87
    %v382 = vunpack.c.l.b16 %v88
    %v383 = vunpack.c.h.b16 %v88
    %v384 = vunpack.c.l.b16 %v89
    %v385 = vunpack.c.h.b16 %v89
    %v386 = vunpack.c.l.b16 %v90
    %v387 = vunpack.c.h.b16 %v90
    %v388 = vunpack.c.l.b16 %v91
    %v389 = vunpack.c.h.b16 %v91
    %v390 = vunpack.c.l.b16 %v92
    %v391 = vunpack.c.h.b16 %v92
    %v392 = vunpack.c.l.b16 %v93
    %v393 = vunpack.c.h.b16 %v93
    %v394 = vunpack.c.l.b16 %v94
    %v395 = vunpack.c.h.b16 %v94
    %v396 = vunpack.c.l.b16 %v95
    %v397 = vunpack.c.h.b16 %v95
    %v398 = vunpack.c.l.b16 %v96
    %v399 = vunpack.c.h.b16 %v96
    %v400 = vunpack.c.l.b16 %v97
    %v401 = vunpack.c.h.b16 %v97
    %v402 = vunpack.c.l.b16 %v98
    %v403 = vunpack.c.h.b16 %v98
    %v404 = vunpack.c.l.b16 %v99
    %v405 = vunpack.c.h.b16 %v99
    %v406 = vunpack.c.l.b16 %v100
    %v407 = vunpack.c.h.b16 %v100
    %v408 = vunpack.c.l.b16 %v101
    %v409 = vunpack.c.h.b16 %v101
    %v410 = vunpack.c.l.b16 %v102
    %v411 = vunpack.c.h.b16 %v102
    %v412 = vunpack.c.l.b16 %v103
    %v413 = vunpack.c.h.b16 %v103
    %v414 = vunpack.c.l.b16 %v104
    %v415 = vunpack.c.h.b16 %v104
    %v416 = vunpack.c.l.b16 %v105
    %v417 = vunpack.c.h.b16 %v105
    %v418 = vunpack.c.l.b16 %v106
    %v419 = vunpack.c.h.b16 %v106
    %v420 = vunpack.c.l.b16 %v107
    %v421 = vunpack.c.h.b16 %v107
    %v422 = vunpack.c.l.b16 %v108
    %v423 = vunpack.c.h.b16 %v108
    %v424 = vunpack.c.l.b16 %v109
    %v425 = vunpack.c.h.b16 %v109
    %v426 = vunpack.c.l.b16 %v110
    %v427 = vunpack.c.h.b16 %v110
    %v428 = vunpack.c.l.b16 %v111
    %v429 = vunpack.c.h.b16 %v111
    %v430 = vunpack.c.l.b16 %v112
    %v431 = vunpack.c.h.b16 %v112
    %v432 = vunpack.c.l.b16 %v113
    %v433 = vunpack.c.h.b16 %v113
    %v434 = vunpack.c.l.b16 %v114
    %v435 = vunpack.c.h.b16 %v114
    %v436 = vunpack.c.l.b16 %v115
    %v437 = vunpack.c.h.b16 %v115
    %v438 = vunpack.c.l.b16 %v116
    %v439 = vunpack.c.h.b16 %v116
    %v440 = vunpack.c.l.b16 %v117
    %v441 = vunpack.c.h.b16 %v117
    %v442 = vunpack.c.l.b16 %v118
    %v443 = vunpack.c.h.b16 %v118
    %v444 = vunpack.c.l.b16 %v119
    %v445 = vunpack.c.h.b16 %v119
    %v446 = vunpack.c.l.b16 %v120
    %v447 = vunpack.c.h.b16 %v120
    %v448 = vunpack.c.l.b16 %v121
    %v449 = vunpack.c.h.b16 %v121
    %v450 = vunpack.c.l.b16 %v122
    %v451 = vunpack.c.h.b16 %v122
    %v452 = vunpack.c.l.b16 %v123
    %v453 = vunpack.c.h.b16 %v123
    %v454 = vunpack.c.l.b16 %v124
    %v455 = vunpack.c.h.b16 %v124
    %v456 = vunpack.c.l.b16 %v125
    %v457 = vunpack.c.h.b16 %v125
    %v458 = vunpack.c.l.b16 %v126
    %v459 = vunpack.c.h.b16 %v126
    %v460 = vunpack.c.l.b16 %v127
    %v461 = vunpack.c.h.b16 %v127
    %v462 = vunpack.c.l.b16 %v128
    %v463 = vunpack.c.h.b16 %v128
    %v464 = vunpack.c.l.b16 %v129
    %v465 = vunpack.c.h.b16 %v129
    %v466 = vunpack.c.l.b16 %v130
    %v467 = vunpack.c.h.b16 %v130
    %v468 = vunpack.c.l.b16 %v131
    %v469 = vunpack.c.h.b16 %v131
    %v470 = vunpack.c.l.b16 %v132
    %v471 = vunpack.c.h.b16 %v132
    %v472 = vunpack.c.l.b16 %v133
    %v473 = vunpack.c.h.b16 %v133
    %v474 = vunpack.c.l.b16 %v134
    %v475 = vunpack.c.h.b16 %v134
    %v476 = vunpack.c.l.b16 %v135
    %v477 = vunpack.c.h.b16 %v135
    %v478 = vunpack.c.l.b16 %v136
    %v479 = vunpack.c.h.b16 %v136
    %v480 = vunpack.c.l.b16 %v137
    %v481 = vunpack.c.h.b16 %v137
    %v482 = vunpack.c.l.b16 %v138
    %v483 = vunpack.c.h.b16 %v138
    %v484 = vunpack.c.l.b16 %v139
    %v485 = vunpack.c.h.b16 %v139
    %v486 = vunpack.c.l.b16 %v140
    %v487 = vunpack.c.h.b16 %v140
    %v488 = vunpack.c.l.b16 %v141
    %v489 = vunpack.c.h.b16 %v141
    %v490 = vunpack.c.l.b16 %v142
    %v491 = vunpack.c.h.b16 %v142
    %v492 = vunpack.c.l.b16 %v143
    %v493 = vunpack.c.h.b16 %v143
    %v494 = vunpack.c.l.b16 %v144
    %v495 = vunpack.c.h.b16 %v144
    %v496 = vunpack.c.l.b16 %v145
    %v497 = vunpack.c.h.b16 %v145
    %v498 = vunpack.c.l.b16 %v146
    %v499 = vunpack.c.h.b16 %v146
    %v500 = vunpack.c.l.b16 %v147
    %v501 = vunpack.c.h.b16 %v147
    %v502 = vunpack.c.l.b16 %v148
    %v503 = vunpack.c.h.b16 %v148
    %v504 = vunpack.c.l.b16 %v149
    %v505 = vunpack.c.h.b16 %v149
    %v506 = vunpack.c.l.b16 %v150
    %v507 = vunpack.c.h.b16 %v150
    %v508 = vunpack.c.l.b16 %v151
    %v509 = vunpack.c.h.b16 %v151
    %v510 = vunpack.c.l.b16 %v152
    %v511 = vunpack.c.h.b16 %v152
    %v512 = vunpack.c.l.b16 %v153
    %v513 = vunpack.c.h.b16 %v153
    %v514 = vunpack.c.l.b16 %v154
    %v515 = vunpack.c.h.b16 %v154
    %v516 = vunpack.c.l.b16 %v155
    %v517 = vunpack.c.h.b16 %v155
    %v518 = vunpack.c.l.b16 %v156
    %v519 = vunpack.c.h.b16 %v156
    %v520 = vunpack.c.l.b16 %v157
    %v521 = vunpack.c.h.b16 %v157
    %v522 = vunpack.c.l.b16 %v158
    %v523 = vunpack.c.h.b16 %v158
    %v524 = vunpack.c.l.b16 %v159
    %v525 = vunpack.c.h.b16 %v159
    %v526 = vunpack.c.l.b16 %v160
    %v527 = vunpack.c.h.b16 %v160
    %v528 = vunpack.c.l.b16 %v161
    %v529 = vunpack.c.h.b16 %v161
    %v530 = vunpack.c.l.b16 %v162
    %v531 = vunpack.c.h.b16 %v162
    %v532 = vunpack.c.l.b16 %v163
    %v533 = vunpack.c.h.b16 %v163
    %v534 = vunpack.c.l.b16 %v164
    %v535 = vunpack.c.h.b16 %v164
    %v536 = vunpack.c.l.b16 %v165
    %v537 = vunpack.c.h.b16 %v165
    %v538 = vunpack.c.l.b16 %v166
    %v539 = vunpack.c.h.b16 %v166
    %v540 = vunpack.c.l.b16 %v167
    %v541 = vunpack.c.h.b16 %v167
    %v542 = vunpack.c.l.b16 %v168
    %v543 = vunpack.c.h.b16 %v168
    %v544 = vunpack.c.l.b16 %v169
    %v545 = vunpack.c.h.b16 %v169
    %v546 = vunpack.c.l.b16 %v170
    %v547 = vunpack.c.h.b16 %v170
    %v548 = vunpack.c.l.b16 %v171
    %v549 = vunpack.c.h.b16 %v171
    %v550 = vunpack.c.l.b16 %v172
    %v551 = vunpack.c.h.b16 %v172
    %v552 = vunpack.c.l.b16 %v173
    %v553 = vunpack.c.h.b16 %v173
    %v554 = vunpack.c.l.b16 %v174
    %v555 = vunpack.c.h.b16 %v174
    %v556 = vunpack.c.l.b16 %v175
    %v557 = vunpack.c.h.b16 %v175
    %v558 = vunpack.c.l.b16 %v176
    %v559 = vunpack.c.h.b16 %v176
    %v560 = vunpack.c.l.b16 %v177
    %v561 = vunpack.c.h.b16 %v177
    %v562 = vunpack.c.l.b16 %v178
    %v563 = vunpack.c.h.b16 %v178
    %v564 = vunpack.c.l.b16 %v179
    %v565 = vunpack.c.h.b16 %v179
    %v566 = vunpack.c.l.b16 %v180
    %v567 = vunpack.c.h.b16 %v180
    %v568 = vunpack.c.l.b16 %v181
    %v569 = vunpack.c.h.b16 %v181
    %v570 = vunpack.c.l.b16 %v182
    %v571 = vunpack.c.h.b16 %v182
    %v572 = vunpack.c.l.b16 %v183
    %v573 = vunpack.c.h.b16 %v183
    %v574 = vunpack.c.l.b16 %v184
    %v575 = vunpack.c.h.b16 %v184
    %v576 = vunpack.c.l.b16 %v185
    %v577 = vunpack.c.h.b16 %v185
    %v578 = vunpack.c.l.b16 %v186
    %v579 = vunpack.c.h.b16 %v186
    %v580 = vunpack.c.l.b16 %v187
    %v581 = vunpack.c.h.b16 %v187
    %v582 = vunpack.c.l.b16 %v188
    %v583 = vunpack.c.h.b16 %v188
    %v584 = vunpack.c.l.b16 %v189
    %v585 = vunpack.c.h.b16 %v189
    %v586 = vunpack.c.l.b16 %v190
    %v587 = vunpack.c.h.b16 %v190
    %v588 = vunpack.c.l.b16 %v191
    %v589 = vunpack.c.h.b16 %v191
    %v590 = vunpack.c.l.b16 %v192
    %v591 = vunpack.c.h.b16 %v192
    %v592 = vunpack.c.l.b16 %v193
    %v593 = vunpack.c.h.b16 %v193
    %v594 = vunpack.c.l.b16 %v194
    %v595 = vunpack.c.h.b16 %v194
    %v596 = vunpack.c.l.b16 %v195
    %v597 = vunpack.c.h.b16 %v195
    %v598 = vunpack.c.l.b16 %v196
    %v599 = vunpack.c.h.b16 %v196
    %v600 = vunpack.c.l.b16 %v197
    %v601 = vunpack.c.h.b16 %v197
    %v602 = vunpack.c.l.b16 %v198
    %v603 = vunpack.c.h.b16 %v198
    %v604 = vunpack.c.l.b16 %v199
    %v605 = vunpack.c.h.b16 %v199
    %v606 = vunpack.c.l.b16 %v200
    %v607 = vunpack.c.h.b16 %v200
    %v608 = vunpack.c.l.b16 %v201
    %v609 = vunpack.c.h.b16 %v201
    %v610 = vunpack.c.l.b16 %v202
    %v611 = vunpack.c.h.b16 %v202
    %v612 = vpack.c.b16 %v364, %v356
    %v613 = vpack.c.b16 %v365, %v357
    %v614 = vpack.c.b16 %v366, %v358
    %v615 = vpack.c.b16 %v367, %v359
    %v616 = vpack.c.b16 %v368, %v360
    %v617 = vpack.c.b16 %v369, %v361
    %v618 = vpack.c.b16 %v370, %v362
    %v619 = vpack.c.b16 %v371, %v363
    %v620 = vpack.c.b16 %v380, %v372
    %v621 = vpack.c.b16 %v381, %v373
    %v622 = vpack.c.b16 %v382, %v374
    %v623 = vpack.c.b16 %v383, %v375
    %v624 = vpack.c.b16 %v384, %v376
    %v625 = vpack.c.b16 %v385, %v377
    %v626 = vpack.c.b16 %v386, %v378
    %v627 = vpack.c.b16 %v387, %v379
    %v628 = vpack.c.b16 %v396, %v388
    %v629 = vpack.c.b16 %v397, %v389
    %v630 = vpack.c.b16 %v398, %v390
    %v631 = vpack.c.b16 %v399, %v391
    %v632 = vpack.c.b16 %v400, %v392
    %v633 = vpack.c.b16 %v401, %v393
    %v634 = vpack.c.b16 %v402, %v394
    %v635 = vpack.c.b16 %v403, %v395
    %v636 = vpack.c.b16 %v412, %v404
    %v637 = vpack.c.b16 %v413, %v405
    %v638 = vpack.c.b16 %v414, %v406
    %v639 = vpack.c.b16 %v415, %v407
    %v640 = vpack.c.b16 %v416, %v408
    %v641 = vpack.c.b16 %v417, %v409
    %v642 = vpack.c.b16 %v418, %v410
    %v643 = vpack.c.b16 %v419, %v411
    %v644 = vpack.c.b16 %v428, %v420
    %v645 = vpack.c.b16 %v429, %v421
    %v646 = vpack.c.b16 %v430, %v422
    %v647 = vpack.c.b16 %v431, %v423
    %v648 = vpack.c.b16 %v432, %v424
    %v649 = vpack.c.b16 %v433, %v425
    %v650 = vpack.c.b16 %v434, %v426
    %v651 = vpack.c.b16 %v435, %v427
    %v652 = vpack.c.b16 %v444, %v436
    %v653 = vpack.c.b16 %v445, %v437
    %v654 = vpack.c.b16 %v446, %v438
    %v655 = vpack.c.b16 %v447, %v439
    %v656 = vpack.c.b16 %v448, %v440
    %v657 = vpack.c.b16 %v449, %v441
    %v658 = vpack.c.b16 %v450, %v442
    %v659 = vpack.c.b16 %v451, %v443
    %v660 = vpack.c.b16 %v460, %v452
    %v661 = vpack.c.b16 %v461, %v453
    %v662 = vpack.c.b16 %v462, %v454
    %v663 = vpack.c.b16 %v463, %v455
    %v664 = vpack.c.b16 %v464, %v456
    %v665 = vpack.c.b16 %v465, %v457
    %v666 = vpack.c.b16 %v466, %v458
    %v667 = vpack.c.b16 %v467, %v459
    %v668 = vpack.c.b16 %v476, %v468
    %v669 = vpack.c.b16 %v477, %v469
    %v670 = vpack.c.b16 %v478, %v470
    %v671 = vpack.c.b16 %v479, %v471
    %v672 = vpack.c.b16 %v480, %v472
    %v673 = vpack.c.b16 %v481, %v473
    %v674 = vpack.c.b16 %v482, %v474
    %v675 = vpack.c.b16 %v483, %v475
    %v676 = vpack.c.b16 %v492, %v484
    %v677 = vpack.c.b16 %v493, %v485
    %v678 = vpack.c.b16 %v494, %v486
    %v679 = vpack.c.b16 %v495, %v487
    %v680 = vpack.c.b16 %v496, %v488
    %v681 = vpack.c.b16 %v497, %v489
    %v682 = vpack.c.b16 %v498, %v490
    %v683 = vpack.c.b16 %v499, %v491
    %v684 = vpack.c.b16 %v508, %v500
    %v685 = vpack.c.b16 %v509, %v501
    %v686 = vpack.c.b16 %v510, %v502
    %v687 = vpack.c.b16 %v511, %v503
    %v688 = vpack.c.b16 %v512, %v504
    %v689 = vpack.c.b16 %v513, %v505
    %v690 = vpack.c.b16 %v514, %v506
    %v691 = vpack.c.b16 %v515, %v507
    %v692 = vpack.c.b16 %v524, %v516
    %v693 = vpack.c.b16 %v525, %v517
    %v694 = vpack.c.b16 %v526, %v518
    %v695 = vpack.c.b16 %v527, %v519
    %v696 = vpack.c.b16 %v528, %v520
    %v697 = vpack.c.b16 %v529, %v521
    %v698 = vpack.c.b16 %v530, %v522
    %v699 = vpack.c.b16 %v531, %v523
    %v700 = vpack.c.b16 %v540, %v532
    %v701 = vpack.c.b16 %v541, %v533
    %v702 = vpack.c.b16 %v542, %v534
    %v703 = vpack.c.b16 %v543, %v535
    %v704 = vpack.c.b16 %v544, %v536
    %v705 = vpack.c.b16 %v545, %v537
    %v706 = vpack.c.b16 %v546, %v538
    %v707 = vpack.c.b16 %v547, %v539
    %v708 = vpack.c.b16 %v556, %v548
    %v709 = vpack.c.b16 %v557, %v549
    %v710 = vpack.c.b16 %v558, %v550
    %v711 = vpack.c.b16 %v559, %v551
    %v712 = vpack.c.b16 %v560, %v552
    %v713 = vpack.c.b16 %v561, %v553
    %v714 = vpack.c.b16 %v562, %v554
    %v715 = vpack.c.b16 %v563, %v555
    %v716 = vpack.c.b16 %v572, %v564
    %v717 = vpack.c.b16 %v573, %v565
    %v718 = vpack.c.b16 %v574, %v566
    %v719 = vpack.c.b16 %v575, %v567
    %v720 = vpack.c.b16 %v576, %v568
    %v721 = vpack.c.b16 %v577, %v569
    %v722 = vpack.c.b16 %v578, %v570
    %v723 = vpack.c.b16 %v579, %v571
    %v724 = vpack.c.b16 %v588, %v580
    %v725 = vpack.c.b16 %v589, %v581
    %v726 = vpack.c.b16 %v590, %v582
    %v727 = vpack.c.b16 %v591, %v583
    %v728 = vpack.c.b16 %v592, %v584
    %v729 = vpack.c.b16 %v593, %v585
    %v730 = vpack.c.b16 %v594, %v586
    %v731 = vpack.c.b16 %v595, %v587
    %v732 = vpack.c.b16 %v604, %v596
    %v733 = vpack.c.b16 %v605, %v597
    %v734 = vpack.c.b16 %v606, %v598
    %v735 = vpack.c.b16 %v607, %v599
    %v736 = vpack.c.b16 %v608, %v600
    %v737 = vpack.c.b16 %v609, %v601
    %v738 = vpack.c.b16 %v610, %v602
    %v739 = vpack.c.b16 %v611, %v603
    %868 = vmatprep.subr.bf16.mxu0 %v669
    %869 = vmatpush1.bf16.msra.mxu0 %v668
    %870 = vmatprep.subr.bf16.mxu0 %v661
    %871 = vmatpush1.bf16.msra.mxu0 %v660
    %872 = vmatprep.subr.bf16.mxu0 %v653
    %873 = vmatpush1.bf16.msra.mxu0 %v652
    %874 = vmatprep.subr.bf16.mxu0 %v645
    %875 = vmatpush1.bf16.msra.mxu0 %v644
    %876 = vmatprep.subr.bf16.mxu0 %v637
    %877 = vmatpush1.bf16.msra.mxu0 %v636
    %878 = vmatprep.subr.bf16.mxu0 %v629
    %879 = vmatpush1.bf16.msra.mxu0 %v628
    %880 = vmatprep.subr.bf16.mxu0 %v621
    %881 = vmatpush1.bf16.msra.mxu0 %v620
    %882 = vmatprep.subr.bf16.mxu0 %v613
    %883 = vmatpush1.bf16.msra.mxu0 %v612
    %884 = vmatprep.subr.bf16.mxu0 %v733
    %885 = vmatpush2.bf16.msra.mxu0 %v732
    %886 = vmatprep.subr.bf16.mxu0 %v725
    %887 = vmatpush2.bf16.msra.mxu0 %v724
    %888 = vmatprep.subr.bf16.mxu0 %v717
    %889 = vmatpush2.bf16.msra.mxu0 %v716
    %890 = vmatprep.subr.bf16.mxu0 %v709
    %891 = vmatpush2.bf16.msra.mxu0 %v708
    %892 = vmatprep.subr.bf16.mxu0 %v701
    %893 = vmatpush2.bf16.msra.mxu0 %v700
    %894 = vmatprep.subr.bf16.mxu0 %v693
    %895 = vmatpush2.bf16.msra.mxu0 %v692
    %896 = vmatprep.subr.bf16.mxu0 %v685
    %897 = vmatpush2.bf16.msra.mxu0 %v684
    %898 = vmatprep.subr.bf16.mxu0 %v677
    %899 = vmatpush2.bf16.msra.mxu0 %v676
    %900 = vmatprep.mubr.bf16.mxu0 %v225
    %901 = vmatmul.mubr.bf16.gmra.mxu0 %v218
    %v902 = vpop.f32.mrf.mxu0
    %v903 = vadd.f32 0.0, %v902
    %v904 = vpop.f32.mrf.mxu0
    %v905 = vadd.f32 0.0, %v904
    %v906 = vpop.f32.mrf.mxu0
    %v907 = vpop.f32.mrf.mxu0
    %908 = vdwg.mxu0
    %909 = vmatprep.subr.bf16.mxu0 %v671
    %910 = vmatpush1.bf16.msra.mxu0 %v670
    %911 = vmatprep.subr.bf16.mxu0 %v663
    %912 = vmatpush1.bf16.msra.mxu0 %v662
    %913 = vmatprep.subr.bf16.mxu0 %v655
    %914 = vmatpush1.bf16.msra.mxu0 %v654
    %915 = vmatprep.subr.bf16.mxu0 %v647
    %916 = vmatpush1.bf16.msra.mxu0 %v646
    %917 = vmatprep.subr.bf16.mxu0 %v639
    %918 = vmatpush1.bf16.msra.mxu0 %v638
    %919 = vmatprep.subr.bf16.mxu0 %v631
    %920 = vmatpush1.bf16.msra.mxu0 %v630
    %921 = vmatprep.subr.bf16.mxu0 %v623
    %922 = vmatpush1.bf16.msra.mxu0 %v622
    %923 = vmatprep.subr.bf16.mxu0 %v615
    %924 = vmatpush1.bf16.msra.mxu0 %v614
    %925 = vmatprep.subr.bf16.mxu0 %v735
    %926 = vmatpush2.bf16.msra.mxu0 %v734
    %927 = vmatprep.subr.bf16.mxu0 %v727
    %928 = vmatpush2.bf16.msra.mxu0 %v726
    %929 = vmatprep.subr.bf16.mxu0 %v719
    %930 = vmatpush2.bf16.msra.mxu0 %v718
    %931 = vmatprep.subr.bf16.mxu0 %v711
    %932 = vmatpush2.bf16.msra.mxu0 %v710
    %933 = vmatprep.subr.bf16.mxu0 %v703
    %934 = vmatpush2.bf16.msra.mxu0 %v702
    %935 = vmatprep.subr.bf16.mxu0 %v695
    %936 = vmatpush2.bf16.msra.mxu0 %v694
    %937 = vmatprep.subr.bf16.mxu0 %v687
    %938 = vmatpush2.bf16.msra.mxu0 %v686
    %939 = vmatprep.subr.bf16.mxu0 %v679
    %940 = vmatpush2.bf16.msra.mxu0 %v678
    %941 = vmatprep.mubr.bf16.mxu0 %v225
    %942 = vmatmul.mubr.bf16.gmra.mxu0 %v218
    %v943 = vpop.f32.mrf.mxu0
    %v944 = vadd.f32 0.0, %v943
    %v945 = vpop.f32.mrf.mxu0
    %v946 = vadd.f32 0.0, %v945
    %v947 = vpop.f32.mrf.mxu0
    %v948 = vpop.f32.mrf.mxu0
    %949 = vdwg.mxu0
    %950 = vmatprep.subr.bf16.mxu0 %v673
    %951 = vmatpush1.bf16.msra.mxu0 %v672
    %952 = vmatprep.subr.bf16.mxu0 %v665
    %953 = vmatpush1.bf16.msra.mxu0 %v664
    %954 = vmatprep.subr.bf16.mxu0 %v657
    %955 = vmatpush1.bf16.msra.mxu0 %v656
    %956 = vmatprep.subr.bf16.mxu0 %v649
    %957 = vmatpush1.bf16.msra.mxu0 %v648
    %958 = vmatprep.subr.bf16.mxu0 %v641
    %959 = vmatpush1.bf16.msra.mxu0 %v640
    %960 = vmatprep.subr.bf16.mxu0 %v633
    %961 = vmatpush1.bf16.msra.mxu0 %v632
    %962 = vmatprep.subr.bf16.mxu0 %v625
    %963 = vmatpush1.bf16.msra.mxu0 %v624
    %964 = vmatprep.subr.bf16.mxu0 %v617
    %965 = vmatpush1.bf16.msra.mxu0 %v616
    %966 = vmatprep.subr.bf16.mxu0 %v737
    %967 = vmatpush2.bf16.msra.mxu0 %v736
    %968 = vmatprep.subr.bf16.mxu0 %v729
    %969 = vmatpush2.bf16.msra.mxu0 %v728
    %970 = vmatprep.subr.bf16.mxu0 %v721
    %971 = vmatpush2.bf16.msra.mxu0 %v720
    %972 = vmatprep.subr.bf16.mxu0 %v713
    %973 = vmatpush2.bf16.msra.mxu0 %v712
    %974 = vmatprep.subr.bf16.mxu0 %v705
    %975 = vmatpush2.bf16.msra.mxu0 %v704
    %976 = vmatprep.subr.bf16.mxu0 %v697
    %977 = vmatpush2.bf16.msra.mxu0 %v696
    %978 = vmatprep.subr.bf16.mxu0 %v689
    %979 = vmatpush2.bf16.msra.mxu0 %v688
    %980 = vmatprep.subr.bf16.mxu0 %v681
    %981 = vmatpush2.bf16.msra.mxu0 %v680
    %982 = vmatprep.mubr.bf16.mxu0 %v225
    %983 = vmatmul.mubr.bf16.gmra.mxu0 %v218
    %v984 = vpop.f32.mrf.mxu0
    %v985 = vadd.f32 0.0, %v984
    %v986 = vpop.f32.mrf.mxu0
    %v987 = vadd.f32 0.0, %v986
    %v988 = vpop.f32.mrf.mxu0
    %v989 = vpop.f32.mrf.mxu0
    %990 = vdwg.mxu0
    %991 = vmatprep.subr.bf16.mxu0 %v675
    %992 = vmatpush1.bf16.msra.mxu0 %v674
    %993 = vmatprep.subr.bf16.mxu0 %v667
    %994 = vmatpush1.bf16.msra.mxu0 %v666
    %995 = vmatprep.subr.bf16.mxu0 %v659
    %996 = vmatpush1.bf16.msra.mxu0 %v658
    %997 = vmatprep.subr.bf16.mxu0 %v651
    %998 = vmatpush1.bf16.msra.mxu0 %v650
    %999 = vmatprep.subr.bf16.mxu0 %v643
    %1000 = vmatpush1.bf16.msra.mxu0 %v642
    %1001 = vmatprep.subr.bf16.mxu0 %v635
    %1002 = vmatpush1.bf16.msra.mxu0 %v634
    %1003 = vmatprep.subr.bf16.mxu0 %v627
    %1004 = vmatpush1.bf16.msra.mxu0 %v626
    %1005 = vmatprep.subr.bf16.mxu0 %v619
    %1006 = vmatpush1.bf16.msra.mxu0 %v618
    %1007 = vmatprep.subr.bf16.mxu0 %v739
    %1008 = vmatpush2.bf16.msra.mxu0 %v738
    %1009 = vmatprep.subr.bf16.mxu0 %v731
    %1010 = vmatpush2.bf16.msra.mxu0 %v730
    %1011 = vmatprep.subr.bf16.mxu0 %v723
    %1012 = vmatpush2.bf16.msra.mxu0 %v722
    %1013 = vmatprep.subr.bf16.mxu0 %v715
    %1014 = vmatpush2.bf16.msra.mxu0 %v714
    %1015 = vmatprep.subr.bf16.mxu0 %v707
    %1016 = vmatpush2.bf16.msra.mxu0 %v706
    %1017 = vmatprep.subr.bf16.mxu0 %v699
    %1018 = vmatpush2.bf16.msra.mxu0 %v698
    %1019 = vmatprep.subr.bf16.mxu0 %v691
    %1020 = vmatpush2.bf16.msra.mxu0 %v690
    %1021 = vmatprep.subr.bf16.mxu0 %v683
    %1022 = vmatpush2.bf16.msra.mxu0 %v682
    %1023 = vmatprep.mubr.bf16.mxu0 %v225
    %1024 = vmatmul.mubr.bf16.gmra.mxu0 %v218
    %v1025 = vpop.f32.mrf.mxu0
    %v1026 = vadd.f32 0.0, %v1025
    %v1027 = vpop.f32.mrf.mxu0
    %v1028 = vadd.f32 0.0, %v1027
    %v1029 = vpop.f32.mrf.mxu0
    %v1030 = vpop.f32.mrf.mxu0
    %1031 = vdwg.mxu0
    %s1032 = scalar_lea.vmem %s0, 2
    %v1033 = vld [vmem:[%s1032] sm:$0x3]
    %s1034 = scalar_lea.vmem [#allocation2], 1024
    %v1035 = vld [vmem:[%s1034] sm:$0xff]
    %v1036 = vld [vmem:[%s1034 + $0x8] sm:$0xff]
    %v1037 = vld [vmem:[%s1034 + $0x10] sm:$0xff]
    %v1038 = vld [vmem:[%s1034 + $0x18] sm:$0xff]
    %v1039 = vld [vmem:[%s1034 + $0x20] sm:$0xff]
    %v1040 = vld [vmem:[%s1034 + $0x28] sm:$0xff]
    %v1041 = vld [vmem:[%s1034 + $0x30] sm:$0xff]
    %v1042 = vld [vmem:[%s1034 + $0x38] sm:$0xff]
    %v1043 = vld [vmem:[%s1034 + $0x40] sm:$0xff]
    %v1044 = vld [vmem:[%s1034 + $0x48] sm:$0xff]
    %v1045 = vld [vmem:[%s1034 + $0x50] sm:$0xff]
    %v1046 = vld [vmem:[%s1034 + $0x58] sm:$0xff]
    %v1047 = vld [vmem:[%s1034 + $0x60] sm:$0xff]
    %v1048 = vld [vmem:[%s1034 + $0x68] sm:$0xff]
    %v1049 = vld [vmem:[%s1034 + $0x70] sm:$0xff]
    %v1050 = vld [vmem:[%s1034 + $0x78] sm:$0xff]
    %v1051 = vld [vmem:[%s1034 + $0x80] sm:$0xff]
    %v1052 = vld [vmem:[%s1034 + $0x88] sm:$0xff]
    %v1053 = vld [vmem:[%s1034 + $0x90] sm:$0xff]
    %v1054 = vld [vmem:[%s1034 + $0x98] sm:$0xff]
    %v1055 = vld [vmem:[%s1034 + $0xa0] sm:$0xff]
    %v1056 = vld [vmem:[%s1034 + $0xa8] sm:$0xff]
    %v1057 = vld [vmem:[%s1034 + $0xb0] sm:$0xff]
    %v1058 = vld [vmem:[%s1034 + $0xb8] sm:$0xff]
    %v1059 = vld [vmem:[%s1034 + $0xc0] sm:$0xff]
    %v1060 = vld [vmem:[%s1034 + $0xc8] sm:$0xff]
    %v1061 = vld [vmem:[%s1034 + $0xd0] sm:$0xff]
    %v1062 = vld [vmem:[%s1034 + $0xd8] sm:$0xff]
    %v1063 = vld [vmem:[%s1034 + $0xe0] sm:$0xff]
    %v1064 = vld [vmem:[%s1034 + $0xe8] sm:$0xff]
    %v1065 = vld [vmem:[%s1034 + $0xf0] sm:$0xff]
    %v1066 = vld [vmem:[%s1034 + $0xf8] sm:$0xff]
    %v1067 = vld [vmem:[%s1034 + $0x100] sm:$0xff]
    %v1068 = vld [vmem:[%s1034 + $0x108] sm:$0xff]
    %v1069 = vld [vmem:[%s1034 + $0x110] sm:$0xff]
    %v1070 = vld [vmem:[%s1034 + $0x118] sm:$0xff]
    %v1071 = vld [vmem:[%s1034 + $0x120] sm:$0xff]
    %v1072 = vld [vmem:[%s1034 + $0x128] sm:$0xff]
    %v1073 = vld [vmem:[%s1034 + $0x130] sm:$0xff]
    %v1074 = vld [vmem:[%s1034 + $0x138] sm:$0xff]
    %v1075 = vld [vmem:[%s1034 + $0x140] sm:$0xff]
    %v1076 = vld [vmem:[%s1034 + $0x148] sm:$0xff]
    %v1077 = vld [vmem:[%s1034 + $0x150] sm:$0xff]
    %v1078 = vld [vmem:[%s1034 + $0x158] sm:$0xff]
    %v1079 = vld [vmem:[%s1034 + $0x160] sm:$0xff]
    %v1080 = vld [vmem:[%s1034 + $0x168] sm:$0xff]
    %v1081 = vld [vmem:[%s1034 + $0x170] sm:$0xff]
    %v1082 = vld [vmem:[%s1034 + $0x178] sm:$0xff]
    %v1083 = vld [vmem:[%s1034 + $0x180] sm:$0xff]
    %v1084 = vld [vmem:[%s1034 + $0x188] sm:$0xff]
    %v1085 = vld [vmem:[%s1034 + $0x190] sm:$0xff]
    %v1086 = vld [vmem:[%s1034 + $0x198] sm:$0xff]
    %v1087 = vld [vmem:[%s1034 + $0x1a0] sm:$0xff]
    %v1088 = vld [vmem:[%s1034 + $0x1a8] sm:$0xff]
    %v1089 = vld [vmem:[%s1034 + $0x1b0] sm:$0xff]
    %v1090 = vld [vmem:[%s1034 + $0x1b8] sm:$0xff]
    %v1091 = vld [vmem:[%s1034 + $0x1c0] sm:$0xff]
    %v1092 = vld [vmem:[%s1034 + $0x1c8] sm:$0xff]
    %v1093 = vld [vmem:[%s1034 + $0x1d0] sm:$0xff]
    %v1094 = vld [vmem:[%s1034 + $0x1d8] sm:$0xff]
    %v1095 = vld [vmem:[%s1034 + $0x1e0] sm:$0xff]
    %v1096 = vld [vmem:[%s1034 + $0x1e8] sm:$0xff]
    %v1097 = vld [vmem:[%s1034 + $0x1f0] sm:$0xff]
    %v1098 = vld [vmem:[%s1034 + $0x1f8] sm:$0xff]
    %v1099 = vld [vmem:[%s1034 + $0x200] sm:$0xff]
    %v1100 = vld [vmem:[%s1034 + $0x208] sm:$0xff]
    %v1101 = vld [vmem:[%s1034 + $0x210] sm:$0xff]
    %v1102 = vld [vmem:[%s1034 + $0x218] sm:$0xff]
    %v1103 = vld [vmem:[%s1034 + $0x220] sm:$0xff]
    %v1104 = vld [vmem:[%s1034 + $0x228] sm:$0xff]
    %v1105 = vld [vmem:[%s1034 + $0x230] sm:$0xff]
    %v1106 = vld [vmem:[%s1034 + $0x238] sm:$0xff]
    %v1107 = vld [vmem:[%s1034 + $0x240] sm:$0xff]
    %v1108 = vld [vmem:[%s1034 + $0x248] sm:$0xff]
    %v1109 = vld [vmem:[%s1034 + $0x250] sm:$0xff]
    %v1110 = vld [vmem:[%s1034 + $0x258] sm:$0xff]
    %v1111 = vld [vmem:[%s1034 + $0x260] sm:$0xff]
    %v1112 = vld [vmem:[%s1034 + $0x268] sm:$0xff]
    %v1113 = vld [vmem:[%s1034 + $0x270] sm:$0xff]
    %v1114 = vld [vmem:[%s1034 + $0x278] sm:$0xff]
    %v1115 = vld [vmem:[%s1034 + $0x280] sm:$0xff]
    %v1116 = vld [vmem:[%s1034 + $0x288] sm:$0xff]
    %v1117 = vld [vmem:[%s1034 + $0x290] sm:$0xff]
    %v1118 = vld [vmem:[%s1034 + $0x298] sm:$0xff]
    %v1119 = vld [vmem:[%s1034 + $0x2a0] sm:$0xff]
    %v1120 = vld [vmem:[%s1034 + $0x2a8] sm:$0xff]
    %v1121 = vld [vmem:[%s1034 + $0x2b0] sm:$0xff]
    %v1122 = vld [vmem:[%s1034 + $0x2b8] sm:$0xff]
    %v1123 = vld [vmem:[%s1034 + $0x2c0] sm:$0xff]
    %v1124 = vld [vmem:[%s1034 + $0x2c8] sm:$0xff]
    %v1125 = vld [vmem:[%s1034 + $0x2d0] sm:$0xff]
    %v1126 = vld [vmem:[%s1034 + $0x2d8] sm:$0xff]
    %v1127 = vld [vmem:[%s1034 + $0x2e0] sm:$0xff]
    %v1128 = vld [vmem:[%s1034 + $0x2e8] sm:$0xff]
    %v1129 = vld [vmem:[%s1034 + $0x2f0] sm:$0xff]
    %v1130 = vld [vmem:[%s1034 + $0x2f8] sm:$0xff]
    %v1131 = vld [vmem:[%s1034 + $0x300] sm:$0xff]
    %v1132 = vld [vmem:[%s1034 + $0x308] sm:$0xff]
    %v1133 = vld [vmem:[%s1034 + $0x310] sm:$0xff]
    %v1134 = vld [vmem:[%s1034 + $0x318] sm:$0xff]
    %v1135 = vld [vmem:[%s1034 + $0x320] sm:$0xff]
    %v1136 = vld [vmem:[%s1034 + $0x328] sm:$0xff]
    %v1137 = vld [vmem:[%s1034 + $0x330] sm:$0xff]
    %v1138 = vld [vmem:[%s1034 + $0x338] sm:$0xff]
    %v1139 = vld [vmem:[%s1034 + $0x340] sm:$0xff]
    %v1140 = vld [vmem:[%s1034 + $0x348] sm:$0xff]
    %v1141 = vld [vmem:[%s1034 + $0x350] sm:$0xff]
    %v1142 = vld [vmem:[%s1034 + $0x358] sm:$0xff]
    %v1143 = vld [vmem:[%s1034 + $0x360] sm:$0xff]
    %v1144 = vld [vmem:[%s1034 + $0x368] sm:$0xff]
    %v1145 = vld [vmem:[%s1034 + $0x370] sm:$0xff]
    %v1146 = vld [vmem:[%s1034 + $0x378] sm:$0xff]
    %v1147 = vld [vmem:[%s1034 + $0x380] sm:$0xff]
    %v1148 = vld [vmem:[%s1034 + $0x388] sm:$0xff]
    %v1149 = vld [vmem:[%s1034 + $0x390] sm:$0xff]
    %v1150 = vld [vmem:[%s1034 + $0x398] sm:$0xff]
    %v1151 = vld [vmem:[%s1034 + $0x3a0] sm:$0xff]
    %v1152 = vld [vmem:[%s1034 + $0x3a8] sm:$0xff]
    %v1153 = vld [vmem:[%s1034 + $0x3b0] sm:$0xff]
    %v1154 = vld [vmem:[%s1034 + $0x3b8] sm:$0xff]
    %v1155 = vld [vmem:[%s1034 + $0x3c0] sm:$0xff]
    %v1156 = vld [vmem:[%s1034 + $0x3c8] sm:$0xff]
    %v1157 = vld [vmem:[%s1034 + $0x3d0] sm:$0xff]
    %v1158 = vld [vmem:[%s1034 + $0x3d8] sm:$0xff]
    %v1159 = vld [vmem:[%s1034 + $0x3e0] sm:$0xff]
    %v1160 = vld [vmem:[%s1034 + $0x3e8] sm:$0xff]
    %v1161 = vld [vmem:[%s1034 + $0x3f0] sm:$0xff]
    %v1162 = vld [vmem:[%s1034 + $0x3f8] sm:$0xff]
    %v1165 = vunpack.c.l.s4 1966171168
    %v1166 = vunpack.c.0.s8 %v1165
    %v1167 = vlaneseq
    %v1168 = vshrl.u32 %v1167, 7
    %v1169 = vsub.s32 %v1166, %v1168
    %v1170 = vrot.slane %v1033, %v1169
    %v1171 = vcombine.high %v1170, %v1170
    %v1173 = vunpack.c.l.s4 1966171168
    %v1174 = vunpack.c.0.s8 %v1173
    %v1175 = vlaneseq
    %v1176 = vshrl.u32 %v1175, 7
    %v1177 = vsub.s32 %v1174, %v1176
    %v1178 = vrot.slane %v1170, %v1177
    %v1180 = vunpack.c.l.s4 1966171168
    %v1181 = vunpack.c.0.s8 %v1180
    %v1182 = vlaneseq
    %v1183 = vshrl.u32 %v1182, 7
    %v1184 = vsub.s32 %v1181, %v1183
    %v1185 = vrot.slane %v1171, %v1184
    %v1316 = vunpack.c.l.b16 %v1035
    %v1317 = vunpack.c.h.b16 %v1035
    %v1318 = vunpack.c.l.b16 %v1036
    %v1319 = vunpack.c.h.b16 %v1036
    %v1320 = vunpack.c.l.b16 %v1037
    %v1321 = vunpack.c.h.b16 %v1037
    %v1322 = vunpack.c.l.b16 %v1038
    %v1323 = vunpack.c.h.b16 %v1038
    %v1324 = vunpack.c.l.b16 %v1039
    %v1325 = vunpack.c.h.b16 %v1039
    %v1326 = vunpack.c.l.b16 %v1040
    %v1327 = vunpack.c.h.b16 %v1040
    %v1328 = vunpack.c.l.b16 %v1041
    %v1329 = vunpack.c.h.b16 %v1041
    %v1330 = vunpack.c.l.b16 %v1042
    %v1331 = vunpack.c.h.b16 %v1042
    %v1332 = vunpack.c.l.b16 %v1043
    %v1333 = vunpack.c.h.b16 %v1043
    %v1334 = vunpack.c.l.b16 %v1044
    %v1335 = vunpack.c.h.b16 %v1044
    %v1336 = vunpack.c.l.b16 %v1045
    %v1337 = vunpack.c.h.b16 %v1045
    %v1338 = vunpack.c.l.b16 %v1046
    %v1339 = vunpack.c.h.b16 %v1046
    %v1340 = vunpack.c.l.b16 %v1047
    %v1341 = vunpack.c.h.b16 %v1047
    %v1342 = vunpack.c.l.b16 %v1048
    %v1343 = vunpack.c.h.b16 %v1048
    %v1344 = vunpack.c.l.b16 %v1049
    %v1345 = vunpack.c.h.b16 %v1049
    %v1346 = vunpack.c.l.b16 %v1050
    %v1347 = vunpack.c.h.b16 %v1050
    %v1348 = vunpack.c.l.b16 %v1051
    %v1349 = vunpack.c.h.b16 %v1051
    %v1350 = vunpack.c.l.b16 %v1052
    %v1351 = vunpack.c.h.b16 %v1052
    %v1352 = vunpack.c.l.b16 %v1053
    %v1353 = vunpack.c.h.b16 %v1053
    %v1354 = vunpack.c.l.b16 %v1054
    %v1355 = vunpack.c.h.b16 %v1054
    %v1356 = vunpack.c.l.b16 %v1055
    %v1357 = vunpack.c.h.b16 %v1055
    %v1358 = vunpack.c.l.b16 %v1056
    %v1359 = vunpack.c.h.b16 %v1056
    %v1360 = vunpack.c.l.b16 %v1057
    %v1361 = vunpack.c.h.b16 %v1057
    %v1362 = vunpack.c.l.b16 %v1058
    %v1363 = vunpack.c.h.b16 %v1058
    %v1364 = vunpack.c.l.b16 %v1059
    %v1365 = vunpack.c.h.b16 %v1059
    %v1366 = vunpack.c.l.b16 %v1060
    %v1367 = vunpack.c.h.b16 %v1060
    %v1368 = vunpack.c.l.b16 %v1061
    %v1369 = vunpack.c.h.b16 %v1061
    %v1370 = vunpack.c.l.b16 %v1062
    %v1371 = vunpack.c.h.b16 %v1062
    %v1372 = vunpack.c.l.b16 %v1063
    %v1373 = vunpack.c.h.b16 %v1063
    %v1374 = vunpack.c.l.b16 %v1064
    %v1375 = vunpack.c.h.b16 %v1064
    %v1376 = vunpack.c.l.b16 %v1065
    %v1377 = vunpack.c.h.b16 %v1065
    %v1378 = vunpack.c.l.b16 %v1066
    %v1379 = vunpack.c.h.b16 %v1066
    %v1380 = vunpack.c.l.b16 %v1067
    %v1381 = vunpack.c.h.b16 %v1067
    %v1382 = vunpack.c.l.b16 %v1068
    %v1383 = vunpack.c.h.b16 %v1068
    %v1384 = vunpack.c.l.b16 %v1069
    %v1385 = vunpack.c.h.b16 %v1069
    %v1386 = vunpack.c.l.b16 %v1070
    %v1387 = vunpack.c.h.b16 %v1070
    %v1388 = vunpack.c.l.b16 %v1071
    %v1389 = vunpack.c.h.b16 %v1071
    %v1390 = vunpack.c.l.b16 %v1072
    %v1391 = vunpack.c.h.b16 %v1072
    %v1392 = vunpack.c.l.b16 %v1073
    %v1393 = vunpack.c.h.b16 %v1073
    %v1394 = vunpack.c.l.b16 %v1074
    %v1395 = vunpack.c.h.b16 %v1074
    %v1396 = vunpack.c.l.b16 %v1075
    %v1397 = vunpack.c.h.b16 %v1075
    %v1398 = vunpack.c.l.b16 %v1076
    %v1399 = vunpack.c.h.b16 %v1076
    %v1400 = vunpack.c.l.b16 %v1077
    %v1401 = vunpack.c.h.b16 %v1077
    %v1402 = vunpack.c.l.b16 %v1078
    %v1403 = vunpack.c.h.b16 %v1078
    %v1404 = vunpack.c.l.b16 %v1079
    %v1405 = vunpack.c.h.b16 %v1079
    %v1406 = vunpack.c.l.b16 %v1080
    %v1407 = vunpack.c.h.b16 %v1080
    %v1408 = vunpack.c.l.b16 %v1081
    %v1409 = vunpack.c.h.b16 %v1081
    %v1410 = vunpack.c.l.b16 %v1082
    %v1411 = vunpack.c.h.b16 %v1082
    %v1412 = vunpack.c.l.b16 %v1083
    %v1413 = vunpack.c.h.b16 %v1083
    %v1414 = vunpack.c.l.b16 %v1084
    %v1415 = vunpack.c.h.b16 %v1084
    %v1416 = vunpack.c.l.b16 %v1085
    %v1417 = vunpack.c.h.b16 %v1085
    %v1418 = vunpack.c.l.b16 %v1086
    %v1419 = vunpack.c.h.b16 %v1086
    %v1420 = vunpack.c.l.b16 %v1087
    %v1421 = vunpack.c.h.b16 %v1087
    %v1422 = vunpack.c.l.b16 %v1088
    %v1423 = vunpack.c.h.b16 %v1088
    %v1424 = vunpack.c.l.b16 %v1089
    %v1425 = vunpack.c.h.b16 %v1089
    %v1426 = vunpack.c.l.b16 %v1090
    %v1427 = vunpack.c.h.b16 %v1090
    %v1428 = vunpack.c.l.b16 %v1091
    %v1429 = vunpack.c.h.b16 %v1091
    %v1430 = vunpack.c.l.b16 %v1092
    %v1431 = vunpack.c.h.b16 %v1092
    %v1432 = vunpack.c.l.b16 %v1093
    %v1433 = vunpack.c.h.b16 %v1093
    %v1434 = vunpack.c.l.b16 %v1094
    %v1435 = vunpack.c.h.b16 %v1094
    %v1436 = vunpack.c.l.b16 %v1095
    %v1437 = vunpack.c.h.b16 %v1095
    %v1438 = vunpack.c.l.b16 %v1096
    %v1439 = vunpack.c.h.b16 %v1096
    %v1440 = vunpack.c.l.b16 %v1097
    %v1441 = vunpack.c.h.b16 %v1097
    %v1442 = vunpack.c.l.b16 %v1098
    %v1443 = vunpack.c.h.b16 %v1098
    %v1444 = vunpack.c.l.b16 %v1099
    %v1445 = vunpack.c.h.b16 %v1099
    %v1446 = vunpack.c.l.b16 %v1100
    %v1447 = vunpack.c.h.b16 %v1100
    %v1448 = vunpack.c.l.b16 %v1101
    %v1449 = vunpack.c.h.b16 %v1101
    %v1450 = vunpack.c.l.b16 %v1102
    %v1451 = vunpack.c.h.b16 %v1102
    %v1452 = vunpack.c.l.b16 %v1103
    %v1453 = vunpack.c.h.b16 %v1103
    %v1454 = vunpack.c.l.b16 %v1104
    %v1455 = vunpack.c.h.b16 %v1104
    %v1456 = vunpack.c.l.b16 %v1105
    %v1457 = vunpack.c.h.b16 %v1105
    %v1458 = vunpack.c.l.b16 %v1106
    %v1459 = vunpack.c.h.b16 %v1106
    %v1460 = vunpack.c.l.b16 %v1107
    %v1461 = vunpack.c.h.b16 %v1107
    %v1462 = vunpack.c.l.b16 %v1108
    %v1463 = vunpack.c.h.b16 %v1108
    %v1464 = vunpack.c.l.b16 %v1109
    %v1465 = vunpack.c.h.b16 %v1109
    %v1466 = vunpack.c.l.b16 %v1110
    %v1467 = vunpack.c.h.b16 %v1110
    %v1468 = vunpack.c.l.b16 %v1111
    %v1469 = vunpack.c.h.b16 %v1111
    %v1470 = vunpack.c.l.b16 %v1112
    %v1471 = vunpack.c.h.b16 %v1112
    %v1472 = vunpack.c.l.b16 %v1113
    %v1473 = vunpack.c.h.b16 %v1113
    %v1474 = vunpack.c.l.b16 %v1114
    %v1475 = vunpack.c.h.b16 %v1114
    %v1476 = vunpack.c.l.b16 %v1115
    %v1477 = vunpack.c.h.b16 %v1115
    %v1478 = vunpack.c.l.b16 %v1116
    %v1479 = vunpack.c.h.b16 %v1116
    %v1480 = vunpack.c.l.b16 %v1117
    %v1481 = vunpack.c.h.b16 %v1117
    %v1482 = vunpack.c.l.b16 %v1118
    %v1483 = vunpack.c.h.b16 %v1118
    %v1484 = vunpack.c.l.b16 %v1119
    %v1485 = vunpack.c.h.b16 %v1119
    %v1486 = vunpack.c.l.b16 %v1120
    %v1487 = vunpack.c.h.b16 %v1120
    %v1488 = vunpack.c.l.b16 %v1121
    %v1489 = vunpack.c.h.b16 %v1121
    %v1490 = vunpack.c.l.b16 %v1122
    %v1491 = vunpack.c.h.b16 %v1122
    %v1492 = vunpack.c.l.b16 %v1123
    %v1493 = vunpack.c.h.b16 %v1123
    %v1494 = vunpack.c.l.b16 %v1124
    %v1495 = vunpack.c.h.b16 %v1124
    %v1496 = vunpack.c.l.b16 %v1125
    %v1497 = vunpack.c.h.b16 %v1125
    %v1498 = vunpack.c.l.b16 %v1126
    %v1499 = vunpack.c.h.b16 %v1126
    %v1500 = vunpack.c.l.b16 %v1127
    %v1501 = vunpack.c.h.b16 %v1127
    %v1502 = vunpack.c.l.b16 %v1128
    %v1503 = vunpack.c.h.b16 %v1128
    %v1504 = vunpack.c.l.b16 %v1129
    %v1505 = vunpack.c.h.b16 %v1129
    %v1506 = vunpack.c.l.b16 %v1130
    %v1507 = vunpack.c.h.b16 %v1130
    %v1508 = vunpack.c.l.b16 %v1131
    %v1509 = vunpack.c.h.b16 %v1131
    %v1510 = vunpack.c.l.b16 %v1132
    %v1511 = vunpack.c.h.b16 %v1132
    %v1512 = vunpack.c.l.b16 %v1133
    %v1513 = vunpack.c.h.b16 %v1133
    %v1514 = vunpack.c.l.b16 %v1134
    %v1515 = vunpack.c.h.b16 %v1134
    %v1516 = vunpack.c.l.b16 %v1135
    %v1517 = vunpack.c.h.b16 %v1135
    %v1518 = vunpack.c.l.b16 %v1136
    %v1519 = vunpack.c.h.b16 %v1136
    %v1520 = vunpack.c.l.b16 %v1137
    %v1521 = vunpack.c.h.b16 %v1137
    %v1522 = vunpack.c.l.b16 %v1138
    %v1523 = vunpack.c.h.b16 %v1138
    %v1524 = vunpack.c.l.b16 %v1139
    %v1525 = vunpack.c.h.b16 %v1139
    %v1526 = vunpack.c.l.b16 %v1140
    %v1527 = vunpack.c.h.b16 %v1140
    %v1528 = vunpack.c.l.b16 %v1141
    %v1529 = vunpack.c.h.b16 %v1141
    %v1530 = vunpack.c.l.b16 %v1142
    %v1531 = vunpack.c.h.b16 %v1142
    %v1532 = vunpack.c.l.b16 %v1143
    %v1533 = vunpack.c.h.b16 %v1143
    %v1534 = vunpack.c.l.b16 %v1144
    %v1535 = vunpack.c.h.b16 %v1144
    %v1536 = vunpack.c.l.b16 %v1145
    %v1537 = vunpack.c.h.b16 %v1145
    %v1538 = vunpack.c.l.b16 %v1146
    %v1539 = vunpack.c.h.b16 %v1146
    %v1540 = vunpack.c.l.b16 %v1147
    %v1541 = vunpack.c.h.b16 %v1147
    %v1542 = vunpack.c.l.b16 %v1148
    %v1543 = vunpack.c.h.b16 %v1148
    %v1544 = vunpack.c.l.b16 %v1149
    %v1545 = vunpack.c.h.b16 %v1149
    %v1546 = vunpack.c.l.b16 %v1150
    %v1547 = vunpack.c.h.b16 %v1150
    %v1548 = vunpack.c.l.b16 %v1151
    %v1549 = vunpack.c.h.b16 %v1151
    %v1550 = vunpack.c.l.b16 %v1152
    %v1551 = vunpack.c.h.b16 %v1152
    %v1552 = vunpack.c.l.b16 %v1153
    %v1553 = vunpack.c.h.b16 %v1153
    %v1554 = vunpack.c.l.b16 %v1154
    %v1555 = vunpack.c.h.b16 %v1154
    %v1556 = vunpack.c.l.b16 %v1155
    %v1557 = vunpack.c.h.b16 %v1155
    %v1558 = vunpack.c.l.b16 %v1156
    %v1559 = vunpack.c.h.b16 %v1156
    %v1560 = vunpack.c.l.b16 %v1157
    %v1561 = vunpack.c.h.b16 %v1157
    %v1562 = vunpack.c.l.b16 %v1158
    %v1563 = vunpack.c.h.b16 %v1158
    %v1564 = vunpack.c.l.b16 %v1159
    %v1565 = vunpack.c.h.b16 %v1159
    %v1566 = vunpack.c.l.b16 %v1160
    %v1567 = vunpack.c.h.b16 %v1160
    %v1568 = vunpack.c.l.b16 %v1161
    %v1569 = vunpack.c.h.b16 %v1161
    %v1570 = vunpack.c.l.b16 %v1162
    %v1571 = vunpack.c.h.b16 %v1162
    %v1572 = vpack.c.b16 %v1324, %v1316
    %v1573 = vpack.c.b16 %v1325, %v1317
    %v1574 = vpack.c.b16 %v1326, %v1318
    %v1575 = vpack.c.b16 %v1327, %v1319
    %v1576 = vpack.c.b16 %v1328, %v1320
    %v1577 = vpack.c.b16 %v1329, %v1321
    %v1578 = vpack.c.b16 %v1330, %v1322
    %v1579 = vpack.c.b16 %v1331, %v1323
    %v1580 = vpack.c.b16 %v1340, %v1332
    %v1581 = vpack.c.b16 %v1341, %v1333
    %v1582 = vpack.c.b16 %v1342, %v1334
    %v1583 = vpack.c.b16 %v1343, %v1335
    %v1584 = vpack.c.b16 %v1344, %v1336
    %v1585 = vpack.c.b16 %v1345, %v1337
    %v1586 = vpack.c.b16 %v1346, %v1338
    %v1587 = vpack.c.b16 %v1347, %v1339
    %v1588 = vpack.c.b16 %v1356, %v1348
    %v1589 = vpack.c.b16 %v1357, %v1349
    %v1590 = vpack.c.b16 %v1358, %v1350
    %v1591 = vpack.c.b16 %v1359, %v1351
    %v1592 = vpack.c.b16 %v1360, %v1352
    %v1593 = vpack.c.b16 %v1361, %v1353
    %v1594 = vpack.c.b16 %v1362, %v1354
    %v1595 = vpack.c.b16 %v1363, %v1355
    %v1596 = vpack.c.b16 %v1372, %v1364
    %v1597 = vpack.c.b16 %v1373, %v1365
    %v1598 = vpack.c.b16 %v1374, %v1366
    %v1599 = vpack.c.b16 %v1375, %v1367
    %v1600 = vpack.c.b16 %v1376, %v1368
    %v1601 = vpack.c.b16 %v1377, %v1369
    %v1602 = vpack.c.b16 %v1378, %v1370
    %v1603 = vpack.c.b16 %v1379, %v1371
    %v1604 = vpack.c.b16 %v1388, %v1380
    %v1605 = vpack.c.b16 %v1389, %v1381
    %v1606 = vpack.c.b16 %v1390, %v1382
    %v1607 = vpack.c.b16 %v1391, %v1383
    %v1608 = vpack.c.b16 %v1392, %v1384
    %v1609 = vpack.c.b16 %v1393, %v1385
    %v1610 = vpack.c.b16 %v1394, %v1386
    %v1611 = vpack.c.b16 %v1395, %v1387
    %v1612 = vpack.c.b16 %v1404, %v1396
    %v1613 = vpack.c.b16 %v1405, %v1397
    %v1614 = vpack.c.b16 %v1406, %v1398
    %v1615 = vpack.c.b16 %v1407, %v1399
    %v1616 = vpack.c.b16 %v1408, %v1400
    %v1617 = vpack.c.b16 %v1409, %v1401
    %v1618 = vpack.c.b16 %v1410, %v1402
    %v1619 = vpack.c.b16 %v1411, %v1403
    %v1620 = vpack.c.b16 %v1420, %v1412
    %v1621 = vpack.c.b16 %v1421, %v1413
    %v1622 = vpack.c.b16 %v1422, %v1414
    %v1623 = vpack.c.b16 %v1423, %v1415
    %v1624 = vpack.c.b16 %v1424, %v1416
    %v1625 = vpack.c.b16 %v1425, %v1417
    %v1626 = vpack.c.b16 %v1426, %v1418
    %v1627 = vpack.c.b16 %v1427, %v1419
    %v1628 = vpack.c.b16 %v1436, %v1428
    %v1629 = vpack.c.b16 %v1437, %v1429
    %v1630 = vpack.c.b16 %v1438, %v1430
    %v1631 = vpack.c.b16 %v1439, %v1431
    %v1632 = vpack.c.b16 %v1440, %v1432
    %v1633 = vpack.c.b16 %v1441, %v1433
    %v1634 = vpack.c.b16 %v1442, %v1434
    %v1635 = vpack.c.b16 %v1443, %v1435
    %v1636 = vpack.c.b16 %v1452, %v1444
    %v1637 = vpack.c.b16 %v1453, %v1445
    %v1638 = vpack.c.b16 %v1454, %v1446
    %v1639 = vpack.c.b16 %v1455, %v1447
    %v1640 = vpack.c.b16 %v1456, %v1448
    %v1641 = vpack.c.b16 %v1457, %v1449
    %v1642 = vpack.c.b16 %v1458, %v1450
    %v1643 = vpack.c.b16 %v1459, %v1451
    %v1644 = vpack.c.b16 %v1468, %v1460
    %v1645 = vpack.c.b16 %v1469, %v1461
    %v1646 = vpack.c.b16 %v1470, %v1462
    %v1647 = vpack.c.b16 %v1471, %v1463
    %v1648 = vpack.c.b16 %v1472, %v1464
    %v1649 = vpack.c.b16 %v1473, %v1465
    %v1650 = vpack.c.b16 %v1474, %v1466
    %v1651 = vpack.c.b16 %v1475, %v1467
    %v1652 = vpack.c.b16 %v1484, %v1476
    %v1653 = vpack.c.b16 %v1485, %v1477
    %v1654 = vpack.c.b16 %v1486, %v1478
    %v1655 = vpack.c.b16 %v1487, %v1479
    %v1656 = vpack.c.b16 %v1488, %v1480
    %v1657 = vpack.c.b16 %v1489, %v1481
    %v1658 = vpack.c.b16 %v1490, %v1482
    %v1659 = vpack.c.b16 %v1491, %v1483
    %v1660 = vpack.c.b16 %v1500, %v1492
    %v1661 = vpack.c.b16 %v1501, %v1493
    %v1662 = vpack.c.b16 %v1502, %v1494
    %v1663 = vpack.c.b16 %v1503, %v1495
    %v1664 = vpack.c.b16 %v1504, %v1496
    %v1665 = vpack.c.b16 %v1505, %v1497
    %v1666 = vpack.c.b16 %v1506, %v1498
    %v1667 = vpack.c.b16 %v1507, %v1499
    %v1668 = vpack.c.b16 %v1516, %v1508
    %v1669 = vpack.c.b16 %v1517, %v1509
    %v1670 = vpack.c.b16 %v1518, %v1510
    %v1671 = vpack.c.b16 %v1519, %v1511
    %v1672 = vpack.c.b16 %v1520, %v1512
    %v1673 = vpack.c.b16 %v1521, %v1513
    %v1674 = vpack.c.b16 %v1522, %v1514
    %v1675 = vpack.c.b16 %v1523, %v1515
    %v1676 = vpack.c.b16 %v1532, %v1524
    %v1677 = vpack.c.b16 %v1533, %v1525
    %v1678 = vpack.c.b16 %v1534, %v1526
    %v1679 = vpack.c.b16 %v1535, %v1527
    %v1680 = vpack.c.b16 %v1536, %v1528
    %v1681 = vpack.c.b16 %v1537, %v1529
    %v1682 = vpack.c.b16 %v1538, %v1530
    %v1683 = vpack.c.b16 %v1539, %v1531
    %v1684 = vpack.c.b16 %v1548, %v1540
    %v1685 = vpack.c.b16 %v1549, %v1541
    %v1686 = vpack.c.b16 %v1550, %v1542
    %v1687 = vpack.c.b16 %v1551, %v1543
    %v1688 = vpack.c.b16 %v1552, %v1544
    %v1689 = vpack.c.b16 %v1553, %v1545
    %v1690 = vpack.c.b16 %v1554, %v1546
    %v1691 = vpack.c.b16 %v1555, %v1547
    %v1692 = vpack.c.b16 %v1564, %v1556
    %v1693 = vpack.c.b16 %v1565, %v1557
    %v1694 = vpack.c.b16 %v1566, %v1558
    %v1695 = vpack.c.b16 %v1567, %v1559
    %v1696 = vpack.c.b16 %v1568, %v1560
    %v1697 = vpack.c.b16 %v1569, %v1561
    %v1698 = vpack.c.b16 %v1570, %v1562
    %v1699 = vpack.c.b16 %v1571, %v1563
    %1828 = vmatprep.subr.bf16.mxu0 %v1629
    %1829 = vmatpush1.bf16.msra.mxu0 %v1628
    %1830 = vmatprep.subr.bf16.mxu0 %v1621
    %1831 = vmatpush1.bf16.msra.mxu0 %v1620
    %1832 = vmatprep.subr.bf16.mxu0 %v1613
    %1833 = vmatpush1.bf16.msra.mxu0 %v1612
    %1834 = vmatprep.subr.bf16.mxu0 %v1605
    %1835 = vmatpush1.bf16.msra.mxu0 %v1604
    %1836 = vmatprep.subr.bf16.mxu0 %v1597
    %1837 = vmatpush1.bf16.msra.mxu0 %v1596
    %1838 = vmatprep.subr.bf16.mxu0 %v1589
    %1839 = vmatpush1.bf16.msra.mxu0 %v1588
    %1840 = vmatprep.subr.bf16.mxu0 %v1581
    %1841 = vmatpush1.bf16.msra.mxu0 %v1580
    %1842 = vmatprep.subr.bf16.mxu0 %v1573
    %1843 = vmatpush1.bf16.msra.mxu0 %v1572
    %1844 = vmatprep.subr.bf16.mxu0 %v1693
    %1845 = vmatpush2.bf16.msra.mxu0 %v1692
    %1846 = vmatprep.subr.bf16.mxu0 %v1685
    %1847 = vmatpush2.bf16.msra.mxu0 %v1684
    %1848 = vmatprep.subr.bf16.mxu0 %v1677
    %1849 = vmatpush2.bf16.msra.mxu0 %v1676
    %1850 = vmatprep.subr.bf16.mxu0 %v1669
    %1851 = vmatpush2.bf16.msra.mxu0 %v1668
    %1852 = vmatprep.subr.bf16.mxu0 %v1661
    %1853 = vmatpush2.bf16.msra.mxu0 %v1660
    %1854 = vmatprep.subr.bf16.mxu0 %v1653
    %1855 = vmatpush2.bf16.msra.mxu0 %v1652
    %1856 = vmatprep.subr.bf16.mxu0 %v1645
    %1857 = vmatpush2.bf16.msra.mxu0 %v1644
    %1858 = vmatprep.subr.bf16.mxu0 %v1637
    %1859 = vmatpush2.bf16.msra.mxu0 %v1636
    %1860 = vmatprep.mubr.bf16.mxu0 %v1185
    %1861 = vmatmul.mubr.bf16.gmra.mxu0 %v1178
    %v1862 = vpop.f32.mrf.mxu0
    %v1863 = vadd.f32 0.0, %v1862
    %v1864 = vpop.f32.mrf.mxu0
    %v1865 = vadd.f32 0.0, %v1864
    %v1866 = vpop.f32.mrf.mxu0
    %v1867 = vpop.f32.mrf.mxu0
    %1868 = vdwg.mxu0
    %1869 = vmatprep.subr.bf16.mxu0 %v1631
    %1870 = vmatpush1.bf16.msra.mxu0 %v1630
    %1871 = vmatprep.subr.bf16.mxu0 %v1623
    %1872 = vmatpush1.bf16.msra.mxu0 %v1622
    %1873 = vmatprep.subr.bf16.mxu0 %v1615
    %1874 = vmatpush1.bf16.msra.mxu0 %v1614
    %1875 = vmatprep.subr.bf16.mxu0 %v1607
    %1876 = vmatpush1.bf16.msra.mxu0 %v1606
    %1877 = vmatprep.subr.bf16.mxu0 %v1599
    %1878 = vmatpush1.bf16.msra.mxu0 %v1598
    %1879 = vmatprep.subr.bf16.mxu0 %v1591
    %1880 = vmatpush1.bf16.msra.mxu0 %v1590
    %1881 = vmatprep.subr.bf16.mxu0 %v1583
    %1882 = vmatpush1.bf16.msra.mxu0 %v1582
    %1883 = vmatprep.subr.bf16.mxu0 %v1575
    %1884 = vmatpush1.bf16.msra.mxu0 %v1574
    %1885 = vmatprep.subr.bf16.mxu0 %v1695
    %1886 = vmatpush2.bf16.msra.mxu0 %v1694
    %1887 = vmatprep.subr.bf16.mxu0 %v1687
    %1888 = vmatpush2.bf16.msra.mxu0 %v1686
    %1889 = vmatprep.subr.bf16.mxu0 %v1679
    %1890 = vmatpush2.bf16.msra.mxu0 %v1678
    %1891 = vmatprep.subr.bf16.mxu0 %v1671
    %1892 = vmatpush2.bf16.msra.mxu0 %v1670
    %1893 = vmatprep.subr.bf16.mxu0 %v1663
    %1894 = vmatpush2.bf16.msra.mxu0 %v1662
    %1895 = vmatprep.subr.bf16.mxu0 %v1655
    %1896 = vmatpush2.bf16.msra.mxu0 %v1654
    %1897 = vmatprep.subr.bf16.mxu0 %v1647
    %1898 = vmatpush2.bf16.msra.mxu0 %v1646
    %1899 = vmatprep.subr.bf16.mxu0 %v1639
    %1900 = vmatpush2.bf16.msra.mxu0 %v1638
    %1901 = vmatprep.mubr.bf16.mxu0 %v1185
    %1902 = vmatmul.mubr.bf16.gmra.mxu0 %v1178
    %v1903 = vpop.f32.mrf.mxu0
    %v1904 = vadd.f32 0.0, %v1903
    %v1905 = vpop.f32.mrf.mxu0
    %v1906 = vadd.f32 0.0, %v1905
    %v1907 = vpop.f32.mrf.mxu0
    %v1908 = vpop.f32.mrf.mxu0
    %1909 = vdwg.mxu0
    %1910 = vmatprep.subr.bf16.mxu0 %v1633
    %1911 = vmatpush1.bf16.msra.mxu0 %v1632
    %1912 = vmatprep.subr.bf16.mxu0 %v1625
    %1913 = vmatpush1.bf16.msra.mxu0 %v1624
    %1914 = vmatprep.subr.bf16.mxu0 %v1617
    %1915 = vmatpush1.bf16.msra.mxu0 %v1616
    %1916 = vmatprep.subr.bf16.mxu0 %v1609
    %1917 = vmatpush1.bf16.msra.mxu0 %v1608
    %1918 = vmatprep.subr.bf16.mxu0 %v1601
    %1919 = vmatpush1.bf16.msra.mxu0 %v1600
    %1920 = vmatprep.subr.bf16.mxu0 %v1593
    %1921 = vmatpush1.bf16.msra.mxu0 %v1592
    %1922 = vmatprep.subr.bf16.mxu0 %v1585
    %1923 = vmatpush1.bf16.msra.mxu0 %v1584
    %1924 = vmatprep.subr.bf16.mxu0 %v1577
    %1925 = vmatpush1.bf16.msra.mxu0 %v1576
    %1926 = vmatprep.subr.bf16.mxu0 %v1697
    %1927 = vmatpush2.bf16.msra.mxu0 %v1696
    %1928 = vmatprep.subr.bf16.mxu0 %v1689
    %1929 = vmatpush2.bf16.msra.mxu0 %v1688
    %1930 = vmatprep.subr.bf16.mxu0 %v1681
    %1931 = vmatpush2.bf16.msra.mxu0 %v1680
    %1932 = vmatprep.subr.bf16.mxu0 %v1673
    %1933 = vmatpush2.bf16.msra.mxu0 %v1672
    %1934 = vmatprep.subr.bf16.mxu0 %v1665
    %1935 = vmatpush2.bf16.msra.mxu0 %v1664
    %1936 = vmatprep.subr.bf16.mxu0 %v1657
    %1937 = vmatpush2.bf16.msra.mxu0 %v1656
    %1938 = vmatprep.subr.bf16.mxu0 %v1649
    %1939 = vmatpush2.bf16.msra.mxu0 %v1648
    %1940 = vmatprep.subr.bf16.mxu0 %v1641
    %1941 = vmatpush2.bf16.msra.mxu0 %v1640
    %1942 = vmatprep.mubr.bf16.mxu0 %v1185
    %1943 = vmatmul.mubr.bf16.gmra.mxu0 %v1178
    %v1944 = vpop.f32.mrf.mxu0
    %v1945 = vadd.f32 0.0, %v1944
    %v1946 = vpop.f32.mrf.mxu0
    %v1947 = vadd.f32 0.0, %v1946
    %v1948 = vpop.f32.mrf.mxu0
    %v1949 = vpop.f32.mrf.mxu0
    %1950 = vdwg.mxu0
    %1951 = vmatprep.subr.bf16.mxu0 %v1635
    %1952 = vmatpush1.bf16.msra.mxu0 %v1634
    %1953 = vmatprep.subr.bf16.mxu0 %v1627
    %1954 = vmatpush1.bf16.msra.mxu0 %v1626
    %1955 = vmatprep.subr.bf16.mxu0 %v1619
    %1956 = vmatpush1.bf16.msra.mxu0 %v1618
    %1957 = vmatprep.subr.bf16.mxu0 %v1611
    %1958 = vmatpush1.bf16.msra.mxu0 %v1610
    %1959 = vmatprep.subr.bf16.mxu0 %v1603
    %1960 = vmatpush1.bf16.msra.mxu0 %v1602
    %1961 = vmatprep.subr.bf16.mxu0 %v1595
    %1962 = vmatpush1.bf16.msra.mxu0 %v1594
    %1963 = vmatprep.subr.bf16.mxu0 %v1587
    %1964 = vmatpush1.bf16.msra.mxu0 %v1586
    %1965 = vmatprep.subr.bf16.mxu0 %v1579
    %1966 = vmatpush1.bf16.msra.mxu0 %v1578
    %1967 = vmatprep.subr.bf16.mxu0 %v1699
    %1968 = vmatpush2.bf16.msra.mxu0 %v1698
    %1969 = vmatprep.subr.bf16.mxu0 %v1691
    %1970 = vmatpush2.bf16.msra.mxu0 %v1690
    %1971 = vmatprep.subr.bf16.mxu0 %v1683
    %1972 = vmatpush2.bf16.msra.mxu0 %v1682
    %1973 = vmatprep.subr.bf16.mxu0 %v1675
    %1974 = vmatpush2.bf16.msra.mxu0 %v1674
    %1975 = vmatprep.subr.bf16.mxu0 %v1667
    %1976 = vmatpush2.bf16.msra.mxu0 %v1666
    %1977 = vmatprep.subr.bf16.mxu0 %v1659
    %1978 = vmatpush2.bf16.msra.mxu0 %v1658
    %1979 = vmatprep.subr.bf16.mxu0 %v1651
    %1980 = vmatpush2.bf16.msra.mxu0 %v1650
    %1981 = vmatprep.subr.bf16.mxu0 %v1643
    %1982 = vmatpush2.bf16.msra.mxu0 %v1642
    %1983 = vmatprep.mubr.bf16.mxu0 %v1185
    %1984 = vmatmul.mubr.bf16.gmra.mxu0 %v1178
    %v1985 = vpop.f32.mrf.mxu0
    %v1986 = vadd.f32 0.0, %v1985
    %v1987 = vpop.f32.mrf.mxu0
    %v1988 = vadd.f32 0.0, %v1987
    %v1989 = vpop.f32.mrf.mxu0
    %v1990 = vpop.f32.mrf.mxu0
    %1991 = vdwg.mxu0
    %s1992 = scalar_lea.vmem %s0, 4
    %v1993 = vld [vmem:[%s1992] sm:$0x3]
    %s1994 = scalar_lea.vmem [#allocation2], 2048
    %v1995 = vld [vmem:[%s1994] sm:$0xff]
    %v1996 = vld [vmem:[%s1994 + $0x8] sm:$0xff]
    %v1997 = vld [vmem:[%s1994 + $0x10] sm:$0xff]
    %v1998 = vld [vmem:[%s1994 + $0x18] sm:$0xff]
    %v1999 = vld [vmem:[%s1994 + $0x20] sm:$0xff]
    %v2000 = vld [vmem:[%s1994 + $0x28] sm:$0xff]
    %v2001 = vld [vmem:[%s1994 + $0x30] sm:$0xff]
    %v2002 = vld [vmem:[%s1994 + $0x38] sm:$0xff]
    %v2003 = vld [vmem:[%s1994 + $0x40] sm:$0xff]
    %v2004 = vld [vmem:[%s1994 + $0x48] sm:$0xff]
    %v2005 = vld [vmem:[%s1994 + $0x50] sm:$0xff]
    %v2006 = vld [vmem:[%s1994 + $0x58] sm:$0xff]
    %v2007 = vld [vmem:[%s1994 + $0x60] sm:$0xff]
    %v2008 = vld [vmem:[%s1994 + $0x68] sm:$0xff]
    %v2009 = vld [vmem:[%s1994 + $0x70] sm:$0xff]
    %v2010 = vld [vmem:[%s1994 + $0x78] sm:$0xff]
    %v2011 = vld [vmem:[%s1994 + $0x80] sm:$0xff]
    %v2012 = vld [vmem:[%s1994 + $0x88] sm:$0xff]
    %v2013 = vld [vmem:[%s1994 + $0x90] sm:$0xff]
    %v2014 = vld [vmem:[%s1994 + $0x98] sm:$0xff]
    %v2015 = vld [vmem:[%s1994 + $0xa0] sm:$0xff]
    %v2016 = vld [vmem:[%s1994 + $0xa8] sm:$0xff]
    %v2017 = vld [vmem:[%s1994 + $0xb0] sm:$0xff]
    %v2018 = vld [vmem:[%s1994 + $0xb8] sm:$0xff]
    %v2019 = vld [vmem:[%s1994 + $0xc0] sm:$0xff]
    %v2020 = vld [vmem:[%s1994 + $0xc8] sm:$0xff]
    %v2021 = vld [vmem:[%s1994 + $0xd0] sm:$0xff]
    %v2022 = vld [vmem:[%s1994 + $0xd8] sm:$0xff]
    %v2023 = vld [vmem:[%s1994 + $0xe0] sm:$0xff]
    %v2024 = vld [vmem:[%s1994 + $0xe8] sm:$0xff]
    %v2025 = vld [vmem:[%s1994 + $0xf0] sm:$0xff]
    %v2026 = vld [vmem:[%s1994 + $0xf8] sm:$0xff]
    %v2027 = vld [vmem:[%s1994 + $0x100] sm:$0xff]
    %v2028 = vld [vmem:[%s1994 + $0x108] sm:$0xff]
    %v2029 = vld [vmem:[%s1994 + $0x110] sm:$0xff]
    %v2030 = vld [vmem:[%s1994 + $0x118] sm:$0xff]
    %v2031 = vld [vmem:[%s1994 + $0x120] sm:$0xff]
    %v2032 = vld [vmem:[%s1994 + $0x128] sm:$0xff]
    %v2033 = vld [vmem:[%s1994 + $0x130] sm:$0xff]
    %v2034 = vld [vmem:[%s1994 + $0x138] sm:$0xff]
    %v2035 = vld [vmem:[%s1994 + $0x140] sm:$0xff]
    %v2036 = vld [vmem:[%s1994 + $0x148] sm:$0xff]
    %v2037 = vld [vmem:[%s1994 + $0x150] sm:$0xff]
    %v2038 = vld [vmem:[%s1994 + $0x158] sm:$0xff]
    %v2039 = vld [vmem:[%s1994 + $0x160] sm:$0xff]
    %v2040 = vld [vmem:[%s1994 + $0x168] sm:$0xff]
    %v2041 = vld [vmem:[%s1994 + $0x170] sm:$0xff]
    %v2042 = vld [vmem:[%s1994 + $0x178] sm:$0xff]
    %v2043 = vld [vmem:[%s1994 + $0x180] sm:$0xff]
    %v2044 = vld [vmem:[%s1994 + $0x188] sm:$0xff]
    %v2045 = vld [vmem:[%s1994 + $0x190] sm:$0xff]
    %v2046 = vld [vmem:[%s1994 + $0x198] sm:$0xff]
    %v2047 = vld [vmem:[%s1994 + $0x1a0] sm:$0xff]
    %v2048 = vld [vmem:[%s1994 + $0x1a8] sm:$0xff]
    %v2049 = vld [vmem:[%s1994 + $0x1b0] sm:$0xff]
    %v2050 = vld [vmem:[%s1994 + $0x1b8] sm:$0xff]
    %v2051 = vld [vmem:[%s1994 + $0x1c0] sm:$0xff]
    %v2052 = vld [vmem:[%s1994 + $0x1c8] sm:$0xff]
    %v2053 = vld [vmem:[%s1994 + $0x1d0] sm:$0xff]
    %v2054 = vld [vmem:[%s1994 + $0x1d8] sm:$0xff]
    %v2055 = vld [vmem:[%s1994 + $0x1e0] sm:$0xff]
    %v2056 = vld [vmem:[%s1994 + $0x1e8] sm:$0xff]
    %v2057 = vld [vmem:[%s1994 + $0x1f0] sm:$0xff]
    %v2058 = vld [vmem:[%s1994 + $0x1f8] sm:$0xff]
    %v2059 = vld [vmem:[%s1994 + $0x200] sm:$0xff]
    %v2060 = vld [vmem:[%s1994 + $0x208] sm:$0xff]
    %v2061 = vld [vmem:[%s1994 + $0x210] sm:$0xff]
    %v2062 = vld [vmem:[%s1994 + $0x218] sm:$0xff]
    %v2063 = vld [vmem:[%s1994 + $0x220] sm:$0xff]
    %v2064 = vld [vmem:[%s1994 + $0x228] sm:$0xff]
    %v2065 = vld [vmem:[%s1994 + $0x230] sm:$0xff]
    %v2066 = vld [vmem:[%s1994 + $0x238] sm:$0xff]
    %v2067 = vld [vmem:[%s1994 + $0x240] sm:$0xff]
    %v2068 = vld [vmem:[%s1994 + $0x248] sm:$0xff]
    %v2069 = vld [vmem:[%s1994 + $0x250] sm:$0xff]
    %v2070 = vld [vmem:[%s1994 + $0x258] sm:$0xff]
    %v2071 = vld [vmem:[%s1994 + $0x260] sm:$0xff]
    %v2072 = vld [vmem:[%s1994 + $0x268] sm:$0xff]
    %v2073 = vld [vmem:[%s1994 + $0x270] sm:$0xff]
    %v2074 = vld [vmem:[%s1994 + $0x278] sm:$0xff]
    %v2075 = vld [vmem:[%s1994 + $0x280] sm:$0xff]
    %v2076 = vld [vmem:[%s1994 + $0x288] sm:$0xff]
    %v2077 = vld [vmem:[%s1994 + $0x290] sm:$0xff]
    %v2078 = vld [vmem:[%s1994 + $0x298] sm:$0xff]
    %v2079 = vld [vmem:[%s1994 + $0x2a0] sm:$0xff]
    %v2080 = vld [vmem:[%s1994 + $0x2a8] sm:$0xff]
    %v2081 = vld [vmem:[%s1994 + $0x2b0] sm:$0xff]
    %v2082 = vld [vmem:[%s1994 + $0x2b8] sm:$0xff]
    %v2083 = vld [vmem:[%s1994 + $0x2c0] sm:$0xff]
    %v2084 = vld [vmem:[%s1994 + $0x2c8] sm:$0xff]
    %v2085 = vld [vmem:[%s1994 + $0x2d0] sm:$0xff]
    %v2086 = vld [vmem:[%s1994 + $0x2d8] sm:$0xff]
    %v2087 = vld [vmem:[%s1994 + $0x2e0] sm:$0xff]
    %v2088 = vld [vmem:[%s1994 + $0x2e8] sm:$0xff]
    %v2089 = vld [vmem:[%s1994 + $0x2f0] sm:$0xff]
    %v2090 = vld [vmem:[%s1994 + $0x2f8] sm:$0xff]
    %v2091 = vld [vmem:[%s1994 + $0x300] sm:$0xff]
    %v2092 = vld [vmem:[%s1994 + $0x308] sm:$0xff]
    %v2093 = vld [vmem:[%s1994 + $0x310] sm:$0xff]
    %v2094 = vld [vmem:[%s1994 + $0x318] sm:$0xff]
    %v2095 = vld [vmem:[%s1994 + $0x320] sm:$0xff]
    %v2096 = vld [vmem:[%s1994 + $0x328] sm:$0xff]
    %v2097 = vld [vmem:[%s1994 + $0x330] sm:$0xff]
    %v2098 = vld [vmem:[%s1994 + $0x338] sm:$0xff]
    %v2099 = vld [vmem:[%s1994 + $0x340] sm:$0xff]
    %v2100 = vld [vmem:[%s1994 + $0x348] sm:$0xff]
    %v2101 = vld [vmem:[%s1994 + $0x350] sm:$0xff]
    %v2102 = vld [vmem:[%s1994 + $0x358] sm:$0xff]
    %v2103 = vld [vmem:[%s1994 + $0x360] sm:$0xff]
    %v2104 = vld [vmem:[%s1994 + $0x368] sm:$0xff]
    %v2105 = vld [vmem:[%s1994 + $0x370] sm:$0xff]
    %v2106 = vld [vmem:[%s1994 + $0x378] sm:$0xff]
    %v2107 = vld [vmem:[%s1994 + $0x380] sm:$0xff]
    %v2108 = vld [vmem:[%s1994 + $0x388] sm:$0xff]
    %v2109 = vld [vmem:[%s1994 + $0x390] sm:$0xff]
    %v2110 = vld [vmem:[%s1994 + $0x398] sm:$0xff]
    %v2111 = vld [vmem:[%s1994 + $0x3a0] sm:$0xff]
    %v2112 = vld [vmem:[%s1994 + $0x3a8] sm:$0xff]
    %v2113 = vld [vmem:[%s1994 + $0x3b0] sm:$0xff]
    %v2114 = vld [vmem:[%s1994 + $0x3b8] sm:$0xff]
    %v2115 = vld [vmem:[%s1994 + $0x3c0] sm:$0xff]
    %v2116 = vld [vmem:[%s1994 + $0x3c8] sm:$0xff]
    %v2117 = vld [vmem:[%s1994 + $0x3d0] sm:$0xff]
    %v2118 = vld [vmem:[%s1994 + $0x3d8] sm:$0xff]
    %v2119 = vld [vmem:[%s1994 + $0x3e0] sm:$0xff]
    %v2120 = vld [vmem:[%s1994 + $0x3e8] sm:$0xff]
    %v2121 = vld [vmem:[%s1994 + $0x3f0] sm:$0xff]
    %v2122 = vld [vmem:[%s1994 + $0x3f8] sm:$0xff]
    %v2125 = vunpack.c.l.s4 1966171168
    %v2126 = vunpack.c.0.s8 %v2125
    %v2127 = vlaneseq
    %v2128 = vshrl.u32 %v2127, 7
    %v2129 = vsub.s32 %v2126, %v2128
    %v2130 = vrot.slane %v1993, %v2129
    %v2131 = vcombine.high %v2130, %v2130
    %v2133 = vunpack.c.l.s4 1966171168
    %v2134 = vunpack.c.0.s8 %v2133
    %v2135 = vlaneseq
    %v2136 = vshrl.u32 %v2135, 7
    %v2137 = vsub.s32 %v2134, %v2136
    %v2138 = vrot.slane %v2130, %v2137
    %v2140 = vunpack.c.l.s4 1966171168
    %v2141 = vunpack.c.0.s8 %v2140
    %v2142 = vlaneseq
    %v2143 = vshrl.u32 %v2142, 7
    %v2144 = vsub.s32 %v2141, %v2143
    %v2145 = vrot.slane %v2131, %v2144
    %v2276 = vunpack.c.l.b16 %v1995
    %v2277 = vunpack.c.h.b16 %v1995
    %v2278 = vunpack.c.l.b16 %v1996
    %v2279 = vunpack.c.h.b16 %v1996
    %v2280 = vunpack.c.l.b16 %v1997
    %v2281 = vunpack.c.h.b16 %v1997
    %v2282 = vunpack.c.l.b16 %v1998
    %v2283 = vunpack.c.h.b16 %v1998
    %v2284 = vunpack.c.l.b16 %v1999
    %v2285 = vunpack.c.h.b16 %v1999
    %v2286 = vunpack.c.l.b16 %v2000
    %v2287 = vunpack.c.h.b16 %v2000
    %v2288 = vunpack.c.l.b16 %v2001
    %v2289 = vunpack.c.h.b16 %v2001
    %v2290 = vunpack.c.l.b16 %v2002
    %v2291 = vunpack.c.h.b16 %v2002
    %v2292 = vunpack.c.l.b16 %v2003
    %v2293 = vunpack.c.h.b16 %v2003
    %v2294 = vunpack.c.l.b16 %v2004
    %v2295 = vunpack.c.h.b16 %v2004
    %v2296 = vunpack.c.l.b16 %v2005
    %v2297 = vunpack.c.h.b16 %v2005
    %v2298 = vunpack.c.l.b16 %v2006
    %v2299 = vunpack.c.h.b16 %v2006
    %v2300 = vunpack.c.l.b16 %v2007
    %v2301 = vunpack.c.h.b16 %v2007
    %v2302 = vunpack.c.l.b16 %v2008
    %v2303 = vunpack.c.h.b16 %v2008
    %v2304 = vunpack.c.l.b16 %v2009
    %v2305 = vunpack.c.h.b16 %v2009
    %v2306 = vunpack.c.l.b16 %v2010
    %v2307 = vunpack.c.h.b16 %v2010
    %v2308 = vunpack.c.l.b16 %v2011
    %v2309 = vunpack.c.h.b16 %v2011
    %v2310 = vunpack.c.l.b16 %v2012
    %v2311 = vunpack.c.h.b16 %v2012
    %v2312 = vunpack.c.l.b16 %v2013
    %v2313 = vunpack.c.h.b16 %v2013
    %v2314 = vunpack.c.l.b16 %v2014
    %v2315 = vunpack.c.h.b16 %v2014
    %v2316 = vunpack.c.l.b16 %v2015
    %v2317 = vunpack.c.h.b16 %v2015
    %v2318 = vunpack.c.l.b16 %v2016
    %v2319 = vunpack.c.h.b16 %v2016
    %v2320 = vunpack.c.l.b16 %v2017
    %v2321 = vunpack.c.h.b16 %v2017
    %v2322 = vunpack.c.l.b16 %v2018
    %v2323 = vunpack.c.h.b16 %v2018
    %v2324 = vunpack.c.l.b16 %v2019
    %v2325 = vunpack.c.h.b16 %v2019
    %v2326 = vunpack.c.l.b16 %v2020
    %v2327 = vunpack.c.h.b16 %v2020
    %v2328 = vunpack.c.l.b16 %v2021
    %v2329 = vunpack.c.h.b16 %v2021
    %v2330 = vunpack.c.l.b16 %v2022
    %v2331 = vunpack.c.h.b16 %v2022
    %v2332 = vunpack.c.l.b16 %v2023
    %v2333 = vunpack.c.h.b16 %v2023
    %v2334 = vunpack.c.l.b16 %v2024
    %v2335 = vunpack.c.h.b16 %v2024
    %v2336 = vunpack.c.l.b16 %v2025
    %v2337 = vunpack.c.h.b16 %v2025
    %v2338 = vunpack.c.l.b16 %v2026
    %v2339 = vunpack.c.h.b16 %v2026
    %v2340 = vunpack.c.l.b16 %v2027
    %v2341 = vunpack.c.h.b16 %v2027
    %v2342 = vunpack.c.l.b16 %v2028
    %v2343 = vunpack.c.h.b16 %v2028
    %v2344 = vunpack.c.l.b16 %v2029
    %v2345 = vunpack.c.h.b16 %v2029
    %v2346 = vunpack.c.l.b16 %v2030
    %v2347 = vunpack.c.h.b16 %v2030
    %v2348 = vunpack.c.l.b16 %v2031
    %v2349 = vunpack.c.h.b16 %v2031
    %v2350 = vunpack.c.l.b16 %v2032
    %v2351 = vunpack.c.h.b16 %v2032
    %v2352 = vunpack.c.l.b16 %v2033
    %v2353 = vunpack.c.h.b16 %v2033
    %v2354 = vunpack.c.l.b16 %v2034
    %v2355 = vunpack.c.h.b16 %v2034
    %v2356 = vunpack.c.l.b16 %v2035
    %v2357 = vunpack.c.h.b16 %v2035
    %v2358 = vunpack.c.l.b16 %v2036
    %v2359 = vunpack.c.h.b16 %v2036
    %v2360 = vunpack.c.l.b16 %v2037
    %v2361 = vunpack.c.h.b16 %v2037
    %v2362 = vunpack.c.l.b16 %v2038
    %v2363 = vunpack.c.h.b16 %v2038
    %v2364 = vunpack.c.l.b16 %v2039
    %v2365 = vunpack.c.h.b16 %v2039
    %v2366 = vunpack.c.l.b16 %v2040
    %v2367 = vunpack.c.h.b16 %v2040
    %v2368 = vunpack.c.l.b16 %v2041
    %v2369 = vunpack.c.h.b16 %v2041
    %v2370 = vunpack.c.l.b16 %v2042
    %v2371 = vunpack.c.h.b16 %v2042
    %v2372 = vunpack.c.l.b16 %v2043
    %v2373 = vunpack.c.h.b16 %v2043
    %v2374 = vunpack.c.l.b16 %v2044
    %v2375 = vunpack.c.h.b16 %v2044
    %v2376 = vunpack.c.l.b16 %v2045
    %v2377 = vunpack.c.h.b16 %v2045
    %v2378 = vunpack.c.l.b16 %v2046
    %v2379 = vunpack.c.h.b16 %v2046
    %v2380 = vunpack.c.l.b16 %v2047
    %v2381 = vunpack.c.h.b16 %v2047
    %v2382 = vunpack.c.l.b16 %v2048
    %v2383 = vunpack.c.h.b16 %v2048
    %v2384 = vunpack.c.l.b16 %v2049
    %v2385 = vunpack.c.h.b16 %v2049
    %v2386 = vunpack.c.l.b16 %v2050
    %v2387 = vunpack.c.h.b16 %v2050
    %v2388 = vunpack.c.l.b16 %v2051
    %v2389 = vunpack.c.h.b16 %v2051
    %v2390 = vunpack.c.l.b16 %v2052
    %v2391 = vunpack.c.h.b16 %v2052
    %v2392 = vunpack.c.l.b16 %v2053
    %v2393 = vunpack.c.h.b16 %v2053
    %v2394 = vunpack.c.l.b16 %v2054
    %v2395 = vunpack.c.h.b16 %v2054
    %v2396 = vunpack.c.l.b16 %v2055
    %v2397 = vunpack.c.h.b16 %v2055
    %v2398 = vunpack.c.l.b16 %v2056
    %v2399 = vunpack.c.h.b16 %v2056
    %v2400 = vunpack.c.l.b16 %v2057
    %v2401 = vunpack.c.h.b16 %v2057
    %v2402 = vunpack.c.l.b16 %v2058
    %v2403 = vunpack.c.h.b16 %v2058
    %v2404 = vunpack.c.l.b16 %v2059
    %v2405 = vunpack.c.h.b16 %v2059
    %v2406 = vunpack.c.l.b16 %v2060
    %v2407 = vunpack.c.h.b16 %v2060
    %v2408 = vunpack.c.l.b16 %v2061
    %v2409 = vunpack.c.h.b16 %v2061
    %v2410 = vunpack.c.l.b16 %v2062
    %v2411 = vunpack.c.h.b16 %v2062
    %v2412 = vunpack.c.l.b16 %v2063
    %v2413 = vunpack.c.h.b16 %v2063
    %v2414 = vunpack.c.l.b16 %v2064
    %v2415 = vunpack.c.h.b16 %v2064
    %v2416 = vunpack.c.l.b16 %v2065
    %v2417 = vunpack.c.h.b16 %v2065
    %v2418 = vunpack.c.l.b16 %v2066
    %v2419 = vunpack.c.h.b16 %v2066
    %v2420 = vunpack.c.l.b16 %v2067
    %v2421 = vunpack.c.h.b16 %v2067
    %v2422 = vunpack.c.l.b16 %v2068
    %v2423 = vunpack.c.h.b16 %v2068
    %v2424 = vunpack.c.l.b16 %v2069
    %v2425 = vunpack.c.h.b16 %v2069
    %v2426 = vunpack.c.l.b16 %v2070
    %v2427 = vunpack.c.h.b16 %v2070
    %v2428 = vunpack.c.l.b16 %v2071
    %v2429 = vunpack.c.h.b16 %v2071
    %v2430 = vunpack.c.l.b16 %v2072
    %v2431 = vunpack.c.h.b16 %v2072
    %v2432 = vunpack.c.l.b16 %v2073
    %v2433 = vunpack.c.h.b16 %v2073
    %v2434 = vunpack.c.l.b16 %v2074
    %v2435 = vunpack.c.h.b16 %v2074
    %v2436 = vunpack.c.l.b16 %v2075
    %v2437 = vunpack.c.h.b16 %v2075
    %v2438 = vunpack.c.l.b16 %v2076
    %v2439 = vunpack.c.h.b16 %v2076
    %v2440 = vunpack.c.l.b16 %v2077
    %v2441 = vunpack.c.h.b16 %v2077
    %v2442 = vunpack.c.l.b16 %v2078
    %v2443 = vunpack.c.h.b16 %v2078
    %v2444 = vunpack.c.l.b16 %v2079
    %v2445 = vunpack.c.h.b16 %v2079
    %v2446 = vunpack.c.l.b16 %v2080
    %v2447 = vunpack.c.h.b16 %v2080
    %v2448 = vunpack.c.l.b16 %v2081
    %v2449 = vunpack.c.h.b16 %v2081
    %v2450 = vunpack.c.l.b16 %v2082
    %v2451 = vunpack.c.h.b16 %v2082
    %v2452 = vunpack.c.l.b16 %v2083
    %v2453 = vunpack.c.h.b16 %v2083
    %v2454 = vunpack.c.l.b16 %v2084
    %v2455 = vunpack.c.h.b16 %v2084
    %v2456 = vunpack.c.l.b16 %v2085
    %v2457 = vunpack.c.h.b16 %v2085
    %v2458 = vunpack.c.l.b16 %v2086
    %v2459 = vunpack.c.h.b16 %v2086
    %v2460 = vunpack.c.l.b16 %v2087
    %v2461 = vunpack.c.h.b16 %v2087
    %v2462 = vunpack.c.l.b16 %v2088
    %v2463 = vunpack.c.h.b16 %v2088
    %v2464 = vunpack.c.l.b16 %v2089
    %v2465 = vunpack.c.h.b16 %v2089
    %v2466 = vunpack.c.l.b16 %v2090
    %v2467 = vunpack.c.h.b16 %v2090
    %v2468 = vunpack.c.l.b16 %v2091
    %v2469 = vunpack.c.h.b16 %v2091
    %v2470 = vunpack.c.l.b16 %v2092
    %v2471 = vunpack.c.h.b16 %v2092
    %v2472 = vunpack.c.l.b16 %v2093
    %v2473 = vunpack.c.h.b16 %v2093
    %v2474 = vunpack.c.l.b16 %v2094
    %v2475 = vunpack.c.h.b16 %v2094
    %v2476 = vunpack.c.l.b16 %v2095
    %v2477 = vunpack.c.h.b16 %v2095
    %v2478 = vunpack.c.l.b16 %v2096
    %v2479 = vunpack.c.h.b16 %v2096
    %v2480 = vunpack.c.l.b16 %v2097
    %v2481 = vunpack.c.h.b16 %v2097
    %v2482 = vunpack.c.l.b16 %v2098
    %v2483 = vunpack.c.h.b16 %v2098
    %v2484 = vunpack.c.l.b16 %v2099
    %v2485 = vunpack.c.h.b16 %v2099
    %v2486 = vunpack.c.l.b16 %v2100
    %v2487 = vunpack.c.h.b16 %v2100
    %v2488 = vunpack.c.l.b16 %v2101
    %v2489 = vunpack.c.h.b16 %v2101
    %v2490 = vunpack.c.l.b16 %v2102
    %v2491 = vunpack.c.h.b16 %v2102
    %v2492 = vunpack.c.l.b16 %v2103
    %v2493 = vunpack.c.h.b16 %v2103
    %v2494 = vunpack.c.l.b16 %v2104
    %v2495 = vunpack.c.h.b16 %v2104
    %v2496 = vunpack.c.l.b16 %v2105
    %v2497 = vunpack.c.h.b16 %v2105
    %v2498 = vunpack.c.l.b16 %v2106
    %v2499 = vunpack.c.h.b16 %v2106
    %v2500 = vunpack.c.l.b16 %v2107
    %v2501 = vunpack.c.h.b16 %v2107
    %v2502 = vunpack.c.l.b16 %v2108
    %v2503 = vunpack.c.h.b16 %v2108
    %v2504 = vunpack.c.l.b16 %v2109
    %v2505 = vunpack.c.h.b16 %v2109
    %v2506 = vunpack.c.l.b16 %v2110
    %v2507 = vunpack.c.h.b16 %v2110
    %v2508 = vunpack.c.l.b16 %v2111
    %v2509 = vunpack.c.h.b16 %v2111
    %v2510 = vunpack.c.l.b16 %v2112
    %v2511 = vunpack.c.h.b16 %v2112
    %v2512 = vunpack.c.l.b16 %v2113
    %v2513 = vunpack.c.h.b16 %v2113
    %v2514 = vunpack.c.l.b16 %v2114
    %v2515 = vunpack.c.h.b16 %v2114
    %v2516 = vunpack.c.l.b16 %v2115
    %v2517 = vunpack.c.h.b16 %v2115
    %v2518 = vunpack.c.l.b16 %v2116
    %v2519 = vunpack.c.h.b16 %v2116
    %v2520 = vunpack.c.l.b16 %v2117
    %v2521 = vunpack.c.h.b16 %v2117
    %v2522 = vunpack.c.l.b16 %v2118
    %v2523 = vunpack.c.h.b16 %v2118
    %v2524 = vunpack.c.l.b16 %v2119
    %v2525 = vunpack.c.h.b16 %v2119
    %v2526 = vunpack.c.l.b16 %v2120
    %v2527 = vunpack.c.h.b16 %v2120
    %v2528 = vunpack.c.l.b16 %v2121
    %v2529 = vunpack.c.h.b16 %v2121
    %v2530 = vunpack.c.l.b16 %v2122
    %v2531 = vunpack.c.h.b16 %v2122
    %v2532 = vpack.c.b16 %v2284, %v2276
    %v2533 = vpack.c.b16 %v2285, %v2277
    %v2534 = vpack.c.b16 %v2286, %v2278
    %v2535 = vpack.c.b16 %v2287, %v2279
    %v2536 = vpack.c.b16 %v2288, %v2280
    %v2537 = vpack.c.b16 %v2289, %v2281
    %v2538 = vpack.c.b16 %v2290, %v2282
    %v2539 = vpack.c.b16 %v2291, %v2283
    %v2540 = vpack.c.b16 %v2300, %v2292
    %v2541 = vpack.c.b16 %v2301, %v2293
    %v2542 = vpack.c.b16 %v2302, %v2294
    %v2543 = vpack.c.b16 %v2303, %v2295
    %v2544 = vpack.c.b16 %v2304, %v2296
    %v2545 = vpack.c.b16 %v2305, %v2297
    %v2546 = vpack.c.b16 %v2306, %v2298
    %v2547 = vpack.c.b16 %v2307, %v2299
    %v2548 = vpack.c.b16 %v2316, %v2308
    %v2549 = vpack.c.b16 %v2317, %v2309
    %v2550 = vpack.c.b16 %v2318, %v2310
    %v2551 = vpack.c.b16 %v2319, %v2311
    %v2552 = vpack.c.b16 %v2320, %v2312
    %v2553 = vpack.c.b16 %v2321, %v2313
    %v2554 = vpack.c.b16 %v2322, %v2314
    %v2555 = vpack.c.b16 %v2323, %v2315
    %v2556 = vpack.c.b16 %v2332, %v2324
    %v2557 = vpack.c.b16 %v2333, %v2325
    %v2558 = vpack.c.b16 %v2334, %v2326
    %v2559 = vpack.c.b16 %v2335, %v2327
    %v2560 = vpack.c.b16 %v2336, %v2328
    %v2561 = vpack.c.b16 %v2337, %v2329
    %v2562 = vpack.c.b16 %v2338, %v2330
    %v2563 = vpack.c.b16 %v2339, %v2331
    %v2564 = vpack.c.b16 %v2348, %v2340
    %v2565 = vpack.c.b16 %v2349, %v2341
    %v2566 = vpack.c.b16 %v2350, %v2342
    %v2567 = vpack.c.b16 %v2351, %v2343
    %v2568 = vpack.c.b16 %v2352, %v2344
    %v2569 = vpack.c.b16 %v2353, %v2345
    %v2570 = vpack.c.b16 %v2354, %v2346
    %v2571 = vpack.c.b16 %v2355, %v2347
    %v2572 = vpack.c.b16 %v2364, %v2356
    %v2573 = vpack.c.b16 %v2365, %v2357
    %v2574 = vpack.c.b16 %v2366, %v2358
    %v2575 = vpack.c.b16 %v2367, %v2359
    %v2576 = vpack.c.b16 %v2368, %v2360
    %v2577 = vpack.c.b16 %v2369, %v2361
    %v2578 = vpack.c.b16 %v2370, %v2362
    %v2579 = vpack.c.b16 %v2371, %v2363
    %v2580 = vpack.c.b16 %v2380, %v2372
    %v2581 = vpack.c.b16 %v2381, %v2373
    %v2582 = vpack.c.b16 %v2382, %v2374
    %v2583 = vpack.c.b16 %v2383, %v2375
    %v2584 = vpack.c.b16 %v2384, %v2376
    %v2585 = vpack.c.b16 %v2385, %v2377
    %v2586 = vpack.c.b16 %v2386, %v2378
    %v2587 = vpack.c.b16 %v2387, %v2379
    %v2588 = vpack.c.b16 %v2396, %v2388
    %v2589 = vpack.c.b16 %v2397, %v2389
    %v2590 = vpack.c.b16 %v2398, %v2390
    %v2591 = vpack.c.b16 %v2399, %v2391
    %v2592 = vpack.c.b16 %v2400, %v2392
    %v2593 = vpack.c.b16 %v2401, %v2393
    %v2594 = vpack.c.b16 %v2402, %v2394
    %v2595 = vpack.c.b16 %v2403, %v2395
    %v2596 = vpack.c.b16 %v2412, %v2404
    %v2597 = vpack.c.b16 %v2413, %v2405
    %v2598 = vpack.c.b16 %v2414, %v2406
    %v2599 = vpack.c.b16 %v2415, %v2407
    %v2600 = vpack.c.b16 %v2416, %v2408
    %v2601 = vpack.c.b16 %v2417, %v2409
    %v2602 = vpack.c.b16 %v2418, %v2410
    %v2603 = vpack.c.b16 %v2419, %v2411
    %v2604 = vpack.c.b16 %v2428, %v2420
    %v2605 = vpack.c.b16 %v2429, %v2421
    %v2606 = vpack.c.b16 %v2430, %v2422
    %v2607 = vpack.c.b16 %v2431, %v2423
    %v2608 = vpack.c.b16 %v2432, %v2424
    %v2609 = vpack.c.b16 %v2433, %v2425
    %v2610 = vpack.c.b16 %v2434, %v2426
    %v2611 = vpack.c.b16 %v2435, %v2427
    %v2612 = vpack.c.b16 %v2444, %v2436
    %v2613 = vpack.c.b16 %v2445, %v2437
    %v2614 = vpack.c.b16 %v2446, %v2438
    %v2615 = vpack.c.b16 %v2447, %v2439
    %v2616 = vpack.c.b16 %v2448, %v2440
    %v2617 = vpack.c.b16 %v2449, %v2441
    %v2618 = vpack.c.b16 %v2450, %v2442
    %v2619 = vpack.c.b16 %v2451, %v2443
    %v2620 = vpack.c.b16 %v2460, %v2452
    %v2621 = vpack.c.b16 %v2461, %v2453
    %v2622 = vpack.c.b16 %v2462, %v2454
    %v2623 = vpack.c.b16 %v2463, %v2455
    %v2624 = vpack.c.b16 %v2464, %v2456
    %v2625 = vpack.c.b16 %v2465, %v2457
    %v2626 = vpack.c.b16 %v2466, %v2458
    %v2627 = vpack.c.b16 %v2467, %v2459
    %v2628 = vpack.c.b16 %v2476, %v2468
    %v2629 = vpack.c.b16 %v2477, %v2469
    %v2630 = vpack.c.b16 %v2478, %v2470
    %v2631 = vpack.c.b16 %v2479, %v2471
    %v2632 = vpack.c.b16 %v2480, %v2472
    %v2633 = vpack.c.b16 %v2481, %v2473
    %v2634 = vpack.c.b16 %v2482, %v2474
    %v2635 = vpack.c.b16 %v2483, %v2475
    %v2636 = vpack.c.b16 %v2492, %v2484
    %v2637 = vpack.c.b16 %v2493, %v2485
    %v2638 = vpack.c.b16 %v2494, %v2486
    %v2639 = vpack.c.b16 %v2495, %v2487
    %v2640 = vpack.c.b16 %v2496, %v2488
    %v2641 = vpack.c.b16 %v2497, %v2489
    %v2642 = vpack.c.b16 %v2498, %v2490
    %v2643 = vpack.c.b16 %v2499, %v2491
    %v2644 = vpack.c.b16 %v2508, %v2500
    %v2645 = vpack.c.b16 %v2509, %v2501
    %v2646 = vpack.c.b16 %v2510, %v2502
    %v2647 = vpack.c.b16 %v2511, %v2503
    %v2648 = vpack.c.b16 %v2512, %v2504
    %v2649 = vpack.c.b16 %v2513, %v2505
    %v2650 = vpack.c.b16 %v2514, %v2506
    %v2651 = vpack.c.b16 %v2515, %v2507
    %v2652 = vpack.c.b16 %v2524, %v2516
    %v2653 = vpack.c.b16 %v2525, %v2517
    %v2654 = vpack.c.b16 %v2526, %v2518
    %v2655 = vpack.c.b16 %v2527, %v2519
    %v2656 = vpack.c.b16 %v2528, %v2520
    %v2657 = vpack.c.b16 %v2529, %v2521
    %v2658 = vpack.c.b16 %v2530, %v2522
    %v2659 = vpack.c.b16 %v2531, %v2523
    %2788 = vmatprep.subr.bf16.mxu0 %v2589
    %2789 = vmatpush1.bf16.msra.mxu0 %v2588
    %2790 = vmatprep.subr.bf16.mxu0 %v2581
    %2791 = vmatpush1.bf16.msra.mxu0 %v2580
    %2792 = vmatprep.subr.bf16.mxu0 %v2573
    %2793 = vmatpush1.bf16.msra.mxu0 %v2572
    %2794 = vmatprep.subr.bf16.mxu0 %v2565
    %2795 = vmatpush1.bf16.msra.mxu0 %v2564
    %2796 = vmatprep.subr.bf16.mxu0 %v2557
    %2797 = vmatpush1.bf16.msra.mxu0 %v2556
    %2798 = vmatprep.subr.bf16.mxu0 %v2549
    %2799 = vmatpush1.bf16.msra.mxu0 %v2548
    %2800 = vmatprep.subr.bf16.mxu0 %v2541
    %2801 = vmatpush1.bf16.msra.mxu0 %v2540
    %2802 = vmatprep.subr.bf16.mxu0 %v2533
    %2803 = vmatpush1.bf16.msra.mxu0 %v2532
    %2804 = vmatprep.subr.bf16.mxu0 %v2653
    %2805 = vmatpush2.bf16.msra.mxu0 %v2652
    %2806 = vmatprep.subr.bf16.mxu0 %v2645
    %2807 = vmatpush2.bf16.msra.mxu0 %v2644
    %2808 = vmatprep.subr.bf16.mxu0 %v2637
    %2809 = vmatpush2.bf16.msra.mxu0 %v2636
    %2810 = vmatprep.subr.bf16.mxu0 %v2629
    %2811 = vmatpush2.bf16.msra.mxu0 %v2628
    %2812 = vmatprep.subr.bf16.mxu0 %v2621
    %2813 = vmatpush2.bf16.msra.mxu0 %v2620
    %2814 = vmatprep.subr.bf16.mxu0 %v2613
    %2815 = vmatpush2.bf16.msra.mxu0 %v2612
    %2816 = vmatprep.subr.bf16.mxu0 %v2605
    %2817 = vmatpush2.bf16.msra.mxu0 %v2604
    %2818 = vmatprep.subr.bf16.mxu0 %v2597
    %2819 = vmatpush2.bf16.msra.mxu0 %v2596
    %2820 = vmatprep.mubr.bf16.mxu0 %v2145
    %2821 = vmatmul.mubr.bf16.gmra.mxu0 %v2138
    %v2822 = vpop.f32.mrf.mxu0
    %v2823 = vadd.f32 0.0, %v2822
    %v2824 = vpop.f32.mrf.mxu0
    %v2825 = vadd.f32 0.0, %v2824
    %v2826 = vpop.f32.mrf.mxu0
    %v2827 = vpop.f32.mrf.mxu0
    %2828 = vdwg.mxu0
    %2829 = vmatprep.subr.bf16.mxu0 %v2591
    %2830 = vmatpush1.bf16.msra.mxu0 %v2590
    %2831 = vmatprep.subr.bf16.mxu0 %v2583
    %2832 = vmatpush1.bf16.msra.mxu0 %v2582
    %2833 = vmatprep.subr.bf16.mxu0 %v2575
    %2834 = vmatpush1.bf16.msra.mxu0 %v2574
    %2835 = vmatprep.subr.bf16.mxu0 %v2567
    %2836 = vmatpush1.bf16.msra.mxu0 %v2566
    %2837 = vmatprep.subr.bf16.mxu0 %v2559
    %2838 = vmatpush1.bf16.msra.mxu0 %v2558
    %2839 = vmatprep.subr.bf16.mxu0 %v2551
    %2840 = vmatpush1.bf16.msra.mxu0 %v2550
    %2841 = vmatprep.subr.bf16.mxu0 %v2543
    %2842 = vmatpush1.bf16.msra.mxu0 %v2542
    %2843 = vmatprep.subr.bf16.mxu0 %v2535
    %2844 = vmatpush1.bf16.msra.mxu0 %v2534
    %2845 = vmatprep.subr.bf16.mxu0 %v2655
    %2846 = vmatpush2.bf16.msra.mxu0 %v2654
    %2847 = vmatprep.subr.bf16.mxu0 %v2647
    %2848 = vmatpush2.bf16.msra.mxu0 %v2646
    %2849 = vmatprep.subr.bf16.mxu0 %v2639
    %2850 = vmatpush2.bf16.msra.mxu0 %v2638
    %2851 = vmatprep.subr.bf16.mxu0 %v2631
    %2852 = vmatpush2.bf16.msra.mxu0 %v2630
    %2853 = vmatprep.subr.bf16.mxu0 %v2623
    %2854 = vmatpush2.bf16.msra.mxu0 %v2622
    %2855 = vmatprep.subr.bf16.mxu0 %v2615
    %2856 = vmatpush2.bf16.msra.mxu0 %v2614
    %2857 = vmatprep.subr.bf16.mxu0 %v2607
    %2858 = vmatpush2.bf16.msra.mxu0 %v2606
    %2859 = vmatprep.subr.bf16.mxu0 %v2599
    %2860 = vmatpush2.bf16.msra.mxu0 %v2598
    %2861 = vmatprep.mubr.bf16.mxu0 %v2145
    %2862 = vmatmul.mubr.bf16.gmra.mxu0 %v2138
    %v2863 = vpop.f32.mrf.mxu0
    %v2864 = vadd.f32 0.0, %v2863
    %v2865 = vpop.f32.mrf.mxu0
    %v2866 = vadd.f32 0.0, %v2865
    %v2867 = vpop.f32.mrf.mxu0
    %v2868 = vpop.f32.mrf.mxu0
    %2869 = vdwg.mxu0
    %2870 = vmatprep.subr.bf16.mxu0 %v2593
    %2871 = vmatpush1.bf16.msra.mxu0 %v2592
    %2872 = vmatprep.subr.bf16.mxu0 %v2585
    %2873 = vmatpush1.bf16.msra.mxu0 %v2584
    %2874 = vmatprep.subr.bf16.mxu0 %v2577
    %2875 = vmatpush1.bf16.msra.mxu0 %v2576
    %2876 = vmatprep.subr.bf16.mxu0 %v2569
    %2877 = vmatpush1.bf16.msra.mxu0 %v2568
    %2878 = vmatprep.subr.bf16.mxu0 %v2561
    %2879 = vmatpush1.bf16.msra.mxu0 %v2560
    %2880 = vmatprep.subr.bf16.mxu0 %v2553
    %2881 = vmatpush1.bf16.msra.mxu0 %v2552
    %2882 = vmatprep.subr.bf16.mxu0 %v2545
    %2883 = vmatpush1.bf16.msra.mxu0 %v2544
    %2884 = vmatprep.subr.bf16.mxu0 %v2537
    %2885 = vmatpush1.bf16.msra.mxu0 %v2536
    %2886 = vmatprep.subr.bf16.mxu0 %v2657
    %2887 = vmatpush2.bf16.msra.mxu0 %v2656
    %2888 = vmatprep.subr.bf16.mxu0 %v2649
    %2889 = vmatpush2.bf16.msra.mxu0 %v2648
    %2890 = vmatprep.subr.bf16.mxu0 %v2641
    %2891 = vmatpush2.bf16.msra.mxu0 %v2640
    %2892 = vmatprep.subr.bf16.mxu0 %v2633
    %2893 = vmatpush2.bf16.msra.mxu0 %v2632
    %2894 = vmatprep.subr.bf16.mxu0 %v2625
    %2895 = vmatpush2.bf16.msra.mxu0 %v2624
    %2896 = vmatprep.subr.bf16.mxu0 %v2617
    %2897 = vmatpush2.bf16.msra.mxu0 %v2616
    %2898 = vmatprep.subr.bf16.mxu0 %v2609
    %2899 = vmatpush2.bf16.msra.mxu0 %v2608
    %2900 = vmatprep.subr.bf16.mxu0 %v2601
    %2901 = vmatpush2.bf16.msra.mxu0 %v2600
    %2902 = vmatprep.mubr.bf16.mxu0 %v2145
    %2903 = vmatmul.mubr.bf16.gmra.mxu0 %v2138
    %v2904 = vpop.f32.mrf.mxu0
    %v2905 = vadd.f32 0.0, %v2904
    %v2906 = vpop.f32.mrf.mxu0
    %v2907 = vadd.f32 0.0, %v2906
    %v2908 = vpop.f32.mrf.mxu0
    %v2909 = vpop.f32.mrf.mxu0
    %2910 = vdwg.mxu0
    %2911 = vmatprep.subr.bf16.mxu0 %v2595
    %2912 = vmatpush1.bf16.msra.mxu0 %v2594
    %2913 = vmatprep.subr.bf16.mxu0 %v2587
    %2914 = vmatpush1.bf16.msra.mxu0 %v2586
    %2915 = vmatprep.subr.bf16.mxu0 %v2579
    %2916 = vmatpush1.bf16.msra.mxu0 %v2578
    %2917 = vmatprep.subr.bf16.mxu0 %v2571
    %2918 = vmatpush1.bf16.msra.mxu0 %v2570
    %2919 = vmatprep.subr.bf16.mxu0 %v2563
    %2920 = vmatpush1.bf16.msra.mxu0 %v2562
    %2921 = vmatprep.subr.bf16.mxu0 %v2555
    %2922 = vmatpush1.bf16.msra.mxu0 %v2554
    %2923 = vmatprep.subr.bf16.mxu0 %v2547
    %2924 = vmatpush1.bf16.msra.mxu0 %v2546
    %2925 = vmatprep.subr.bf16.mxu0 %v2539
    %2926 = vmatpush1.bf16.msra.mxu0 %v2538
    %2927 = vmatprep.subr.bf16.mxu0 %v2659
    %2928 = vmatpush2.bf16.msra.mxu0 %v2658
    %2929 = vmatprep.subr.bf16.mxu0 %v2651
    %2930 = vmatpush2.bf16.msra.mxu0 %v2650
    %2931 = vmatprep.subr.bf16.mxu0 %v2643
    %2932 = vmatpush2.bf16.msra.mxu0 %v2642
    %2933 = vmatprep.subr.bf16.mxu0 %v2635
    %2934 = vmatpush2.bf16.msra.mxu0 %v2634
    %2935 = vmatprep.subr.bf16.mxu0 %v2627
    %2936 = vmatpush2.bf16.msra.mxu0 %v2626
    %2937 = vmatprep.subr.bf16.mxu0 %v2619
    %2938 = vmatpush2.bf16.msra.mxu0 %v2618
    %2939 = vmatprep.subr.bf16.mxu0 %v2611
    %2940 = vmatpush2.bf16.msra.mxu0 %v2610
    %2941 = vmatprep.subr.bf16.mxu0 %v2603
    %2942 = vmatpush2.bf16.msra.mxu0 %v2602
    %2943 = vmatprep.mubr.bf16.mxu0 %v2145
    %2944 = vmatmul.mubr.bf16.gmra.mxu0 %v2138
    %v2945 = vpop.f32.mrf.mxu0
    %v2946 = vadd.f32 0.0, %v2945
    %v2947 = vpop.f32.mrf.mxu0
    %v2948 = vadd.f32 0.0, %v2947
    %v2949 = vpop.f32.mrf.mxu0
    %v2950 = vpop.f32.mrf.mxu0
    %2951 = vdwg.mxu0
    %v2952 = vld [vmem:[#allocation4] sm:$0xff]
    %v2953 = vld [vmem:[#allocation4 + $0x8] sm:$0xff]
    %v2954 = vld [vmem:[#allocation4 + $0x10] sm:$0xff]
    %v2955 = vld [vmem:[#allocation4 + $0x18] sm:$0xff]
    %v2956 = vld [vmem:[#allocation4 + $0x24] sm:$0xff]
    %v2957 = vld [vmem:[#allocation4 + $0x2c] sm:$0xff]
    %v2958 = vld [vmem:[#allocation4 + $0x34] sm:$0xff]
    %v2959 = vld [vmem:[#allocation4 + $0x3c] sm:$0xff]
    %v2960 = vld [vmem:[#allocation4 + $0x48] sm:$0xff]
    %v2961 = vld [vmem:[#allocation4 + $0x50] sm:$0xff]
    %v2962 = vld [vmem:[#allocation4 + $0x58] sm:$0xff]
    %v2963 = vld [vmem:[#allocation4 + $0x60] sm:$0xff]
    %v2964 = vld [vmem:[#allocation4 + $0x6c] sm:$0xff]
    %v2965 = vld [vmem:[#allocation4 + $0x74] sm:$0xff]
    %v2966 = vld [vmem:[#allocation4 + $0x7c] sm:$0xff]
    %v2967 = vld [vmem:[#allocation4 + $0x84] sm:$0xff]
    %v2968 = vld [vmem:[#allocation4 + $0x90] sm:$0xff]
    %v2969 = vld [vmem:[#allocation4 + $0x98] sm:$0xff]
    %v2970 = vld [vmem:[#allocation4 + $0xa0] sm:$0xff]
    %v2971 = vld [vmem:[#allocation4 + $0xa8] sm:$0xff]
    %v2972 = vld [vmem:[#allocation4 + $0xb4] sm:$0xff]
    %v2973 = vld [vmem:[#allocation4 + $0xbc] sm:$0xff]
    %v2974 = vld [vmem:[#allocation4 + $0xc4] sm:$0xff]
    %v2975 = vld [vmem:[#allocation4 + $0xcc] sm:$0xff]
    %v2976 = vld [vmem:[#allocation4 + $0xd8] sm:$0xff]
    %v2977 = vld [vmem:[#allocation4 + $0xe0] sm:$0xff]
    %v2978 = vld [vmem:[#allocation4 + $0xe8] sm:$0xff]
    %v2979 = vld [vmem:[#allocation4 + $0xf0] sm:$0xff]
    %v2980 = vld [vmem:[#allocation4 + $0xfc] sm:$0xff]
    %v2981 = vld [vmem:[#allocation4 + $0x104] sm:$0xff]
    %v2982 = vld [vmem:[#allocation4 + $0x10c] sm:$0xff]
    %v2983 = vld [vmem:[#allocation4 + $0x114] sm:$0xff]
    %v2984 = vld [vmem:[#allocation4 + $0x120] sm:$0xff]
    %v2985 = vld [vmem:[#allocation4 + $0x128] sm:$0xff]
    %v2986 = vld [vmem:[#allocation4 + $0x130] sm:$0xff]
    %v2987 = vld [vmem:[#allocation4 + $0x138] sm:$0xff]
    %v2988 = vld [vmem:[#allocation4 + $0x144] sm:$0xff]
    %v2989 = vld [vmem:[#allocation4 + $0x14c] sm:$0xff]
    %v2990 = vld [vmem:[#allocation4 + $0x154] sm:$0xff]
    %v2991 = vld [vmem:[#allocation4 + $0x15c] sm:$0xff]
    %v2992 = vld [vmem:[#allocation4 + $0x168] sm:$0xff]
    %v2993 = vld [vmem:[#allocation4 + $0x170] sm:$0xff]
    %v2994 = vld [vmem:[#allocation4 + $0x178] sm:$0xff]
    %v2995 = vld [vmem:[#allocation4 + $0x180] sm:$0xff]
    %v2996 = vld [vmem:[#allocation4 + $0x18c] sm:$0xff]
    %v2997 = vld [vmem:[#allocation4 + $0x194] sm:$0xff]
    %v2998 = vld [vmem:[#allocation4 + $0x19c] sm:$0xff]
    %v2999 = vld [vmem:[#allocation4 + $0x1a4] sm:$0xff]
    %v3000 = vld [vmem:[#allocation4 + $0x1b0] sm:$0xff]
    %v3001 = vld [vmem:[#allocation4 + $0x1b8] sm:$0xff]
    %v3002 = vld [vmem:[#allocation4 + $0x1c0] sm:$0xff]
    %v3003 = vld [vmem:[#allocation4 + $0x1c8] sm:$0xff]
    %v3004 = vld [vmem:[#allocation4 + $0x1d4] sm:$0xff]
    %v3005 = vld [vmem:[#allocation4 + $0x1dc] sm:$0xff]
    %v3006 = vld [vmem:[#allocation4 + $0x1e4] sm:$0xff]
    %v3007 = vld [vmem:[#allocation4 + $0x1ec] sm:$0xff]
    %v3008 = vld [vmem:[#allocation4 + $0x1f8] sm:$0xff]
    %v3009 = vld [vmem:[#allocation4 + $0x200] sm:$0xff]
    %v3010 = vld [vmem:[#allocation4 + $0x208] sm:$0xff]
    %v3011 = vld [vmem:[#allocation4 + $0x210] sm:$0xff]
    %v3012 = vld [vmem:[#allocation4 + $0x21c] sm:$0xff]
    %v3013 = vld [vmem:[#allocation4 + $0x224] sm:$0xff]
    %v3014 = vld [vmem:[#allocation4 + $0x22c] sm:$0xff]
    %v3015 = vld [vmem:[#allocation4 + $0x234] sm:$0xff]
    %v3016 = vld [vmem:[#allocation4 + $0x20] sm:$0xf]
    %v3017 = vld [vmem:[#allocation4 + $0x44] sm:$0xf]
    %v3018 = vld [vmem:[#allocation4 + $0x68] sm:$0xf]
    %v3019 = vld [vmem:[#allocation4 + $0x8c] sm:$0xf]
    %v3020 = vld [vmem:[#allocation4 + $0xb0] sm:$0xf]
    %v3021 = vld [vmem:[#allocation4 + $0xd4] sm:$0xf]
    %v3022 = vld [vmem:[#allocation4 + $0xf8] sm:$0xf]
    %v3023 = vld [vmem:[#allocation4 + $0x11c] sm:$0xf]
    %v3024 = vld [vmem:[#allocation4 + $0x140] sm:$0xf]
    %v3025 = vld [vmem:[#allocation4 + $0x164] sm:$0xf]
    %v3026 = vld [vmem:[#allocation4 + $0x188] sm:$0xf]
    %v3027 = vld [vmem:[#allocation4 + $0x1ac] sm:$0xf]
    %v3028 = vld [vmem:[#allocation4 + $0x1d0] sm:$0xf]
    %v3029 = vld [vmem:[#allocation4 + $0x1f4] sm:$0xf]
    %v3030 = vld [vmem:[#allocation4 + $0x218] sm:$0xf]
    %v3031 = vld [vmem:[#allocation4 + $0x23c] sm:$0xf]
    %v3032 = vmul.f32 %v903, %v1863
    %v3033 = vmul.f32 %v905, %v1865
    %v3034 = vmul.f32 %v944, %v1904
    %v3035 = vmul.f32 %v946, %v1906
    %v3036 = vmul.f32 %v985, %v1945
    %v3037 = vmul.f32 %v987, %v1947
    %v3038 = vmul.f32 %v1026, %v1986
    %v3039 = vmul.f32 %v1028, %v1988
    %v3040 = vpack.c.bf16 %v3032, %v3032
    %v3041 = vpack.c.bf16 %v3033, %v3033
    %v3042 = vpack.c.bf16 %v3034, %v3034
    %v3043 = vpack.c.bf16 %v3035, %v3035
    %v3044 = vpack.c.bf16 %v3036, %v3036
    %v3045 = vpack.c.bf16 %v3037, %v3037
    %v3046 = vpack.c.bf16 %v3038, %v3038
    %v3047 = vpack.c.bf16 %v3039, %v3039
    %v3112 = vunpack.c.l.b16 %v2952
    %v3113 = vunpack.c.h.b16 %v2952
    %v3114 = vunpack.c.l.b16 %v2953
    %v3115 = vunpack.c.h.b16 %v2953
    %v3116 = vunpack.c.l.b16 %v2954
    %v3117 = vunpack.c.h.b16 %v2954
    %v3118 = vunpack.c.l.b16 %v2955
    %v3119 = vunpack.c.h.b16 %v2955
    %v3120 = vunpack.c.l.b16 %v2956
    %v3121 = vunpack.c.h.b16 %v2956
    %v3122 = vunpack.c.l.b16 %v2957
    %v3123 = vunpack.c.h.b16 %v2957
    %v3124 = vunpack.c.l.b16 %v2958
    %v3125 = vunpack.c.h.b16 %v2958
    %v3126 = vunpack.c.l.b16 %v2959
    %v3127 = vunpack.c.h.b16 %v2959
    %v3128 = vunpack.c.l.b16 %v2960
    %v3129 = vunpack.c.h.b16 %v2960
    %v3130 = vunpack.c.l.b16 %v2961
    %v3131 = vunpack.c.h.b16 %v2961
    %v3132 = vunpack.c.l.b16 %v2962
    %v3133 = vunpack.c.h.b16 %v2962
    %v3134 = vunpack.c.l.b16 %v2963
    %v3135 = vunpack.c.h.b16 %v2963
    %v3136 = vunpack.c.l.b16 %v2964
    %v3137 = vunpack.c.h.b16 %v2964
    %v3138 = vunpack.c.l.b16 %v2965
    %v3139 = vunpack.c.h.b16 %v2965
    %v3140 = vunpack.c.l.b16 %v2966
    %v3141 = vunpack.c.h.b16 %v2966
    %v3142 = vunpack.c.l.b16 %v2967
    %v3143 = vunpack.c.h.b16 %v2967
    %v3144 = vunpack.c.l.b16 %v2968
    %v3145 = vunpack.c.h.b16 %v2968
    %v3146 = vunpack.c.l.b16 %v2969
    %v3147 = vunpack.c.h.b16 %v2969
    %v3148 = vunpack.c.l.b16 %v2970
    %v3149 = vunpack.c.h.b16 %v2970
    %v3150 = vunpack.c.l.b16 %v2971
    %v3151 = vunpack.c.h.b16 %v2971
    %v3152 = vunpack.c.l.b16 %v2972
    %v3153 = vunpack.c.h.b16 %v2972
    %v3154 = vunpack.c.l.b16 %v2973
    %v3155 = vunpack.c.h.b16 %v2973
    %v3156 = vunpack.c.l.b16 %v2974
    %v3157 = vunpack.c.h.b16 %v2974
    %v3158 = vunpack.c.l.b16 %v2975
    %v3159 = vunpack.c.h.b16 %v2975
    %v3160 = vunpack.c.l.b16 %v2976
    %v3161 = vunpack.c.h.b16 %v2976
    %v3162 = vunpack.c.l.b16 %v2977
    %v3163 = vunpack.c.h.b16 %v2977
    %v3164 = vunpack.c.l.b16 %v2978
    %v3165 = vunpack.c.h.b16 %v2978
    %v3166 = vunpack.c.l.b16 %v2979
    %v3167 = vunpack.c.h.b16 %v2979
    %v3168 = vunpack.c.l.b16 %v2980
    %v3169 = vunpack.c.h.b16 %v2980
    %v3170 = vunpack.c.l.b16 %v2981
    %v3171 = vunpack.c.h.b16 %v2981
    %v3172 = vunpack.c.l.b16 %v2982
    %v3173 = vunpack.c.h.b16 %v2982
    %v3174 = vunpack.c.l.b16 %v2983
    %v3175 = vunpack.c.h.b16 %v2983
    %v3176 = vunpack.c.l.b16 %v2984
    %v3177 = vunpack.c.h.b16 %v2984
    %v3178 = vunpack.c.l.b16 %v2985
    %v3179 = vunpack.c.h.b16 %v2985
    %v3180 = vunpack.c.l.b16 %v2986
    %v3181 = vunpack.c.h.b16 %v2986
    %v3182 = vunpack.c.l.b16 %v2987
    %v3183 = vunpack.c.h.b16 %v2987
    %v3184 = vunpack.c.l.b16 %v2988
    %v3185 = vunpack.c.h.b16 %v2988
    %v3186 = vunpack.c.l.b16 %v2989
    %v3187 = vunpack.c.h.b16 %v2989
    %v3188 = vunpack.c.l.b16 %v2990
    %v3189 = vunpack.c.h.b16 %v2990
    %v3190 = vunpack.c.l.b16 %v2991
    %v3191 = vunpack.c.h.b16 %v2991
    %v3192 = vunpack.c.l.b16 %v2992
    %v3193 = vunpack.c.h.b16 %v2992
    %v3194 = vunpack.c.l.b16 %v2993
    %v3195 = vunpack.c.h.b16 %v2993
    %v3196 = vunpack.c.l.b16 %v2994
    %v3197 = vunpack.c.h.b16 %v2994
    %v3198 = vunpack.c.l.b16 %v2995
    %v3199 = vunpack.c.h.b16 %v2995
    %v3200 = vunpack.c.l.b16 %v2996
    %v3201 = vunpack.c.h.b16 %v2996
    %v3202 = vunpack.c.l.b16 %v2997
    %v3203 = vunpack.c.h.b16 %v2997
    %v3204 = vunpack.c.l.b16 %v2998
    %v3205 = vunpack.c.h.b16 %v2998
    %v3206 = vunpack.c.l.b16 %v2999
    %v3207 = vunpack.c.h.b16 %v2999
    %v3208 = vunpack.c.l.b16 %v3000
    %v3209 = vunpack.c.h.b16 %v3000
    %v3210 = vunpack.c.l.b16 %v3001
    %v3211 = vunpack.c.h.b16 %v3001
    %v3212 = vunpack.c.l.b16 %v3002
    %v3213 = vunpack.c.h.b16 %v3002
    %v3214 = vunpack.c.l.b16 %v3003
    %v3215 = vunpack.c.h.b16 %v3003
    %v3216 = vunpack.c.l.b16 %v3004
    %v3217 = vunpack.c.h.b16 %v3004
    %v3218 = vunpack.c.l.b16 %v3005
    %v3219 = vunpack.c.h.b16 %v3005
    %v3220 = vunpack.c.l.b16 %v3006
    %v3221 = vunpack.c.h.b16 %v3006
    %v3222 = vunpack.c.l.b16 %v3007
    %v3223 = vunpack.c.h.b16 %v3007
    %v3224 = vunpack.c.l.b16 %v3008
    %v3225 = vunpack.c.h.b16 %v3008
    %v3226 = vunpack.c.l.b16 %v3009
    %v3227 = vunpack.c.h.b16 %v3009
    %v3228 = vunpack.c.l.b16 %v3010
    %v3229 = vunpack.c.h.b16 %v3010
    %v3230 = vunpack.c.l.b16 %v3011
    %v3231 = vunpack.c.h.b16 %v3011
    %v3232 = vunpack.c.l.b16 %v3012
    %v3233 = vunpack.c.h.b16 %v3012
    %v3234 = vunpack.c.l.b16 %v3013
    %v3235 = vunpack.c.h.b16 %v3013
    %v3236 = vunpack.c.l.b16 %v3014
    %v3237 = vunpack.c.h.b16 %v3014
    %v3238 = vunpack.c.l.b16 %v3015
    %v3239 = vunpack.c.h.b16 %v3015
    %v3240 = vpack.c.b16 %v3120, %v3112
    %v3241 = vpack.c.b16 %v3121, %v3113
    %v3242 = vpack.c.b16 %v3122, %v3114
    %v3243 = vpack.c.b16 %v3123, %v3115
    %v3244 = vpack.c.b16 %v3124, %v3116
    %v3245 = vpack.c.b16 %v3125, %v3117
    %v3246 = vpack.c.b16 %v3126, %v3118
    %v3247 = vpack.c.b16 %v3127, %v3119
    %v3248 = vpack.c.b16 %v3136, %v3128
    %v3249 = vpack.c.b16 %v3137, %v3129
    %v3250 = vpack.c.b16 %v3138, %v3130
    %v3251 = vpack.c.b16 %v3139, %v3131
    %v3252 = vpack.c.b16 %v3140, %v3132
    %v3253 = vpack.c.b16 %v3141, %v3133
    %v3254 = vpack.c.b16 %v3142, %v3134
    %v3255 = vpack.c.b16 %v3143, %v3135
    %v3256 = vpack.c.b16 %v3152, %v3144
    %v3257 = vpack.c.b16 %v3153, %v3145
    %v3258 = vpack.c.b16 %v3154, %v3146
    %v3259 = vpack.c.b16 %v3155, %v3147
    %v3260 = vpack.c.b16 %v3156, %v3148
    %v3261 = vpack.c.b16 %v3157, %v3149
    %v3262 = vpack.c.b16 %v3158, %v3150
    %v3263 = vpack.c.b16 %v3159, %v3151
    %v3264 = vpack.c.b16 %v3168, %v3160
    %v3265 = vpack.c.b16 %v3169, %v3161
    %v3266 = vpack.c.b16 %v3170, %v3162
    %v3267 = vpack.c.b16 %v3171, %v3163
    %v3268 = vpack.c.b16 %v3172, %v3164
    %v3269 = vpack.c.b16 %v3173, %v3165
    %v3270 = vpack.c.b16 %v3174, %v3166
    %v3271 = vpack.c.b16 %v3175, %v3167
    %v3272 = vpack.c.b16 %v3184, %v3176
    %v3273 = vpack.c.b16 %v3185, %v3177
    %v3274 = vpack.c.b16 %v3186, %v3178
    %v3275 = vpack.c.b16 %v3187, %v3179
    %v3276 = vpack.c.b16 %v3188, %v3180
    %v3277 = vpack.c.b16 %v3189, %v3181
    %v3278 = vpack.c.b16 %v3190, %v3182
    %v3279 = vpack.c.b16 %v3191, %v3183
    %v3280 = vpack.c.b16 %v3200, %v3192
    %v3281 = vpack.c.b16 %v3201, %v3193
    %v3282 = vpack.c.b16 %v3202, %v3194
    %v3283 = vpack.c.b16 %v3203, %v3195
    %v3284 = vpack.c.b16 %v3204, %v3196
    %v3285 = vpack.c.b16 %v3205, %v3197
    %v3286 = vpack.c.b16 %v3206, %v3198
    %v3287 = vpack.c.b16 %v3207, %v3199
    %v3288 = vpack.c.b16 %v3216, %v3208
    %v3289 = vpack.c.b16 %v3217, %v3209
    %v3290 = vpack.c.b16 %v3218, %v3210
    %v3291 = vpack.c.b16 %v3219, %v3211
    %v3292 = vpack.c.b16 %v3220, %v3212
    %v3293 = vpack.c.b16 %v3221, %v3213
    %v3294 = vpack.c.b16 %v3222, %v3214
    %v3295 = vpack.c.b16 %v3223, %v3215
    %v3296 = vpack.c.b16 %v3232, %v3224
    %v3297 = vpack.c.b16 %v3233, %v3225
    %v3298 = vpack.c.b16 %v3234, %v3226
    %v3299 = vpack.c.b16 %v3235, %v3227
    %v3300 = vpack.c.b16 %v3236, %v3228
    %v3301 = vpack.c.b16 %v3237, %v3229
    %v3302 = vpack.c.b16 %v3238, %v3230
    %v3303 = vpack.c.b16 %v3239, %v3231
    %3368 = vmatprep.subr.bf16.mxu0 %v3297
    %3369 = vmatpush1.bf16.xpose.msra.mxu0 %v3296
    %3370 = vmatprep.subr.bf16.mxu0 %v3289
    %3371 = vmatpush1.bf16.xpose.msra.mxu0 %v3288
    %3372 = vmatprep.subr.bf16.mxu0 %v3281
    %3373 = vmatpush1.bf16.xpose.msra.mxu0 %v3280
    %3374 = vmatprep.subr.bf16.mxu0 %v3273
    %3375 = vmatpush1.bf16.xpose.msra.mxu0 %v3272
    %3376 = vmatprep.subr.bf16.mxu0 %v3265
    %3377 = vmatpush1.bf16.xpose.msra.mxu0 %v3264
    %3378 = vmatprep.subr.bf16.mxu0 %v3257
    %3379 = vmatpush1.bf16.xpose.msra.mxu0 %v3256
    %3380 = vmatprep.subr.bf16.mxu0 %v3249
    %3381 = vmatpush1.bf16.xpose.msra.mxu0 %v3248
    %3382 = vmatprep.subr.bf16.mxu0 %v3241
    %3383 = vmatpush1.bf16.xpose.msra.mxu0 %v3240
    %3384 = vmatprep.subr.bf16.mxu0 0
    %3385 = vmatpush2.bf16.xpose.msra.mxu0 0
    %3386 = vmatprep.subr.bf16.mxu0 0
    %3387 = vmatpush2.bf16.xpose.msra.mxu0 0
    %3388 = vmatprep.subr.bf16.mxu0 0
    %3389 = vmatpush2.bf16.xpose.msra.mxu0 0
    %3390 = vmatprep.subr.bf16.mxu0 0
    %3391 = vmatpush2.bf16.xpose.msra.mxu0 0
    %3392 = vmatprep.subr.bf16.mxu0 0
    %3393 = vmatpush2.bf16.xpose.msra.mxu0 0
    %3394 = vmatprep.subr.bf16.mxu0 0
    %3395 = vmatpush2.bf16.xpose.msra.mxu0 0
    %3396 = vmatprep.subr.bf16.mxu0 0
    %3397 = vmatpush2.bf16.xpose.msra.mxu0 0
    %3398 = vmatprep.subr.bf16.mxu0 0
    %3399 = vmatpush2.bf16.xpose.msra.mxu0 0
    %3400 = vmatprep.mubr.bf16.mxu0 %v3041
    %3401 = vmatmul.mubr.bf16.gmra.mxu0 %v3040
    %v3402 = vpop.f32.mrf.mxu0
    %v3403 = vadd.f32 0.0, %v3402
    %v3404 = vpop.f32.mrf.mxu0
    %v3405 = vpop.f32.mrf.mxu0
    %v3406 = vpop.f32.mrf.mxu0
    %3407 = vdwg.mxu0
    %3408 = vmatprep.subr.bf16.mxu0 %v3299
    %3409 = vmatpush1.bf16.xpose.msra.mxu0 %v3298
    %3410 = vmatprep.subr.bf16.mxu0 %v3291
    %3411 = vmatpush1.bf16.xpose.msra.mxu0 %v3290
    %3412 = vmatprep.subr.bf16.mxu0 %v3283
    %3413 = vmatpush1.bf16.xpose.msra.mxu0 %v3282
    %3414 = vmatprep.subr.bf16.mxu0 %v3275
    %3415 = vmatpush1.bf16.xpose.msra.mxu0 %v3274
    %3416 = vmatprep.subr.bf16.mxu0 %v3267
    %3417 = vmatpush1.bf16.xpose.msra.mxu0 %v3266
    %3418 = vmatprep.subr.bf16.mxu0 %v3259
    %3419 = vmatpush1.bf16.xpose.msra.mxu0 %v3258
    %3420 = vmatprep.subr.bf16.mxu0 %v3251
    %3421 = vmatpush1.bf16.xpose.msra.mxu0 %v3250
    %3422 = vmatprep.subr.bf16.mxu0 %v3243
    %3423 = vmatpush1.bf16.xpose.msra.mxu0 %v3242
    %3424 = vmatprep.subr.bf16.mxu0 0
    %3425 = vmatpush2.bf16.xpose.msra.mxu0 0
    %3426 = vmatprep.subr.bf16.mxu0 0
    %3427 = vmatpush2.bf16.xpose.msra.mxu0 0
    %3428 = vmatprep.subr.bf16.mxu0 0
    %3429 = vmatpush2.bf16.xpose.msra.mxu0 0
    %3430 = vmatprep.subr.bf16.mxu0 0
    %3431 = vmatpush2.bf16.xpose.msra.mxu0 0
    %3432 = vmatprep.subr.bf16.mxu0 0
    %3433 = vmatpush2.bf16.xpose.msra.mxu0 0
    %3434 = vmatprep.subr.bf16.mxu0 0
    %3435 = vmatpush2.bf16.xpose.msra.mxu0 0
    %3436 = vmatprep.subr.bf16.mxu0 0
    %3437 = vmatpush2.bf16.xpose.msra.mxu0 0
    %3438 = vmatprep.subr.bf16.mxu0 0
    %3439 = vmatpush2.bf16.xpose.msra.mxu0 0
    %3440 = vmatprep.mubr.bf16.mxu0 %v3043
    %3441 = vmatmul.mubr.bf16.gmra.mxu0 %v3042
    %v3442 = vpop.f32.mrf.mxu0
    %v3443 = vadd.f32 %v3403, %v3442
    %v3444 = vpop.f32.mrf.mxu0
    %v3445 = vpop.f32.mrf.mxu0
    %v3446 = vpop.f32.mrf.mxu0
    %3447 = vdwg.mxu0
    %3448 = vmatprep.subr.bf16.mxu0 %v3301
    %3449 = vmatpush1.bf16.xpose.msra.mxu0 %v3300
    %3450 = vmatprep.subr.bf16.mxu0 %v3293
    %3451 = vmatpush1.bf16.xpose.msra.mxu0 %v3292
    %3452 = vmatprep.subr.bf16.mxu0 %v3285
    %3453 = vmatpush1.bf16.xpose.msra.mxu0 %v3284
    %3454 = vmatprep.subr.bf16.mxu0 %v3277
    %3455 = vmatpush1.bf16.xpose.msra.mxu0 %v3276
    %3456 = vmatprep.subr.bf16.mxu0 %v3269
    %3457 = vmatpush1.bf16.xpose.msra.mxu0 %v3268
    %3458 = vmatprep.subr.bf16.mxu0 %v3261
    %3459 = vmatpush1.bf16.xpose.msra.mxu0 %v3260
    %3460 = vmatprep.subr.bf16.mxu0 %v3253
    %3461 = vmatpush1.bf16.xpose.msra.mxu0 %v3252
    %3462 = vmatprep.subr.bf16.mxu0 %v3245
    %3463 = vmatpush1.bf16.xpose.msra.mxu0 %v3244
    %3464 = vmatprep.subr.bf16.mxu0 0
    %3465 = vmatpush2.bf16.xpose.msra.mxu0 0
    %3466 = vmatprep.subr.bf16.mxu0 0
    %3467 = vmatpush2.bf16.xpose.msra.mxu0 0
    %3468 = vmatprep.subr.bf16.mxu0 0
    %3469 = vmatpush2.bf16.xpose.msra.mxu0 0
    %3470 = vmatprep.subr.bf16.mxu0 0
    %3471 = vmatpush2.bf16.xpose.msra.mxu0 0
    %3472 = vmatprep.subr.bf16.mxu0 0
    %3473 = vmatpush2.bf16.xpose.msra.mxu0 0
    %3474 = vmatprep.subr.bf16.mxu0 0
    %3475 = vmatpush2.bf16.xpose.msra.mxu0 0
    %3476 = vmatprep.subr.bf16.mxu0 0
    %3477 = vmatpush2.bf16.xpose.msra.mxu0 0
    %3478 = vmatprep.subr.bf16.mxu0 0
    %3479 = vmatpush2.bf16.xpose.msra.mxu0 0
    %3480 = vmatprep.mubr.bf16.mxu0 %v3045
    %3481 = vmatmul.mubr.bf16.gmra.mxu0 %v3044
    %v3482 = vpop.f32.mrf.mxu0
    %v3483 = vadd.f32 %v3443, %v3482
    %v3484 = vpop.f32.mrf.mxu0
    %v3485 = vpop.f32.mrf.mxu0
    %v3486 = vpop.f32.mrf.mxu0
    %3487 = vdwg.mxu0
    %3488 = vmatprep.subr.bf16.mxu0 %v3303
    %3489 = vmatpush1.bf16.xpose.msra.mxu0 %v3302
    %3490 = vmatprep.subr.bf16.mxu0 %v3295
    %3491 = vmatpush1.bf16.xpose.msra.mxu0 %v3294
    %3492 = vmatprep.subr.bf16.mxu0 %v3287
    %3493 = vmatpush1.bf16.xpose.msra.mxu0 %v3286
    %3494 = vmatprep.subr.bf16.mxu0 %v3279
    %3495 = vmatpush1.bf16.xpose.msra.mxu0 %v3278
    %3496 = vmatprep.subr.bf16.mxu0 %v3271
    %3497 = vmatpush1.bf16.xpose.msra.mxu0 %v3270
    %3498 = vmatprep.subr.bf16.mxu0 %v3263
    %3499 = vmatpush1.bf16.xpose.msra.mxu0 %v3262
    %3500 = vmatprep.subr.bf16.mxu0 %v3255
    %3501 = vmatpush1.bf16.xpose.msra.mxu0 %v3254
    %3502 = vmatprep.subr.bf16.mxu0 %v3247
    %3503 = vmatpush1.bf16.xpose.msra.mxu0 %v3246
    %3504 = vmatprep.subr.bf16.mxu0 0
    %3505 = vmatpush2.bf16.xpose.msra.mxu0 0
    %3506 = vmatprep.subr.bf16.mxu0 0
    %3507 = vmatpush2.bf16.xpose.msra.mxu0 0
    %3508 = vmatprep.subr.bf16.mxu0 0
    %3509 = vmatpush2.bf16.xpose.msra.mxu0 0
    %3510 = vmatprep.subr.bf16.mxu0 0
    %3511 = vmatpush2.bf16.xpose.msra.mxu0 0
    %3512 = vmatprep.subr.bf16.mxu0 0
    %3513 = vmatpush2.bf16.xpose.msra.mxu0 0
    %3514 = vmatprep.subr.bf16.mxu0 0
    %3515 = vmatpush2.bf16.xpose.msra.mxu0 0
    %3516 = vmatprep.subr.bf16.mxu0 0
    %3517 = vmatpush2.bf16.xpose.msra.mxu0 0
    %3518 = vmatprep.subr.bf16.mxu0 0
    %3519 = vmatpush2.bf16.xpose.msra.mxu0 0
    %3520 = vmatprep.mubr.bf16.mxu0 %v3047
    %3521 = vmatmul.mubr.bf16.gmra.mxu0 %v3046
    %v3522 = vpop.f32.mrf.mxu0
    %v3523 = vadd.f32 %v3483, %v3522
    %v3524 = vpop.f32.mrf.mxu0
    %v3525 = vpop.f32.mrf.mxu0
    %v3526 = vpop.f32.mrf.mxu0
    %3527 = vdwg.mxu0
    %vm3528 = vcmask 1041408
    %v3529 = vsel %vm3528, %v3523, -inf
    %3530 = vmax.xlane.f32.xlu0 %v3529
    %v3531 = vpop.xlane.xlu0 %3530
    %v3532 = vsub.f32 %v3523, %v3531
    %v3533 = vmul.f32 %v3532, 1.442695
    %v3534 = vpow.pop %v3533
    %v3535 = vpack.c.bf16 %v3534, %v3534
    %v3552 = vunpack.c.l.b16 %v3016
    %v3553 = vunpack.c.l.b16 %v3017
    %v3554 = vunpack.c.l.b16 %v3018
    %v3555 = vunpack.c.l.b16 %v3019
    %v3556 = vunpack.c.l.b16 %v3020
    %v3557 = vunpack.c.l.b16 %v3021
    %v3558 = vunpack.c.l.b16 %v3022
    %v3559 = vunpack.c.l.b16 %v3023
    %v3560 = vunpack.c.l.b16 %v3024
    %v3561 = vunpack.c.l.b16 %v3025
    %v3562 = vunpack.c.l.b16 %v3026
    %v3563 = vunpack.c.l.b16 %v3027
    %v3564 = vunpack.c.l.b16 %v3028
    %v3565 = vunpack.c.l.b16 %v3029
    %v3566 = vunpack.c.l.b16 %v3030
    %v3567 = vunpack.c.l.b16 %v3031
    %v3568 = vpack.c.b16 %v3553, %v3552
    %v3569 = vpack.c.b16 %v3555, %v3554
    %v3570 = vpack.c.b16 %v3557, %v3556
    %v3571 = vpack.c.b16 %v3559, %v3558
    %v3572 = vpack.c.b16 %v3561, %v3560
    %v3573 = vpack.c.b16 %v3563, %v3562
    %v3574 = vpack.c.b16 %v3565, %v3564
    %v3575 = vpack.c.b16 %v3567, %v3566
    %3584 = vmatprep.subr.bf16.mxu0 0
    %3585 = vmatpush1.bf16.msra.mxu0 %v3575
    %3586 = vmatprep.subr.bf16.mxu0 0
    %3587 = vmatpush1.bf16.msra.mxu0 %v3574
    %3588 = vmatprep.subr.bf16.mxu0 0
    %3589 = vmatpush1.bf16.msra.mxu0 %v3573
    %3590 = vmatprep.subr.bf16.mxu0 0
    %3591 = vmatpush1.bf16.msra.mxu0 %v3572
    %3592 = vmatprep.subr.bf16.mxu0 0
    %3593 = vmatpush1.bf16.msra.mxu0 %v3571
    %3594 = vmatprep.subr.bf16.mxu0 0
    %3595 = vmatpush1.bf16.msra.mxu0 %v3570
    %3596 = vmatprep.subr.bf16.mxu0 0
    %3597 = vmatpush1.bf16.msra.mxu0 %v3569
    %3598 = vmatprep.subr.bf16.mxu0 0
    %3599 = vmatpush1.bf16.msra.mxu0 %v3568
    %3600 = vmatprep.subr.bf16.mxu0 0
    %3601 = vmatpush2.bf16.msra.mxu0 0
    %3602 = vmatprep.subr.bf16.mxu0 0
    %3603 = vmatpush2.bf16.msra.mxu0 0
    %3604 = vmatprep.subr.bf16.mxu0 0
    %3605 = vmatpush2.bf16.msra.mxu0 0
    %3606 = vmatprep.subr.bf16.mxu0 0
    %3607 = vmatpush2.bf16.msra.mxu0 0
    %3608 = vmatprep.subr.bf16.mxu0 0
    %3609 = vmatpush2.bf16.msra.mxu0 0
    %3610 = vmatprep.subr.bf16.mxu0 0
    %3611 = vmatpush2.bf16.msra.mxu0 0
    %3612 = vmatprep.subr.bf16.mxu0 0
    %3613 = vmatpush2.bf16.msra.mxu0 0
    %3614 = vmatprep.subr.bf16.mxu0 0
    %3615 = vmatpush2.bf16.msra.mxu0 0
    %3616 = vmatprep.mubr.bf16.mxu0 0
    %3617 = vmatmul.mubr.bf16.gmra.mxu0 %v3535
    %v3618 = vpop.f32.mrf.mxu0
    %v3619 = vadd.f32 0.0, %v3618
    %v3620 = vpop.f32.mrf.mxu0
    %v3621 = vpop.f32.mrf.mxu0
    %v3622 = vpop.f32.mrf.mxu0
    %3623 = vdwg.mxu0
    %v3624 = vrcp.pop %v3619
    %v3625 = vmul.f32 %v3534, %v3624
    %v3626 = vpack.c.bf16 %v3625, %v3625
    %3627 = vmatprep.subr.bf16.mxu0 %v3297
    %3628 = vmatpush1.bf16.msra.mxu0 %v3296
    %3629 = vmatprep.subr.bf16.mxu0 %v3289
    %3630 = vmatpush1.bf16.msra.mxu0 %v3288
    %3631 = vmatprep.subr.bf16.mxu0 %v3281
    %3632 = vmatpush1.bf16.msra.mxu0 %v3280
    %3633 = vmatprep.subr.bf16.mxu0 %v3273
    %3634 = vmatpush1.bf16.msra.mxu0 %v3272
    %3635 = vmatprep.subr.bf16.mxu0 %v3265
    %3636 = vmatpush1.bf16.msra.mxu0 %v3264
    %3637 = vmatprep.subr.bf16.mxu0 %v3257
    %3638 = vmatpush1.bf16.msra.mxu0 %v3256
    %3639 = vmatprep.subr.bf16.mxu0 %v3249
    %3640 = vmatpush1.bf16.msra.mxu0 %v3248
    %3641 = vmatprep.subr.bf16.mxu0 %v3241
    %3642 = vmatpush1.bf16.msra.mxu0 %v3240
    %3643 = vmatprep.subr.bf16.mxu0 0
    %3644 = vmatpush2.bf16.msra.mxu0 0
    %3645 = vmatprep.subr.bf16.mxu0 0
    %3646 = vmatpush2.bf16.msra.mxu0 0
    %3647 = vmatprep.subr.bf16.mxu0 0
    %3648 = vmatpush2.bf16.msra.mxu0 0
    %3649 = vmatprep.subr.bf16.mxu0 0
    %3650 = vmatpush2.bf16.msra.mxu0 0
    %3651 = vmatprep.subr.bf16.mxu0 0
    %3652 = vmatpush2.bf16.msra.mxu0 0
    %3653 = vmatprep.subr.bf16.mxu0 0
    %3654 = vmatpush2.bf16.msra.mxu0 0
    %3655 = vmatprep.subr.bf16.mxu0 0
    %3656 = vmatpush2.bf16.msra.mxu0 0
    %3657 = vmatprep.subr.bf16.mxu0 0
    %3658 = vmatpush2.bf16.msra.mxu0 0
    %3659 = vmatprep.mubr.bf16.mxu0 0
    %3660 = vmatmul.mubr.bf16.gmra.mxu0 %v3626
    %v3661 = vpop.f32.mrf.mxu0
    %v3662 = vadd.f32 0.0, %v3661
    %v3663 = vpop.f32.mrf.mxu0
    %v3664 = vadd.f32 0.0, %v3663
    %v3665 = vpop.f32.mrf.mxu0
    %v3666 = vpop.f32.mrf.mxu0
    %3667 = vdwg.mxu0
    %3668 = vmatprep.subr.bf16.mxu0 %v3299
    %3669 = vmatpush1.bf16.msra.mxu0 %v3298
    %3670 = vmatprep.subr.bf16.mxu0 %v3291
    %3671 = vmatpush1.bf16.msra.mxu0 %v3290
    %3672 = vmatprep.subr.bf16.mxu0 %v3283
    %3673 = vmatpush1.bf16.msra.mxu0 %v3282
    %3674 = vmatprep.subr.bf16.mxu0 %v3275
    %3675 = vmatpush1.bf16.msra.mxu0 %v3274
    %3676 = vmatprep.subr.bf16.mxu0 %v3267
    %3677 = vmatpush1.bf16.msra.mxu0 %v3266
    %3678 = vmatprep.subr.bf16.mxu0 %v3259
    %3679 = vmatpush1.bf16.msra.mxu0 %v3258
    %3680 = vmatprep.subr.bf16.mxu0 %v3251
    %3681 = vmatpush1.bf16.msra.mxu0 %v3250
    %3682 = vmatprep.subr.bf16.mxu0 %v3243
    %3683 = vmatpush1.bf16.msra.mxu0 %v3242
    %3684 = vmatprep.subr.bf16.mxu0 0
    %3685 = vmatpush2.bf16.msra.mxu0 0
    %3686 = vmatprep.subr.bf16.mxu0 0
    %3687 = vmatpush2.bf16.msra.mxu0 0
    %3688 = vmatprep.subr.bf16.mxu0 0
    %3689 = vmatpush2.bf16.msra.mxu0 0
    %3690 = vmatprep.subr.bf16.mxu0 0
    %3691 = vmatpush2.bf16.msra.mxu0 0
    %3692 = vmatprep.subr.bf16.mxu0 0
    %3693 = vmatpush2.bf16.msra.mxu0 0
    %3694 = vmatprep.subr.bf16.mxu0 0
    %3695 = vmatpush2.bf16.msra.mxu0 0
    %3696 = vmatprep.subr.bf16.mxu0 0
    %3697 = vmatpush2.bf16.msra.mxu0 0
    %3698 = vmatprep.subr.bf16.mxu0 0
    %3699 = vmatpush2.bf16.msra.mxu0 0
    %3700 = vmatprep.mubr.bf16.mxu0 0
    %3701 = vmatmul.mubr.bf16.gmra.mxu0 %v3626
    %v3702 = vpop.f32.mrf.mxu0
    %v3703 = vadd.f32 0.0, %v3702
    %v3704 = vpop.f32.mrf.mxu0
    %v3705 = vadd.f32 0.0, %v3704
    %v3706 = vpop.f32.mrf.mxu0
    %v3707 = vpop.f32.mrf.mxu0
    %3708 = vdwg.mxu0
    %3709 = vmatprep.subr.bf16.mxu0 %v3301
    %3710 = vmatpush1.bf16.msra.mxu0 %v3300
    %3711 = vmatprep.subr.bf16.mxu0 %v3293
    %3712 = vmatpush1.bf16.msra.mxu0 %v3292
    %3713 = vmatprep.subr.bf16.mxu0 %v3285
    %3714 = vmatpush1.bf16.msra.mxu0 %v3284
    %3715 = vmatprep.subr.bf16.mxu0 %v3277
    %3716 = vmatpush1.bf16.msra.mxu0 %v3276
    %3717 = vmatprep.subr.bf16.mxu0 %v3269
    %3718 = vmatpush1.bf16.msra.mxu0 %v3268
    %3719 = vmatprep.subr.bf16.mxu0 %v3261
    %3720 = vmatpush1.bf16.msra.mxu0 %v3260
    %3721 = vmatprep.subr.bf16.mxu0 %v3253
    %3722 = vmatpush1.bf16.msra.mxu0 %v3252
    %3723 = vmatprep.subr.bf16.mxu0 %v3245
    %3724 = vmatpush1.bf16.msra.mxu0 %v3244
    %3725 = vmatprep.subr.bf16.mxu0 0
    %3726 = vmatpush2.bf16.msra.mxu0 0
    %3727 = vmatprep.subr.bf16.mxu0 0
    %3728 = vmatpush2.bf16.msra.mxu0 0
    %3729 = vmatprep.subr.bf16.mxu0 0
    %3730 = vmatpush2.bf16.msra.mxu0 0
    %3731 = vmatprep.subr.bf16.mxu0 0
    %3732 = vmatpush2.bf16.msra.mxu0 0
    %3733 = vmatprep.subr.bf16.mxu0 0
    %3734 = vmatpush2.bf16.msra.mxu0 0
    %3735 = vmatprep.subr.bf16.mxu0 0
    %3736 = vmatpush2.bf16.msra.mxu0 0
    %3737 = vmatprep.subr.bf16.mxu0 0
    %3738 = vmatpush2.bf16.msra.mxu0 0
    %3739 = vmatprep.subr.bf16.mxu0 0
    %3740 = vmatpush2.bf16.msra.mxu0 0
    %3741 = vmatprep.mubr.bf16.mxu0 0
    %3742 = vmatmul.mubr.bf16.gmra.mxu0 %v3626
    %v3743 = vpop.f32.mrf.mxu0
    %v3744 = vadd.f32 0.0, %v3743
    %v3745 = vpop.f32.mrf.mxu0
    %v3746 = vadd.f32 0.0, %v3745
    %v3747 = vpop.f32.mrf.mxu0
    %v3748 = vpop.f32.mrf.mxu0
    %3749 = vdwg.mxu0
    %3750 = vmatprep.subr.bf16.mxu0 %v3303
    %3751 = vmatpush1.bf16.msra.mxu0 %v3302
    %3752 = vmatprep.subr.bf16.mxu0 %v3295
    %3753 = vmatpush1.bf16.msra.mxu0 %v3294
    %3754 = vmatprep.subr.bf16.mxu0 %v3287
    %3755 = vmatpush1.bf16.msra.mxu0 %v3286
    %3756 = vmatprep.subr.bf16.mxu0 %v3279
    %3757 = vmatpush1.bf16.msra.mxu0 %v3278
    %3758 = vmatprep.subr.bf16.mxu0 %v3271
    %3759 = vmatpush1.bf16.msra.mxu0 %v3270
    %3760 = vmatprep.subr.bf16.mxu0 %v3263
    %3761 = vmatpush1.bf16.msra.mxu0 %v3262
    %3762 = vmatprep.subr.bf16.mxu0 %v3255
    %3763 = vmatpush1.bf16.msra.mxu0 %v3254
    %3764 = vmatprep.subr.bf16.mxu0 %v3247
    %3765 = vmatpush1.bf16.msra.mxu0 %v3246
    %3766 = vmatprep.subr.bf16.mxu0 0
    %3767 = vmatpush2.bf16.msra.mxu0 0
    %3768 = vmatprep.subr.bf16.mxu0 0
    %3769 = vmatpush2.bf16.msra.mxu0 0
    %3770 = vmatprep.subr.bf16.mxu0 0
    %3771 = vmatpush2.bf16.msra.mxu0 0
    %3772 = vmatprep.subr.bf16.mxu0 0
    %3773 = vmatpush2.bf16.msra.mxu0 0
    %3774 = vmatprep.subr.bf16.mxu0 0
    %3775 = vmatpush2.bf16.msra.mxu0 0
    %3776 = vmatprep.subr.bf16.mxu0 0
    %3777 = vmatpush2.bf16.msra.mxu0 0
    %3778 = vmatprep.subr.bf16.mxu0 0
    %3779 = vmatpush2.bf16.msra.mxu0 0
    %3780 = vmatprep.subr.bf16.mxu0 0
    %3781 = vmatpush2.bf16.msra.mxu0 0
    %3782 = vmatprep.mubr.bf16.mxu0 0
    %3783 = vmatmul.mubr.bf16.gmra.mxu0 %v3626
    %v3784 = vpop.f32.mrf.mxu0
    %v3785 = vadd.f32 0.0, %v3784
    %v3786 = vpop.f32.mrf.mxu0
    %v3787 = vadd.f32 0.0, %v3786
    %v3788 = vpop.f32.mrf.mxu0
    %v3789 = vpop.f32.mrf.mxu0
    %3790 = vdwg.mxu0
    %v3791 = vmul.f32 %v3662, %v2823
    %v3792 = vmul.f32 %v3664, %v2825
    %v3793 = vmul.f32 %v3703, %v2864
    %v3794 = vmul.f32 %v3705, %v2866
    %v3795 = vmul.f32 %v3744, %v2905
    %v3796 = vmul.f32 %v3746, %v2907
    %v3797 = vmul.f32 %v3785, %v2946
    %v3798 = vmul.f32 %v3787, %v2948
    %v3799 = vpack.c.bf16 %v3791, %v3791
    %v3800 = vpack.c.bf16 %v3792, %v3792
    %v3801 = vpack.c.bf16 %v3793, %v3793
    %v3802 = vpack.c.bf16 %v3794, %v3794
    %v3803 = vpack.c.bf16 %v3795, %v3795
    %v3804 = vpack.c.bf16 %v3796, %v3796
    %v3805 = vpack.c.bf16 %v3797, %v3797
    %v3806 = vpack.c.bf16 %v3798, %v3798
    %v3807 = vld [vmem:[#allocation6] sm:$0xff]
    %v3808 = vld [vmem:[#allocation6 + $0x8] sm:$0xff]
    %v3809 = vld [vmem:[#allocation6 + $0x10] sm:$0xff]
    %v3810 = vld [vmem:[#allocation6 + $0x18] sm:$0xff]
    %v3811 = vld [vmem:[#allocation6 + $0x20] sm:$0xff]
    %v3812 = vld [vmem:[#allocation6 + $0x28] sm:$0xff]
    %v3813 = vld [vmem:[#allocation6 + $0x30] sm:$0xff]
    %v3814 = vld [vmem:[#allocation6 + $0x38] sm:$0xff]
    %v3815 = vld [vmem:[#allocation6 + $0x40] sm:$0xff]
    %v3816 = vld [vmem:[#allocation6 + $0x48] sm:$0xff]
    %v3817 = vld [vmem:[#allocation6 + $0x50] sm:$0xff]
    %v3818 = vld [vmem:[#allocation6 + $0x58] sm:$0xff]
    %v3819 = vld [vmem:[#allocation6 + $0x60] sm:$0xff]
    %v3820 = vld [vmem:[#allocation6 + $0x68] sm:$0xff]
    %v3821 = vld [vmem:[#allocation6 + $0x70] sm:$0xff]
    %v3822 = vld [vmem:[#allocation6 + $0x78] sm:$0xff]
    %v3823 = vld [vmem:[#allocation6 + $0x80] sm:$0xff]
    %v3824 = vld [vmem:[#allocation6 + $0x88] sm:$0xff]
    %v3825 = vld [vmem:[#allocation6 + $0x90] sm:$0xff]
    %v3826 = vld [vmem:[#allocation6 + $0x98] sm:$0xff]
    %v3827 = vld [vmem:[#allocation6 + $0xa0] sm:$0xff]
    %v3828 = vld [vmem:[#allocation6 + $0xa8] sm:$0xff]
    %v3829 = vld [vmem:[#allocation6 + $0xb0] sm:$0xff]
    %v3830 = vld [vmem:[#allocation6 + $0xb8] sm:$0xff]
    %v3831 = vld [vmem:[#allocation6 + $0xc0] sm:$0xff]
    %v3832 = vld [vmem:[#allocation6 + $0xc8] sm:$0xff]
    %v3833 = vld [vmem:[#allocation6 + $0xd0] sm:$0xff]
    %v3834 = vld [vmem:[#allocation6 + $0xd8] sm:$0xff]
    %v3835 = vld [vmem:[#allocation6 + $0xe0] sm:$0xff]
    %v3836 = vld [vmem:[#allocation6 + $0xe8] sm:$0xff]
    %v3837 = vld [vmem:[#allocation6 + $0xf0] sm:$0xff]
    %v3838 = vld [vmem:[#allocation6 + $0xf8] sm:$0xff]
    %v3839 = vld [vmem:[#allocation6 + $0x100] sm:$0xff]
    %v3840 = vld [vmem:[#allocation6 + $0x108] sm:$0xff]
    %v3841 = vld [vmem:[#allocation6 + $0x110] sm:$0xff]
    %v3842 = vld [vmem:[#allocation6 + $0x118] sm:$0xff]
    %v3843 = vld [vmem:[#allocation6 + $0x120] sm:$0xff]
    %v3844 = vld [vmem:[#allocation6 + $0x128] sm:$0xff]
    %v3845 = vld [vmem:[#allocation6 + $0x130] sm:$0xff]
    %v3846 = vld [vmem:[#allocation6 + $0x138] sm:$0xff]
    %v3847 = vld [vmem:[#allocation6 + $0x140] sm:$0xff]
    %v3848 = vld [vmem:[#allocation6 + $0x148] sm:$0xff]
    %v3849 = vld [vmem:[#allocation6 + $0x150] sm:$0xff]
    %v3850 = vld [vmem:[#allocation6 + $0x158] sm:$0xff]
    %v3851 = vld [vmem:[#allocation6 + $0x160] sm:$0xff]
    %v3852 = vld [vmem:[#allocation6 + $0x168] sm:$0xff]
    %v3853 = vld [vmem:[#allocation6 + $0x170] sm:$0xff]
    %v3854 = vld [vmem:[#allocation6 + $0x178] sm:$0xff]
    %v3855 = vld [vmem:[#allocation6 + $0x180] sm:$0xff]
    %v3856 = vld [vmem:[#allocation6 + $0x188] sm:$0xff]
    %v3857 = vld [vmem:[#allocation6 + $0x190] sm:$0xff]
    %v3858 = vld [vmem:[#allocation6 + $0x198] sm:$0xff]
    %v3859 = vld [vmem:[#allocation6 + $0x1a0] sm:$0xff]
    %v3860 = vld [vmem:[#allocation6 + $0x1a8] sm:$0xff]
    %v3861 = vld [vmem:[#allocation6 + $0x1b0] sm:$0xff]
    %v3862 = vld [vmem:[#allocation6 + $0x1b8] sm:$0xff]
    %v3863 = vld [vmem:[#allocation6 + $0x1c0] sm:$0xff]
    %v3864 = vld [vmem:[#allocation6 + $0x1c8] sm:$0xff]
    %v3865 = vld [vmem:[#allocation6 + $0x1d0] sm:$0xff]
    %v3866 = vld [vmem:[#allocation6 + $0x1d8] sm:$0xff]
    %v3867 = vld [vmem:[#allocation6 + $0x1e0] sm:$0xff]
    %v3868 = vld [vmem:[#allocation6 + $0x1e8] sm:$0xff]
    %v3869 = vld [vmem:[#allocation6 + $0x1f0] sm:$0xff]
    %v3870 = vld [vmem:[#allocation6 + $0x1f8] sm:$0xff]
    %v3871 = vld [vmem:[#allocation6 + $0x200] sm:$0xff]
    %v3872 = vld [vmem:[#allocation6 + $0x208] sm:$0xff]
    %v3873 = vld [vmem:[#allocation6 + $0x210] sm:$0xff]
    %v3874 = vld [vmem:[#allocation6 + $0x218] sm:$0xff]
    %v3875 = vld [vmem:[#allocation6 + $0x220] sm:$0xff]
    %v3876 = vld [vmem:[#allocation6 + $0x228] sm:$0xff]
    %v3877 = vld [vmem:[#allocation6 + $0x230] sm:$0xff]
    %v3878 = vld [vmem:[#allocation6 + $0x238] sm:$0xff]
    %v3879 = vld [vmem:[#allocation6 + $0x240] sm:$0xff]
    %v3880 = vld [vmem:[#allocation6 + $0x248] sm:$0xff]
    %v3881 = vld [vmem:[#allocation6 + $0x250] sm:$0xff]
    %v3882 = vld [vmem:[#allocation6 + $0x258] sm:$0xff]
    %v3883 = vld [vmem:[#allocation6 + $0x260] sm:$0xff]
    %v3884 = vld [vmem:[#allocation6 + $0x268] sm:$0xff]
    %v3885 = vld [vmem:[#allocation6 + $0x270] sm:$0xff]
    %v3886 = vld [vmem:[#allocation6 + $0x278] sm:$0xff]
    %v3887 = vld [vmem:[#allocation6 + $0x280] sm:$0xff]
    %v3888 = vld [vmem:[#allocation6 + $0x288] sm:$0xff]
    %v3889 = vld [vmem:[#allocation6 + $0x290] sm:$0xff]
    %v3890 = vld [vmem:[#allocation6 + $0x298] sm:$0xff]
    %v3891 = vld [vmem:[#allocation6 + $0x2a0] sm:$0xff]
    %v3892 = vld [vmem:[#allocation6 + $0x2a8] sm:$0xff]
    %v3893 = vld [vmem:[#allocation6 + $0x2b0] sm:$0xff]
    %v3894 = vld [vmem:[#allocation6 + $0x2b8] sm:$0xff]
    %v3895 = vld [vmem:[#allocation6 + $0x2c0] sm:$0xff]
    %v3896 = vld [vmem:[#allocation6 + $0x2c8] sm:$0xff]
    %v3897 = vld [vmem:[#allocation6 + $0x2d0] sm:$0xff]
    %v3898 = vld [vmem:[#allocation6 + $0x2d8] sm:$0xff]
    %v3899 = vld [vmem:[#allocation6 + $0x2e0] sm:$0xff]
    %v3900 = vld [vmem:[#allocation6 + $0x2e8] sm:$0xff]
    %v3901 = vld [vmem:[#allocation6 + $0x2f0] sm:$0xff]
    %v3902 = vld [vmem:[#allocation6 + $0x2f8] sm:$0xff]
    %v3903 = vld [vmem:[#allocation6 + $0x300] sm:$0xff]
    %v3904 = vld [vmem:[#allocation6 + $0x308] sm:$0xff]
    %v3905 = vld [vmem:[#allocation6 + $0x310] sm:$0xff]
    %v3906 = vld [vmem:[#allocation6 + $0x318] sm:$0xff]
    %v3907 = vld [vmem:[#allocation6 + $0x320] sm:$0xff]
    %v3908 = vld [vmem:[#allocation6 + $0x328] sm:$0xff]
    %v3909 = vld [vmem:[#allocation6 + $0x330] sm:$0xff]
    %v3910 = vld [vmem:[#allocation6 + $0x338] sm:$0xff]
    %v3911 = vld [vmem:[#allocation6 + $0x340] sm:$0xff]
    %v3912 = vld [vmem:[#allocation6 + $0x348] sm:$0xff]
    %v3913 = vld [vmem:[#allocation6 + $0x350] sm:$0xff]
    %v3914 = vld [vmem:[#allocation6 + $0x358] sm:$0xff]
    %v3915 = vld [vmem:[#allocation6 + $0x360] sm:$0xff]
    %v3916 = vld [vmem:[#allocation6 + $0x368] sm:$0xff]
    %v3917 = vld [vmem:[#allocation6 + $0x370] sm:$0xff]
    %v3918 = vld [vmem:[#allocation6 + $0x378] sm:$0xff]
    %v3919 = vld [vmem:[#allocation6 + $0x380] sm:$0xff]
    %v3920 = vld [vmem:[#allocation6 + $0x388] sm:$0xff]
    %v3921 = vld [vmem:[#allocation6 + $0x390] sm:$0xff]
    %v3922 = vld [vmem:[#allocation6 + $0x398] sm:$0xff]
    %v3923 = vld [vmem:[#allocation6 + $0x3a0] sm:$0xff]
    %v3924 = vld [vmem:[#allocation6 + $0x3a8] sm:$0xff]
    %v3925 = vld [vmem:[#allocation6 + $0x3b0] sm:$0xff]
    %v3926 = vld [vmem:[#allocation6 + $0x3b8] sm:$0xff]
    %v3927 = vld [vmem:[#allocation6 + $0x3c0] sm:$0xff]
    %v3928 = vld [vmem:[#allocation6 + $0x3c8] sm:$0xff]
    %v3929 = vld [vmem:[#allocation6 + $0x3d0] sm:$0xff]
    %v3930 = vld [vmem:[#allocation6 + $0x3d8] sm:$0xff]
    %v3931 = vld [vmem:[#allocation6 + $0x3e0] sm:$0xff]
    %v3932 = vld [vmem:[#allocation6 + $0x3e8] sm:$0xff]
    %v3933 = vld [vmem:[#allocation6 + $0x3f0] sm:$0xff]
    %v3934 = vld [vmem:[#allocation6 + $0x3f8] sm:$0xff]
    %v3935 = vld [vmem:[#allocation7] sm:$0x3]
    %v3937 = vlaneseq
    %v3938 = vshrl.u32 %v3937, 7
    %v3939 = vsub.s32 0, %v3938
    %v3940 = vrot.slane %v3935, %v3939
    %v3941 = vlaneseq
    %v3942 = vshrl.u32 %v3941, 7
    %v3943 = vsub.s32 1, %v3942
    %v3944 = vrot.slane %v3935, %v3943
    %v4075 = vunpack.c.l.b16 %v3807
    %v4076 = vunpack.c.h.b16 %v3807
    %v4077 = vunpack.c.l.b16 %v3808
    %v4078 = vunpack.c.h.b16 %v3808
    %v4079 = vunpack.c.l.b16 %v3809
    %v4080 = vunpack.c.h.b16 %v3809
    %v4081 = vunpack.c.l.b16 %v3810
    %v4082 = vunpack.c.h.b16 %v3810
    %v4083 = vunpack.c.l.b16 %v3811
    %v4084 = vunpack.c.h.b16 %v3811
    %v4085 = vunpack.c.l.b16 %v3812
    %v4086 = vunpack.c.h.b16 %v3812
    %v4087 = vunpack.c.l.b16 %v3813
    %v4088 = vunpack.c.h.b16 %v3813
    %v4089 = vunpack.c.l.b16 %v3814
    %v4090 = vunpack.c.h.b16 %v3814
    %v4091 = vunpack.c.l.b16 %v3815
    %v4092 = vunpack.c.h.b16 %v3815
    %v4093 = vunpack.c.l.b16 %v3816
    %v4094 = vunpack.c.h.b16 %v3816
    %v4095 = vunpack.c.l.b16 %v3817
    %v4096 = vunpack.c.h.b16 %v3817
    %v4097 = vunpack.c.l.b16 %v3818
    %v4098 = vunpack.c.h.b16 %v3818
    %v4099 = vunpack.c.l.b16 %v3819
    %v4100 = vunpack.c.h.b16 %v3819
    %v4101 = vunpack.c.l.b16 %v3820
    %v4102 = vunpack.c.h.b16 %v3820
    %v4103 = vunpack.c.l.b16 %v3821
    %v4104 = vunpack.c.h.b16 %v3821
    %v4105 = vunpack.c.l.b16 %v3822
    %v4106 = vunpack.c.h.b16 %v3822
    %v4107 = vunpack.c.l.b16 %v3823
    %v4108 = vunpack.c.h.b16 %v3823
    %v4109 = vunpack.c.l.b16 %v3824
    %v4110 = vunpack.c.h.b16 %v3824
    %v4111 = vunpack.c.l.b16 %v3825
    %v4112 = vunpack.c.h.b16 %v3825
    %v4113 = vunpack.c.l.b16 %v3826
    %v4114 = vunpack.c.h.b16 %v3826
    %v4115 = vunpack.c.l.b16 %v3827
    %v4116 = vunpack.c.h.b16 %v3827
    %v4117 = vunpack.c.l.b16 %v3828
    %v4118 = vunpack.c.h.b16 %v3828
    %v4119 = vunpack.c.l.b16 %v3829
    %v4120 = vunpack.c.h.b16 %v3829
    %v4121 = vunpack.c.l.b16 %v3830
    %v4122 = vunpack.c.h.b16 %v3830
    %v4123 = vunpack.c.l.b16 %v3831
    %v4124 = vunpack.c.h.b16 %v3831
    %v4125 = vunpack.c.l.b16 %v3832
    %v4126 = vunpack.c.h.b16 %v3832
    %v4127 = vunpack.c.l.b16 %v3833
    %v4128 = vunpack.c.h.b16 %v3833
    %v4129 = vunpack.c.l.b16 %v3834
    %v4130 = vunpack.c.h.b16 %v3834
    %v4131 = vunpack.c.l.b16 %v3835
    %v4132 = vunpack.c.h.b16 %v3835
    %v4133 = vunpack.c.l.b16 %v3836
    %v4134 = vunpack.c.h.b16 %v3836
    %v4135 = vunpack.c.l.b16 %v3837
    %v4136 = vunpack.c.h.b16 %v3837
    %v4137 = vunpack.c.l.b16 %v3838
    %v4138 = vunpack.c.h.b16 %v3838
    %v4139 = vunpack.c.l.b16 %v3839
    %v4140 = vunpack.c.h.b16 %v3839
    %v4141 = vunpack.c.l.b16 %v3840
    %v4142 = vunpack.c.h.b16 %v3840
    %v4143 = vunpack.c.l.b16 %v3841
    %v4144 = vunpack.c.h.b16 %v3841
    %v4145 = vunpack.c.l.b16 %v3842
    %v4146 = vunpack.c.h.b16 %v3842
    %v4147 = vunpack.c.l.b16 %v3843
    %v4148 = vunpack.c.h.b16 %v3843
    %v4149 = vunpack.c.l.b16 %v3844
    %v4150 = vunpack.c.h.b16 %v3844
    %v4151 = vunpack.c.l.b16 %v3845
    %v4152 = vunpack.c.h.b16 %v3845
    %v4153 = vunpack.c.l.b16 %v3846
    %v4154 = vunpack.c.h.b16 %v3846
    %v4155 = vunpack.c.l.b16 %v3847
    %v4156 = vunpack.c.h.b16 %v3847
    %v4157 = vunpack.c.l.b16 %v3848
    %v4158 = vunpack.c.h.b16 %v3848
    %v4159 = vunpack.c.l.b16 %v3849
    %v4160 = vunpack.c.h.b16 %v3849
    %v4161 = vunpack.c.l.b16 %v3850
    %v4162 = vunpack.c.h.b16 %v3850
    %v4163 = vunpack.c.l.b16 %v3851
    %v4164 = vunpack.c.h.b16 %v3851
    %v4165 = vunpack.c.l.b16 %v3852
    %v4166 = vunpack.c.h.b16 %v3852
    %v4167 = vunpack.c.l.b16 %v3853
    %v4168 = vunpack.c.h.b16 %v3853
    %v4169 = vunpack.c.l.b16 %v3854
    %v4170 = vunpack.c.h.b16 %v3854
    %v4171 = vunpack.c.l.b16 %v3855
    %v4172 = vunpack.c.h.b16 %v3855
    %v4173 = vunpack.c.l.b16 %v3856
    %v4174 = vunpack.c.h.b16 %v3856
    %v4175 = vunpack.c.l.b16 %v3857
    %v4176 = vunpack.c.h.b16 %v3857
    %v4177 = vunpack.c.l.b16 %v3858
    %v4178 = vunpack.c.h.b16 %v3858
    %v4179 = vunpack.c.l.b16 %v3859
    %v4180 = vunpack.c.h.b16 %v3859
    %v4181 = vunpack.c.l.b16 %v3860
    %v4182 = vunpack.c.h.b16 %v3860
    %v4183 = vunpack.c.l.b16 %v3861
    %v4184 = vunpack.c.h.b16 %v3861
    %v4185 = vunpack.c.l.b16 %v3862
    %v4186 = vunpack.c.h.b16 %v3862
    %v4187 = vunpack.c.l.b16 %v3863
    %v4188 = vunpack.c.h.b16 %v3863
    %v4189 = vunpack.c.l.b16 %v3864
    %v4190 = vunpack.c.h.b16 %v3864
    %v4191 = vunpack.c.l.b16 %v3865
    %v4192 = vunpack.c.h.b16 %v3865
    %v4193 = vunpack.c.l.b16 %v3866
    %v4194 = vunpack.c.h.b16 %v3866
    %v4195 = vunpack.c.l.b16 %v3867
    %v4196 = vunpack.c.h.b16 %v3867
    %v4197 = vunpack.c.l.b16 %v3868
    %v4198 = vunpack.c.h.b16 %v3868
    %v4199 = vunpack.c.l.b16 %v3869
    %v4200 = vunpack.c.h.b16 %v3869
    %v4201 = vunpack.c.l.b16 %v3870
    %v4202 = vunpack.c.h.b16 %v3870
    %v4203 = vunpack.c.l.b16 %v3871
    %v4204 = vunpack.c.h.b16 %v3871
    %v4205 = vunpack.c.l.b16 %v3872
    %v4206 = vunpack.c.h.b16 %v3872
    %v4207 = vunpack.c.l.b16 %v3873
    %v4208 = vunpack.c.h.b16 %v3873
    %v4209 = vunpack.c.l.b16 %v3874
    %v4210 = vunpack.c.h.b16 %v3874
    %v4211 = vunpack.c.l.b16 %v3875
    %v4212 = vunpack.c.h.b16 %v3875
    %v4213 = vunpack.c.l.b16 %v3876
    %v4214 = vunpack.c.h.b16 %v3876
    %v4215 = vunpack.c.l.b16 %v3877
    %v4216 = vunpack.c.h.b16 %v3877
    %v4217 = vunpack.c.l.b16 %v3878
    %v4218 = vunpack.c.h.b16 %v3878
    %v4219 = vunpack.c.l.b16 %v3879
    %v4220 = vunpack.c.h.b16 %v3879
    %v4221 = vunpack.c.l.b16 %v3880
    %v4222 = vunpack.c.h.b16 %v3880
    %v4223 = vunpack.c.l.b16 %v3881
    %v4224 = vunpack.c.h.b16 %v3881
    %v4225 = vunpack.c.l.b16 %v3882
    %v4226 = vunpack.c.h.b16 %v3882
    %v4227 = vunpack.c.l.b16 %v3883
    %v4228 = vunpack.c.h.b16 %v3883
    %v4229 = vunpack.c.l.b16 %v3884
    %v4230 = vunpack.c.h.b16 %v3884
    %v4231 = vunpack.c.l.b16 %v3885
    %v4232 = vunpack.c.h.b16 %v3885
    %v4233 = vunpack.c.l.b16 %v3886
    %v4234 = vunpack.c.h.b16 %v3886
    %v4235 = vunpack.c.l.b16 %v3887
    %v4236 = vunpack.c.h.b16 %v3887
    %v4237 = vunpack.c.l.b16 %v3888
    %v4238 = vunpack.c.h.b16 %v3888
    %v4239 = vunpack.c.l.b16 %v3889
    %v4240 = vunpack.c.h.b16 %v3889
    %v4241 = vunpack.c.l.b16 %v3890
    %v4242 = vunpack.c.h.b16 %v3890
    %v4243 = vunpack.c.l.b16 %v3891
    %v4244 = vunpack.c.h.b16 %v3891
    %v4245 = vunpack.c.l.b16 %v3892
    %v4246 = vunpack.c.h.b16 %v3892
    %v4247 = vunpack.c.l.b16 %v3893
    %v4248 = vunpack.c.h.b16 %v3893
    %v4249 = vunpack.c.l.b16 %v3894
    %v4250 = vunpack.c.h.b16 %v3894
    %v4251 = vunpack.c.l.b16 %v3895
    %v4252 = vunpack.c.h.b16 %v3895
    %v4253 = vunpack.c.l.b16 %v3896
    %v4254 = vunpack.c.h.b16 %v3896
    %v4255 = vunpack.c.l.b16 %v3897
    %v4256 = vunpack.c.h.b16 %v3897
    %v4257 = vunpack.c.l.b16 %v3898
    %v4258 = vunpack.c.h.b16 %v3898
    %v4259 = vunpack.c.l.b16 %v3899
    %v4260 = vunpack.c.h.b16 %v3899
    %v4261 = vunpack.c.l.b16 %v3900
    %v4262 = vunpack.c.h.b16 %v3900
    %v4263 = vunpack.c.l.b16 %v3901
    %v4264 = vunpack.c.h.b16 %v3901
    %v4265 = vunpack.c.l.b16 %v3902
    %v4266 = vunpack.c.h.b16 %v3902
    %v4267 = vunpack.c.l.b16 %v3903
    %v4268 = vunpack.c.h.b16 %v3903
    %v4269 = vunpack.c.l.b16 %v3904
    %v4270 = vunpack.c.h.b16 %v3904
    %v4271 = vunpack.c.l.b16 %v3905
    %v4272 = vunpack.c.h.b16 %v3905
    %v4273 = vunpack.c.l.b16 %v3906
    %v4274 = vunpack.c.h.b16 %v3906
    %v4275 = vunpack.c.l.b16 %v3907
    %v4276 = vunpack.c.h.b16 %v3907
    %v4277 = vunpack.c.l.b16 %v3908
    %v4278 = vunpack.c.h.b16 %v3908
    %v4279 = vunpack.c.l.b16 %v3909
    %v4280 = vunpack.c.h.b16 %v3909
    %v4281 = vunpack.c.l.b16 %v3910
    %v4282 = vunpack.c.h.b16 %v3910
    %v4283 = vunpack.c.l.b16 %v3911
    %v4284 = vunpack.c.h.b16 %v3911
    %v4285 = vunpack.c.l.b16 %v3912
    %v4286 = vunpack.c.h.b16 %v3912
    %v4287 = vunpack.c.l.b16 %v3913
    %v4288 = vunpack.c.h.b16 %v3913
    %v4289 = vunpack.c.l.b16 %v3914
    %v4290 = vunpack.c.h.b16 %v3914
    %v4291 = vunpack.c.l.b16 %v3915
    %v4292 = vunpack.c.h.b16 %v3915
    %v4293 = vunpack.c.l.b16 %v3916
    %v4294 = vunpack.c.h.b16 %v3916
    %v4295 = vunpack.c.l.b16 %v3917
    %v4296 = vunpack.c.h.b16 %v3917
    %v4297 = vunpack.c.l.b16 %v3918
    %v4298 = vunpack.c.h.b16 %v3918
    %v4299 = vunpack.c.l.b16 %v3919
    %v4300 = vunpack.c.h.b16 %v3919
    %v4301 = vunpack.c.l.b16 %v3920
    %v4302 = vunpack.c.h.b16 %v3920
    %v4303 = vunpack.c.l.b16 %v3921
    %v4304 = vunpack.c.h.b16 %v3921
    %v4305 = vunpack.c.l.b16 %v3922
    %v4306 = vunpack.c.h.b16 %v3922
    %v4307 = vunpack.c.l.b16 %v3923
    %v4308 = vunpack.c.h.b16 %v3923
    %v4309 = vunpack.c.l.b16 %v3924
    %v4310 = vunpack.c.h.b16 %v3924
    %v4311 = vunpack.c.l.b16 %v3925
    %v4312 = vunpack.c.h.b16 %v3925
    %v4313 = vunpack.c.l.b16 %v3926
    %v4314 = vunpack.c.h.b16 %v3926
    %v4315 = vunpack.c.l.b16 %v3927
    %v4316 = vunpack.c.h.b16 %v3927
    %v4317 = vunpack.c.l.b16 %v3928
    %v4318 = vunpack.c.h.b16 %v3928
    %v4319 = vunpack.c.l.b16 %v3929
    %v4320 = vunpack.c.h.b16 %v3929
    %v4321 = vunpack.c.l.b16 %v3930
    %v4322 = vunpack.c.h.b16 %v3930
    %v4323 = vunpack.c.l.b16 %v3931
    %v4324 = vunpack.c.h.b16 %v3931
    %v4325 = vunpack.c.l.b16 %v3932
    %v4326 = vunpack.c.h.b16 %v3932
    %v4327 = vunpack.c.l.b16 %v3933
    %v4328 = vunpack.c.h.b16 %v3933
    %v4329 = vunpack.c.l.b16 %v3934
    %v4330 = vunpack.c.h.b16 %v3934
    %v4331 = vpack.c.b16 %v4077, %v4075
    %v4332 = vpack.c.b16 %v4078, %v4076
    %v4333 = vpack.c.b16 %v4081, %v4079
    %v4334 = vpack.c.b16 %v4082, %v4080
    %v4335 = vpack.c.b16 %v4085, %v4083
    %v4336 = vpack.c.b16 %v4086, %v4084
    %v4337 = vpack.c.b16 %v4089, %v4087
    %v4338 = vpack.c.b16 %v4090, %v4088
    %v4339 = vpack.c.b16 %v4093, %v4091
    %v4340 = vpack.c.b16 %v4094, %v4092
    %v4341 = vpack.c.b16 %v4097, %v4095
    %v4342 = vpack.c.b16 %v4098, %v4096
    %v4343 = vpack.c.b16 %v4101, %v4099
    %v4344 = vpack.c.b16 %v4102, %v4100
    %v4345 = vpack.c.b16 %v4105, %v4103
    %v4346 = vpack.c.b16 %v4106, %v4104
    %v4347 = vpack.c.b16 %v4109, %v4107
    %v4348 = vpack.c.b16 %v4110, %v4108
    %v4349 = vpack.c.b16 %v4113, %v4111
    %v4350 = vpack.c.b16 %v4114, %v4112
    %v4351 = vpack.c.b16 %v4117, %v4115
    %v4352 = vpack.c.b16 %v4118, %v4116
    %v4353 = vpack.c.b16 %v4121, %v4119
    %v4354 = vpack.c.b16 %v4122, %v4120
    %v4355 = vpack.c.b16 %v4125, %v4123
    %v4356 = vpack.c.b16 %v4126, %v4124
    %v4357 = vpack.c.b16 %v4129, %v4127
    %v4358 = vpack.c.b16 %v4130, %v4128
    %v4359 = vpack.c.b16 %v4133, %v4131
    %v4360 = vpack.c.b16 %v4134, %v4132
    %v4361 = vpack.c.b16 %v4137, %v4135
    %v4362 = vpack.c.b16 %v4138, %v4136
    %v4363 = vpack.c.b16 %v4141, %v4139
    %v4364 = vpack.c.b16 %v4142, %v4140
    %v4365 = vpack.c.b16 %v4145, %v4143
    %v4366 = vpack.c.b16 %v4146, %v4144
    %v4367 = vpack.c.b16 %v4149, %v4147
    %v4368 = vpack.c.b16 %v4150, %v4148
    %v4369 = vpack.c.b16 %v4153, %v4151
    %v4370 = vpack.c.b16 %v4154, %v4152
    %v4371 = vpack.c.b16 %v4157, %v4155
    %v4372 = vpack.c.b16 %v4158, %v4156
    %v4373 = vpack.c.b16 %v4161, %v4159
    %v4374 = vpack.c.b16 %v4162, %v4160
    %v4375 = vpack.c.b16 %v4165, %v4163
    %v4376 = vpack.c.b16 %v4166, %v4164
    %v4377 = vpack.c.b16 %v4169, %v4167
    %v4378 = vpack.c.b16 %v4170, %v4168
    %v4379 = vpack.c.b16 %v4173, %v4171
    %v4380 = vpack.c.b16 %v4174, %v4172
    %v4381 = vpack.c.b16 %v4177, %v4175
    %v4382 = vpack.c.b16 %v4178, %v4176
    %v4383 = vpack.c.b16 %v4181, %v4179
    %v4384 = vpack.c.b16 %v4182, %v4180
    %v4385 = vpack.c.b16 %v4185, %v4183
    %v4386 = vpack.c.b16 %v4186, %v4184
    %v4387 = vpack.c.b16 %v4189, %v4187
    %v4388 = vpack.c.b16 %v4190, %v4188
    %v4389 = vpack.c.b16 %v4193, %v4191
    %v4390 = vpack.c.b16 %v4194, %v4192
    %v4391 = vpack.c.b16 %v4197, %v4195
    %v4392 = vpack.c.b16 %v4198, %v4196
    %v4393 = vpack.c.b16 %v4201, %v4199
    %v4394 = vpack.c.b16 %v4202, %v4200
    %v4395 = vpack.c.b16 %v4205, %v4203
    %v4396 = vpack.c.b16 %v4206, %v4204
    %v4397 = vpack.c.b16 %v4209, %v4207
    %v4398 = vpack.c.b16 %v4210, %v4208
    %v4399 = vpack.c.b16 %v4213, %v4211
    %v4400 = vpack.c.b16 %v4214, %v4212
    %v4401 = vpack.c.b16 %v4217, %v4215
    %v4402 = vpack.c.b16 %v4218, %v4216
    %v4403 = vpack.c.b16 %v4221, %v4219
    %v4404 = vpack.c.b16 %v4222, %v4220
    %v4405 = vpack.c.b16 %v4225, %v4223
    %v4406 = vpack.c.b16 %v4226, %v4224
    %v4407 = vpack.c.b16 %v4229, %v4227
    %v4408 = vpack.c.b16 %v4230, %v4228
    %v4409 = vpack.c.b16 %v4233, %v4231
    %v4410 = vpack.c.b16 %v4234, %v4232
    %v4411 = vpack.c.b16 %v4237, %v4235
    %v4412 = vpack.c.b16 %v4238, %v4236
    %v4413 = vpack.c.b16 %v4241, %v4239
    %v4414 = vpack.c.b16 %v4242, %v4240
    %v4415 = vpack.c.b16 %v4245, %v4243
    %v4416 = vpack.c.b16 %v4246, %v4244
    %v4417 = vpack.c.b16 %v4249, %v4247
    %v4418 = vpack.c.b16 %v4250, %v4248
    %v4419 = vpack.c.b16 %v4253, %v4251
    %v4420 = vpack.c.b16 %v4254, %v4252
    %v4421 = vpack.c.b16 %v4257, %v4255
    %v4422 = vpack.c.b16 %v4258, %v4256
    %v4423 = vpack.c.b16 %v4261, %v4259
    %v4424 = vpack.c.b16 %v4262, %v4260
    %v4425 = vpack.c.b16 %v4265, %v4263
    %v4426 = vpack.c.b16 %v4266, %v4264
    %v4427 = vpack.c.b16 %v4269, %v4267
    %v4428 = vpack.c.b16 %v4270, %v4268
    %v4429 = vpack.c.b16 %v4273, %v4271
    %v4430 = vpack.c.b16 %v4274, %v4272
    %v4431 = vpack.c.b16 %v4277, %v4275
    %v4432 = vpack.c.b16 %v4278, %v4276
    %v4433 = vpack.c.b16 %v4281, %v4279
    %v4434 = vpack.c.b16 %v4282, %v4280
    %v4435 = vpack.c.b16 %v4285, %v4283
    %v4436 = vpack.c.b16 %v4286, %v4284
    %v4437 = vpack.c.b16 %v4289, %v4287
    %v4438 = vpack.c.b16 %v4290, %v4288
    %v4439 = vpack.c.b16 %v4293, %v4291
    %v4440 = vpack.c.b16 %v4294, %v4292
    %v4441 = vpack.c.b16 %v4297, %v4295
    %v4442 = vpack.c.b16 %v4298, %v4296
    %v4443 = vpack.c.b16 %v4301, %v4299
    %v4444 = vpack.c.b16 %v4302, %v4300
    %v4445 = vpack.c.b16 %v4305, %v4303
    %v4446 = vpack.c.b16 %v4306, %v4304
    %v4447 = vpack.c.b16 %v4309, %v4307
    %v4448 = vpack.c.b16 %v4310, %v4308
    %v4449 = vpack.c.b16 %v4313, %v4311
    %v4450 = vpack.c.b16 %v4314, %v4312
    %v4451 = vpack.c.b16 %v4317, %v4315
    %v4452 = vpack.c.b16 %v4318, %v4316
    %v4453 = vpack.c.b16 %v4321, %v4319
    %v4454 = vpack.c.b16 %v4322, %v4320
    %v4455 = vpack.c.b16 %v4325, %v4323
    %v4456 = vpack.c.b16 %v4326, %v4324
    %v4457 = vpack.c.b16 %v4329, %v4327
    %v4458 = vpack.c.b16 %v4330, %v4328
    %4587 = vmatprep.subr.bf16.mxu0 %v4346
    %4588 = vmatpush1.bf16.msra.mxu0 %v4345
    %4589 = vmatprep.subr.bf16.mxu0 %v4344
    %4590 = vmatpush1.bf16.msra.mxu0 %v4343
    %4591 = vmatprep.subr.bf16.mxu0 %v4342
    %4592 = vmatpush1.bf16.msra.mxu0 %v4341
    %4593 = vmatprep.subr.bf16.mxu0 %v4340
    %4594 = vmatpush1.bf16.msra.mxu0 %v4339
    %4595 = vmatprep.subr.bf16.mxu0 %v4338
    %4596 = vmatpush1.bf16.msra.mxu0 %v4337
    %4597 = vmatprep.subr.bf16.mxu0 %v4336
    %4598 = vmatpush1.bf16.msra.mxu0 %v4335
    %4599 = vmatprep.subr.bf16.mxu0 %v4334
    %4600 = vmatpush1.bf16.msra.mxu0 %v4333
    %4601 = vmatprep.subr.bf16.mxu0 %v4332
    %4602 = vmatpush1.bf16.msra.mxu0 %v4331
    %4603 = vmatprep.subr.bf16.mxu0 %v4362
    %4604 = vmatpush2.bf16.msra.mxu0 %v4361
    %4605 = vmatprep.subr.bf16.mxu0 %v4360
    %4606 = vmatpush2.bf16.msra.mxu0 %v4359
    %4607 = vmatprep.subr.bf16.mxu0 %v4358
    %4608 = vmatpush2.bf16.msra.mxu0 %v4357
    %4609 = vmatprep.subr.bf16.mxu0 %v4356
    %4610 = vmatpush2.bf16.msra.mxu0 %v4355
    %4611 = vmatprep.subr.bf16.mxu0 %v4354
    %4612 = vmatpush2.bf16.msra.mxu0 %v4353
    %4613 = vmatprep.subr.bf16.mxu0 %v4352
    %4614 = vmatpush2.bf16.msra.mxu0 %v4351
    %4615 = vmatprep.subr.bf16.mxu0 %v4350
    %4616 = vmatpush2.bf16.msra.mxu0 %v4349
    %4617 = vmatprep.subr.bf16.mxu0 %v4348
    %4618 = vmatpush2.bf16.msra.mxu0 %v4347
    %4619 = vmatprep.mubr.bf16.mxu0 %v3800
    %4620 = vmatmul.mubr.bf16.gmra.mxu0 %v3799
    %v4621 = vpop.f32.mrf.mxu0
    %v4622 = vadd.f32 %v3940, %v4621
    %v4623 = vpop.f32.mrf.mxu0
    %v4624 = vadd.f32 %v3944, %v4623
    %v4625 = vpop.f32.mrf.mxu0
    %v4626 = vpop.f32.mrf.mxu0
    %4627 = vdwg.mxu0
    %4628 = vmatprep.subr.bf16.mxu0 %v4378
    %4629 = vmatpush1.bf16.msra.mxu0 %v4377
    %4630 = vmatprep.subr.bf16.mxu0 %v4376
    %4631 = vmatpush1.bf16.msra.mxu0 %v4375
    %4632 = vmatprep.subr.bf16.mxu0 %v4374
    %4633 = vmatpush1.bf16.msra.mxu0 %v4373
    %4634 = vmatprep.subr.bf16.mxu0 %v4372
    %4635 = vmatpush1.bf16.msra.mxu0 %v4371
    %4636 = vmatprep.subr.bf16.mxu0 %v4370
    %4637 = vmatpush1.bf16.msra.mxu0 %v4369
    %4638 = vmatprep.subr.bf16.mxu0 %v4368
    %4639 = vmatpush1.bf16.msra.mxu0 %v4367
    %4640 = vmatprep.subr.bf16.mxu0 %v4366
    %4641 = vmatpush1.bf16.msra.mxu0 %v4365
    %4642 = vmatprep.subr.bf16.mxu0 %v4364
    %4643 = vmatpush1.bf16.msra.mxu0 %v4363
    %4644 = vmatprep.subr.bf16.mxu0 %v4394
    %4645 = vmatpush2.bf16.msra.mxu0 %v4393
    %4646 = vmatprep.subr.bf16.mxu0 %v4392
    %4647 = vmatpush2.bf16.msra.mxu0 %v4391
    %4648 = vmatprep.subr.bf16.mxu0 %v4390
    %4649 = vmatpush2.bf16.msra.mxu0 %v4389
    %4650 = vmatprep.subr.bf16.mxu0 %v4388
    %4651 = vmatpush2.bf16.msra.mxu0 %v4387
    %4652 = vmatprep.subr.bf16.mxu0 %v4386
    %4653 = vmatpush2.bf16.msra.mxu0 %v4385
    %4654 = vmatprep.subr.bf16.mxu0 %v4384
    %4655 = vmatpush2.bf16.msra.mxu0 %v4383
    %4656 = vmatprep.subr.bf16.mxu0 %v4382
    %4657 = vmatpush2.bf16.msra.mxu0 %v4381
    %4658 = vmatprep.subr.bf16.mxu0 %v4380
    %4659 = vmatpush2.bf16.msra.mxu0 %v4379
    %4660 = vmatprep.mubr.bf16.mxu0 %v3802
    %4661 = vmatmul.mubr.bf16.gmra.mxu0 %v3801
    %v4662 = vpop.f32.mrf.mxu0
    %v4663 = vadd.f32 %v4622, %v4662
    %v4664 = vpop.f32.mrf.mxu0
    %v4665 = vadd.f32 %v4624, %v4664
    %v4666 = vpop.f32.mrf.mxu0
    %v4667 = vpop.f32.mrf.mxu0
    %4668 = vdwg.mxu0
    %4669 = vmatprep.subr.bf16.mxu0 %v4410
    %4670 = vmatpush1.bf16.msra.mxu0 %v4409
    %4671 = vmatprep.subr.bf16.mxu0 %v4408
    %4672 = vmatpush1.bf16.msra.mxu0 %v4407
    %4673 = vmatprep.subr.bf16.mxu0 %v4406
    %4674 = vmatpush1.bf16.msra.mxu0 %v4405
    %4675 = vmatprep.subr.bf16.mxu0 %v4404
    %4676 = vmatpush1.bf16.msra.mxu0 %v4403
    %4677 = vmatprep.subr.bf16.mxu0 %v4402
    %4678 = vmatpush1.bf16.msra.mxu0 %v4401
    %4679 = vmatprep.subr.bf16.mxu0 %v4400
    %4680 = vmatpush1.bf16.msra.mxu0 %v4399
    %4681 = vmatprep.subr.bf16.mxu0 %v4398
    %4682 = vmatpush1.bf16.msra.mxu0 %v4397
    %4683 = vmatprep.subr.bf16.mxu0 %v4396
    %4684 = vmatpush1.bf16.msra.mxu0 %v4395
    %4685 = vmatprep.subr.bf16.mxu0 %v4426
    %4686 = vmatpush2.bf16.msra.mxu0 %v4425
    %4687 = vmatprep.subr.bf16.mxu0 %v4424
    %4688 = vmatpush2.bf16.msra.mxu0 %v4423
    %4689 = vmatprep.subr.bf16.mxu0 %v4422
    %4690 = vmatpush2.bf16.msra.mxu0 %v4421
    %4691 = vmatprep.subr.bf16.mxu0 %v4420
    %4692 = vmatpush2.bf16.msra.mxu0 %v4419
    %4693 = vmatprep.subr.bf16.mxu0 %v4418
    %4694 = vmatpush2.bf16.msra.mxu0 %v4417
    %4695 = vmatprep.subr.bf16.mxu0 %v4416
    %4696 = vmatpush2.bf16.msra.mxu0 %v4415
    %4697 = vmatprep.subr.bf16.mxu0 %v4414
    %4698 = vmatpush2.bf16.msra.mxu0 %v4413
    %4699 = vmatprep.subr.bf16.mxu0 %v4412
    %4700 = vmatpush2.bf16.msra.mxu0 %v4411
    %4701 = vmatprep.mubr.bf16.mxu0 %v3804
    %4702 = vmatmul.mubr.bf16.gmra.mxu0 %v3803
    %v4703 = vpop.f32.mrf.mxu0
    %v4704 = vadd.f32 %v4663, %v4703
    %v4705 = vpop.f32.mrf.mxu0
    %v4706 = vadd.f32 %v4665, %v4705
    %v4707 = vpop.f32.mrf.mxu0
    %v4708 = vpop.f32.mrf.mxu0
    %4709 = vdwg.mxu0
    %4710 = vmatprep.subr.bf16.mxu0 %v4442
    %4711 = vmatpush1.bf16.msra.mxu0 %v4441
    %4712 = vmatprep.subr.bf16.mxu0 %v4440
    %4713 = vmatpush1.bf16.msra.mxu0 %v4439
    %4714 = vmatprep.subr.bf16.mxu0 %v4438
    %4715 = vmatpush1.bf16.msra.mxu0 %v4437
    %4716 = vmatprep.subr.bf16.mxu0 %v4436
    %4717 = vmatpush1.bf16.msra.mxu0 %v4435
    %4718 = vmatprep.subr.bf16.mxu0 %v4434
    %4719 = vmatpush1.bf16.msra.mxu0 %v4433
    %4720 = vmatprep.subr.bf16.mxu0 %v4432
    %4721 = vmatpush1.bf16.msra.mxu0 %v4431
    %4722 = vmatprep.subr.bf16.mxu0 %v4430
    %4723 = vmatpush1.bf16.msra.mxu0 %v4429
    %4724 = vmatprep.subr.bf16.mxu0 %v4428
    %4725 = vmatpush1.bf16.msra.mxu0 %v4427
    %4726 = vmatprep.subr.bf16.mxu0 %v4458
    %4727 = vmatpush2.bf16.msra.mxu0 %v4457
    %4728 = vmatprep.subr.bf16.mxu0 %v4456
    %4729 = vmatpush2.bf16.msra.mxu0 %v4455
    %4730 = vmatprep.subr.bf16.mxu0 %v4454
    %4731 = vmatpush2.bf16.msra.mxu0 %v4453
    %4732 = vmatprep.subr.bf16.mxu0 %v4452
    %4733 = vmatpush2.bf16.msra.mxu0 %v4451
    %4734 = vmatprep.subr.bf16.mxu0 %v4450
    %4735 = vmatpush2.bf16.msra.mxu0 %v4449
    %4736 = vmatprep.subr.bf16.mxu0 %v4448
    %4737 = vmatpush2.bf16.msra.mxu0 %v4447
    %4738 = vmatprep.subr.bf16.mxu0 %v4446
    %4739 = vmatpush2.bf16.msra.mxu0 %v4445
    %4740 = vmatprep.subr.bf16.mxu0 %v4444
    %4741 = vmatpush2.bf16.msra.mxu0 %v4443
    %4742 = vmatprep.mubr.bf16.mxu0 %v3806
    %4743 = vmatmul.mubr.bf16.gmra.mxu0 %v3805
    %v4744 = vpop.f32.mrf.mxu0
    %v4745 = vadd.f32 %v4704, %v4744
    %v4746 = vpop.f32.mrf.mxu0
    %v4747 = vadd.f32 %v4706, %v4746
    %v4748 = vpop.f32.mrf.mxu0
    %v4749 = vpop.f32.mrf.mxu0
    %4750 = vdwg.mxu0
    %v4753 = vcombine.low %v4745, %v4747
    %v4755 = vunpack.c.l.s4 1983009808
    %v4756 = vunpack.c.0.s8 %v4755
    %v4757 = vlaneseq
    %v4758 = vshrl.u32 %v4757, 7
    %v4759 = vsub.s32 %v4756, %v4758
    %v4760 = vrot.slane %v4753, %v4759
    %4762 = vst [vmem:[%s5] sm:$0xf] %v4760
    // Predicated region
    $region38: #{mhsa_forward.1} parent=1 // pred_check
      _
    $region39: #{mhsa_forward.1} parent=1 // pred_check_branch
      %4764 = sbr.rel (0) target = $region41
    $region40: #{mhsa_forward.1} parent=1 // pred_region
      _
    $region41: #{mhsa_forward.1} parent=1 // pred_fallthru
      _
    // Predicated region
    $region42: #{mhsa_forward.1} parent=1 // pred_check
      _
    $region43: #{mhsa_forward.1} parent=1 // pred_check_branch
      %4766 = sbr.rel (0) target = $region45
    $region44: #{mhsa_forward.1} parent=1 // pred_region
      _
    $region45: #{mhsa_forward.1} parent=1 // pred_fallthru
      _
    %4767 = vsyncpa [#allocation3], 1
    %4768 = vsyncpa [#allocation5], 1
    %4769 = vsyncpa [#allocation8], 1

</llo_original>
